<compile_context>
chip_gen: v7x
topology: tpu7x:2x2x1
jax: 0.10.0
libtpu: 0.0.40
codegen_flags: <defaults>
</compile_context>

<pallas_src>
import math
import functools

import jax
import jax.numpy as jnp
from jax import lax
from jax.experimental import pallas as pl
from jax.experimental.pallas import tpu as pltpu

# n:m vector sparsity params from the reference (m=8, n=2, v=64)
M_SP, N_SP, V_SP = 8, 2, 64


class Config:
    hidden_size = 256
    intermediate_size = 512
    num_attention_heads = 2
    num_key_value_heads = 2          # == num_attention_heads (no GQA repeat needed)
    head_dim = 128                   # 128-lane aligned head slices (review item 4)
    num_experts = 4
    num_experts_per_tok = 2
    num_hidden_layers = 8
    rms_norm_eps = 1e-5
    rope_theta = 10000.0
    scale_depth = 1.4
    hidden_act = "silu"


# ---------------------------------------------------------------------------
# Generation-aware helpers
# ---------------------------------------------------------------------------

def _vmem_limit_bytes():
    """~40 MiB on v7x (64 MiB physical), ~80 MiB on v5e/v6e (128 MiB physical)."""
    try:
        cap = pltpu.get_tpu_info().vmem_capacity_bytes
    except Exception:
        cap = 64 * 1024 * 1024
    return int(min(cap * 5 // 8, 80 * 1024 * 1024))


def _pick_tile_i(ic):
    # Prefer 256-multiples (v6e/v7x MXU is 2x256^2), cap ~512 to bound per-step VMEM.
    for cand in (512, 256, 128):
        if ic % cand == 0:
            return cand
    return ic


def _pick_tile_t(t):
    for cand in (128, 64, 32, 16, 8):
        if t % cand == 0 and t // cand >= 2:
            return cand
    return t


# ---------------------------------------------------------------------------
# Kernel A: fused attention block (+ rmsnorm2 + compacted activation + router logits)
# ---------------------------------------------------------------------------

def _attn_block_kernel(x_ref, ln1_ref, ln2_ref, wqkv_ref, wo_ref, wg_ref, sel_ref,
                       cos_ref, sin_ref,
                       h2_ref, hnc_ref, scores_ref,
                       *, eps, sm_scale, res_scale, num_heads, head_dim):
    f32, bf16 = jnp.float32, jnp.bfloat16

    x = x_ref[0].astype(f32)                                     # (S, H)
    S = x.shape[0]
    nhd = num_heads * head_dim

    # ---- RMSNorm 1 (f32, like eager MiniCPM) ----
    var = jnp.mean(x * x, axis=-1, keepdims=True)
    h = x * lax.rsqrt(var + eps) * ln1_ref[...]                  # (S, H)

    # ---- fused Q/K/V projection: ONE lane-dense MXU call ----
    qkv = jnp.dot(h.astype(bf16), wqkv_ref[...],
                  preferred_element_type=f32)                    # (S, 3*NH*D)

    def split_heads(t2):                                         # (S, NH*D) -> (NH, S, D)
        return jnp.transpose(t2.reshape(S, num_heads, head_dim), (1, 0, 2))

    # slices at 128-aligned (NH*D) boundaries -> free views
    q = split_heads(qkv[:, :nhd])
    k = split_heads(qkv[:, nhd:2 * nhd])
    v = split_heads(qkv[:, 2 * nhd:])

    # ---- RoPE: rotate_half(t) == pltpu.roll(t, D/2) * [-1..,-1,+1..,+1] (XLU slot) ----
    cos = cos_ref[0].astype(f32)[None]                           # (1, S, D)
    sin = sin_ref[0].astype(f32)[None]
    half = head_dim // 2
    sign = jnp.where(
        lax.broadcasted_iota(jnp.int32, (1, 1, head_dim), 2) < half,
        jnp.float32(-1.0), jnp.float32(1.0))

    def rope(t):                                                 # (NH, S, D)
        rot = pltpu.roll(t.reshape(num_heads * S, head_dim), shift=half, axis=1)
        return t * cos + rot.reshape(num_heads, S, head_dim) * sign * sin

    q = rope(q)
    k = rope(k)

    # ---- causal additive mask generated in-kernel: zero HBM traffic / VMEM residency ----
    # TODO(synk): plumb an optional padding mask for non-causal batches.
    qpos = lax.broadcasted_iota(jnp.int32, (S, S), 0)
    kpos = lax.broadcasted_iota(jnp.int32, (S, S), 1)
    mask = jnp.where(kpos <= qpos, jnp.float32(0.0), jnp.float32(-1e30))

    # ---- batched (over heads) attention; exact softmax division ----
    # TODO(synk): at production S, flash-style Q/KV tiling with online softmax (v7x VMEM).
    s = jnp.einsum('hqd,hkd->hqk', q.astype(bf16), k.astype(bf16),
                   preferred_element_type=f32) * sm_scale + mask[None]
    s = s - jnp.max(s, axis=-1, keepdims=True)
    p = jnp.exp(s)
    p = p / jnp.sum(p, axis=-1, keepdims=True)
    o = jnp.einsum('hqk,hkd->hqd', p.astype(bf16), v.astype(bf16),
                   preferred_element_type=f32)                   # (NH, S, D)
    attn = jnp.transpose(o, (1, 0, 2)).reshape(S, nhd)           # (S, NH*D)

    # ---- output projection + scaled residual add ----
    attn_o = jnp.dot(attn.astype(bf16), wo_ref[...], preferred_element_type=f32)
    h2 = x + attn_o * res_scale
    h2_ref[0] = h2.astype(h2_ref.dtype)

    # ---- RMSNorm 2, then DIRECTLY emit: (a) 2:8-compacted activation via a fixed 0/1
    #      selection matmul (exact column gather on the MXU), (b) MoE router logits ----
    var2 = jnp.mean(h2 * h2, axis=-1, keepdims=True)
    hn = (h2 * lax.rsqrt(var2 + eps) * ln2_ref[...]).astype(bf16)
    hnc_ref[0] = jnp.dot(hn, sel_ref[...],
                         preferred_element_type=f32).astype(hnc_ref.dtype)
    scores_ref[0] = jnp.dot(hn, wg_ref[...], preferred_element_type=f32)


def attention_block(x, cos, sin, params, cfg):
    B, S, H = x.shape
    NH, D, E = cfg.num_attention_heads, cfg.head_dim, cfg.num_experts
    Hc = H // 4
    kernel = functools.partial(
        _attn_block_kernel,
        eps=cfg.rms_norm_eps,
        sm_scale=1.0 / math.sqrt(D),
        res_scale=cfg.scale_depth / math.sqrt(cfg.num_hidden_layers),
        num_heads=NH, head_dim=D)
    return pl.pallas_call(
        kernel,
        out_shape=(jax.ShapeDtypeStruct((B, S, H), x.dtype),        # residual stream
                   jax.ShapeDtypeStruct((B, S, Hc), jnp.bfloat16),  # compacted rmsnorm2 act
                   jax.ShapeDtypeStruct((B, S, E), jnp.float32)),   # router logits
        grid=(B,),
        in_specs=[
            pl.BlockSpec((1, S, H), lambda b: (b, 0, 0)),           # hidden_states
            pl.BlockSpec((1, H), lambda b: (0, 0)),                 # ln1 (resident)
            pl.BlockSpec((1, H), lambda b: (0, 0)),                 # ln2 (resident)
            pl.BlockSpec((H, 3 * NH * D), lambda b: (0, 0)),        # wqkv^T (resident)
            pl.BlockSpec((NH * D, H), lambda b: (0, 0)),            # wo^T   (resident)
            pl.BlockSpec((H, E), lambda b: (0, 0)),                 # wg^T   (resident)
            pl.BlockSpec((H, Hc), lambda b: (0, 0)),                # 0/1 selection matrix
            pl.BlockSpec((1, S, D), lambda b: (b, 0, 0)),           # cos
            pl.BlockSpec((1, S, D), lambda b: (b, 0, 0)),           # sin
        ],
        out_specs=(pl.BlockSpec((1, S, H), lambda b: (b, 0, 0)),
                   pl.BlockSpec((1, S, Hc), lambda b: (b, 0, 0)),
                   pl.BlockSpec((1, S, E), lambda b: (b, 0, 0))),
        compiler_params=pltpu.CompilerParams(
            dimension_semantics=("parallel",),
            vmem_limit_bytes=_vmem_limit_bytes()),
    )(x, params["ln1"], params["ln2"], params["wqkv_t"], params["wo_t"],
      params["wg_t"], params["sel"], cos, sin)


# ---------------------------------------------------------------------------
# Kernel B: fused sparse-MoE block (compacted 2:8 experts + gating + residual)
# ---------------------------------------------------------------------------

def _moe_block_kernel(flags_ref,                       # scalar-prefetch (SMEM)
                      xc_ref, gate_ref, res_ref, w13_ref, w2_ref,
                      out_ref, acc_ref,
                      *, res_scale, tile_i, num_experts):
    tt = pl.program_id(0)
    e = pl.program_id(1)
    it = pl.program_id(2)

    @pl.when((e == 0) & (it == 0))
    def _():
        acc_ref[...] = jnp.zeros_like(acc_ref)

    # Skip expert steps with no routed tokens in this token tile (minimum expert skip).
    # TODO(synk): full per-expert token gather via scalar-prefetch offsets driving the
    #             x/out index_maps would also skip the weight streams, not just compute.
    @pl.when(flags_ref[tt * num_experts + e] > 0)
    def _():
        x = xc_ref[...]                                               # (Tt, Hc) bf16, resident per tile
        # one fused MXU pass over the interleaved [w1 | w3] tile
        h13 = jnp.dot(x, w13_ref[0], preferred_element_type=jnp.float32)   # (Tt, 2*tile_i)
        h1 = h13[:, :tile_i]
        h3 = h13[:, tile_i:]
        hmid = (h1 * jax.nn.sigmoid(h1)) * h3                         # silu(gate) * up, f32

        # lane-dense gate (Tt, E): select column e with a one-hot reduce, fold into hmid
        col = lax.broadcasted_iota(jnp.int32, gate_ref.shape, 1)
        g = jnp.sum(jnp.where(col == e, gate_ref[...], jnp.float32(0.0)),
                    axis=-1, keepdims=True)                           # (Tt, 1)
        acc_ref[...] += jnp.dot((hmid * g).astype(jnp.bfloat16), w2_ref[0],
                                preferred_element_type=jnp.float32)   # (Tt, H)

    @pl.when((e == pl.num_programs(1) - 1) & (it == pl.num_programs(2) - 1))
    def _():
        out_ref[...] = (res_ref[...] + res_scale * acc_ref[...]).astype(out_ref.dtype)


def moe_block(hn_c, gate, residual2d, flags, w13c_t, w2c_t, res_scale, tile_t):
    T, Hc = hn_c.shape
    E, Ic, H = w2c_t.shape
    tile_i = _pick_tile_i(Ic)
    n_it = Ic // tile_i
    n_tt = T // tile_t

    # TODO(synk): input_output_aliases residual->output and pl.Buffered(3) weight streams
    #             (v5e) once per-generation tuning is wired up.
    kernel = functools.partial(_moe_block_kernel, res_scale=res_scale,
                               tile_i=tile_i, num_experts=E)
    return pl.pallas_call(
        kernel,
        out_shape=jax.ShapeDtypeStruct((T, H), residual2d.dtype),
        grid_spec=pltpu.PrefetchScalarGridSpec(
            num_scalar_prefetch=1,
            grid=(n_tt, E, n_it),
            in_specs=[
                pl.BlockSpec((tile_t, Hc), lambda tt, e, it, f: (tt, 0)),       # x_c (per tile)
                pl.BlockSpec((tile_t, E), lambda tt, e, it, f: (tt, 0)),        # gates, lane-dense
                pl.BlockSpec((tile_t, H), lambda tt, e, it, f: (tt, 0)),        # residual (per tile)
                pl.BlockSpec((1, Hc, 2 * tile_i), lambda tt, e, it, f: (e, 0, it)),  # [w1|w3] tile
                pl.BlockSpec((1, tile_i, H), lambda tt, e, it, f: (e, it, 0)),       # w2 tile
            ],
            out_specs=pl.BlockSpec((tile_t, H), lambda tt, e, it, f: (tt, 0)),
            scratch_shapes=[pltpu.VMEM((tile_t, H), jnp.float32)]),
        compiler_params=pltpu.CompilerParams(
            dimension_semantics=("parallel", "arbitrary", "arbitrary"),
            vmem_limit_bytes=_vmem_limit_bytes()),
    )(flags, hn_c, gate, residual2d, w13c_t, w2c_t)


# ---------------------------------------------------------------------------
# JAX glue: rope tables, routing, parameter setup (sparsity compaction)
# ---------------------------------------------------------------------------

def rope_cos_sin(head_dim, position_ids, theta):
    inv_freq = 1.0 / (theta ** (jnp.arange(0, head_dim, 2, dtype=jnp.float32) / head_dim))
    freqs = position_ids.astype(jnp.float32)[..., None] * inv_freq[None, None, :]
    emb = jnp.concatenate([freqs, freqs], axis=-1)               # (B, S, D)
    return jnp.cos(emb), jnp.sin(emb)


def _compact_last(w):
    """Keep only positions c with c % 8 in {0, 2} along the last axis (4x compaction).

    NMVectorSparsifier's mask is the FIXED pattern [1,0,1,0,0,0,0,0] per group of m=8
    input columns, so this re-packing is exactly the spatha 2:8 sparse operand.
    """
    *lead, X = w.shape
    return w.reshape(*lead, X // M_SP, M_SP)[..., 0:3:2].reshape(*lead, X // 4)


def init_params(key, cfg):
    H, I, E = cfg.hidden_size, cfg.intermediate_size, cfg.num_experts
    NH, D = cfg.num_attention_heads, cfg.head_dim
    Hc, Ic = H // 4, I // 4
    ks = jax.random.split(key, 8)

    def w(k, shape):
        return jax.random.normal(k, shape, dtype=jnp.float32) * 0.05

    wq = w(ks[0], (NH * D, H))
    wk = w(ks[1], (NH * D, H))
    wv = w(ks[2], (NH * D, H))
    wo = w(ks[3], (H, NH * D))
    wg = w(ks[4], (E, H))

    kw1, kw3, kw2 = jax.random.split(ks[5], 3)
    w1 = w(kw1, (E, I, H))          # gate_proj (out=I, in=H), 2:8 sparse on input dim
    w3 = w(kw3, (E, I, H))          # up_proj
    w2 = w(kw2, (E, H, I))          # down_proj (out=H, in=I), 2:8 sparse on input dim

    # Structural sparsity exploitation (exact):
    #  * w2 only reads intermediate columns j with j % 8 in {0,2}  -> only those output
    #    rows of w1/w3 are ever needed  -> compact w1/w3 on BOTH dims (16x fewer weights),
    #    w2 on its input dim (4x fewer weights).  All stored pre-transposed (x @ W form).
    w1c_t = _compact_last(jnp.transpose(_compact_last(w1), (0, 2, 1)))          # (E, Hc, Ic)
    w3c_t = _compact_last(jnp.transpose(_compact_last(w3), (0, 2, 1)))          # (E, Hc, Ic)
    w2c_t = jnp.transpose(_compact_last(w2), (0, 2, 1)).astype(jnp.bfloat16)    # (E, Ic, H)

    # Fuse gate_proj / up_proj into ONE interleaved weight stream, per intermediate tile.
    tile_i = _pick_tile_i(Ic)
    n_it = Ic // tile_i
    w13c_t = jnp.concatenate(
        [w1c_t.reshape(E, Hc, n_it, tile_i), w3c_t.reshape(E, Hc, n_it, tile_i)],
        axis=-1).reshape(E, Hc, 2 * Ic).astype(jnp.bfloat16)

    # (H, Hc) 0/1 selection matrix: kernel A emits the 2:8-compacted activation via the MXU.
    kept = (jnp.arange(H // M_SP)[:, None] * M_SP
            + jnp.array([0, 2], dtype=jnp.int32)[None, :]).reshape(-1)          # (Hc,)
    sel = jax.nn.one_hot(kept, H, dtype=jnp.float32).T.astype(jnp.bfloat16)     # (H, Hc)

    return {
        "ln1": jnp.ones((1, H), jnp.float32),
        "ln2": jnp.ones((1, H), jnp.float32),
        # fused + pre-transposed attention / router weights, bf16 for the MXU
        "wqkv_t": jnp.concatenate([wq, wk, wv], axis=0).T.astype(jnp.bfloat16),  # (H, 3*NH*D)
        "wo_t": wo.T.astype(jnp.bfloat16),                                       # (NH*D, H)
        "wg_t": wg.T.astype(jnp.bfloat16),                                       # (H, E)
        "sel": sel,
        "w13c_t": w13c_t,                                                        # (E, Hc, 2*Ic)
        "w2c_t": w2c_t,                                                          # (E, Ic, H)
    }


def decoder_layer_forward(params, cfg, hidden_states, position_ids):
    B, S, H = hidden_states.shape
    T = B * S
    E, K = cfg.num_experts, cfg.num_experts_per_tok
    res_scale = cfg.scale_depth / math.sqrt(cfg.num_hidden_layers)

    cos, sin = rope_cos_sin(cfg.head_dim, position_ids, cfg.rope_theta)

    # ---- fused kernel A: attention block + rmsnorm2 + compacted activation + router logits
    h2, hn_c, scores = attention_block(hidden_states, cos, sin, params, cfg)

    # ---- tiny (T, E) routing math in plain JAX (matches torch softmax/topk/renorm) ----
    probs = jax.nn.softmax(scores.reshape(T, E).astype(jnp.float32), axis=-1)
    topw, topi = lax.top_k(probs, K)
    topw = topw / jnp.sum(topw, axis=-1, keepdims=True)
    gate = jnp.einsum("tk,tke->te", topw,
                      jax.nn.one_hot(topi, E, dtype=jnp.float32))        # lane-dense (T, E)

    # per-(token_tile, expert) activity flags -> SMEM scalar prefetch for expert skipping
    tile_t = _pick_tile_t(T)
    n_tt = T // tile_t
    flags = (jnp.max(gate.reshape(n_tt, tile_t, E), axis=1) > 0).astype(jnp.int32).reshape(-1)

    # NOTE: the reference's padding of expert token rows to multiples of v=64 (zero rows,
    #       zero bias) and the zero SrnmSpmm bias are mathematical no-ops, not materialized.

    # ---- fused kernel B: all routed experts + gating + scaled residual add ----
    out2d = moe_block(hn_c.reshape(T, H // 4), gate, h2.reshape(T, H), flags,
                      params["w13c_t"], params["w2c_t"], res_scale, tile_t)
    return out2d.reshape(B, S, H)


if __name__ == "__main__":
    cfg = Config()
    B, S = 2, 8

    key = jax.random.PRNGKey(0)
    k_inp, k_par = jax.random.split(key)

    hidden_states = jax.random.normal(k_inp, (B, S, cfg.hidden_size), dtype=jnp.float32)
    position_ids = jnp.broadcast_to(jnp.arange(S, dtype=jnp.int32), (B, S))

    params = init_params(k_par, cfg)

    fwd = jax.jit(lambda p, x, pid: decoder_layer_forward(p, cfg, x, pid))
    out = fwd(params, hidden_states, position_ids)
    jax.block_until_ready(out)
    assert out.shape == (B, S, cfg.hidden_size)
    print("KERNEL_OK")
</pallas_src>

<mosaic_0001>
module attributes {stable_mosaic.version = 11 : i64} {
  func.func @_attn_block_kernel(%arg0: i32, %arg1: memref<1x8x256xf32, #tpu.memory_space<vmem>>, %arg2: memref<1x256xf32, #tpu.memory_space<vmem>>, %arg3: memref<1x256xf32, #tpu.memory_space<vmem>>, %arg4: memref<256x768xbf16, #tpu.memory_space<vmem>>, %arg5: memref<256x256xbf16, #tpu.memory_space<vmem>>, %arg6: memref<256x4xbf16, #tpu.memory_space<vmem>>, %arg7: memref<256x64xbf16, #tpu.memory_space<vmem>>, %arg8: memref<1x8x128xf32, #tpu.memory_space<vmem>>, %arg9: memref<1x8x128xf32, #tpu.memory_space<vmem>>, %arg10: memref<1x8x256xf32, #tpu.memory_space<vmem>>, %arg11: memref<1x8x64xbf16, #tpu.memory_space<vmem>>, %arg12: memref<1x8x4xf32, #tpu.memory_space<vmem>>) attributes {dimension_semantics = [#tpu.dimension_semantics<parallel>], iteration_bounds = array<i64: 2>, scalar_prefetch = 0 : i64, scratch_operands = 0 : i64, tpu.core_type = #tpu.core_type<tc>, window_params = [{transform_indices = @transform_0, window_bounds = array<i64: 1, 8, 256>}, {pipeline_mode = #tpu.pipeline_mode<synchronous>, transform_indices = @transform_1, window_bounds = array<i64: 1, 256>}, {pipeline_mode = #tpu.pipeline_mode<synchronous>, transform_indices = @transform_2, window_bounds = array<i64: 1, 256>}, {pipeline_mode = #tpu.pipeline_mode<synchronous>, transform_indices = @transform_3, window_bounds = array<i64: 256, 768>}, {pipeline_mode = #tpu.pipeline_mode<synchronous>, transform_indices = @transform_4, window_bounds = array<i64: 256, 256>}, {pipeline_mode = #tpu.pipeline_mode<synchronous>, transform_indices = @transform_5, window_bounds = array<i64: 256, 4>}, {pipeline_mode = #tpu.pipeline_mode<synchronous>, transform_indices = @transform_6, window_bounds = array<i64: 256, 64>}, {transform_indices = @transform_7, window_bounds = array<i64: 1, 8, 128>}, {transform_indices = @transform_8, window_bounds = array<i64: 1, 8, 128>}, {transform_indices = @transform_9, window_bounds = array<i64: 1, 8, 256>}, {transform_indices = @transform_10, window_bounds = array<i64: 1, 8, 64>}, {transform_indices = @transform_11, window_bounds = array<i64: 1, 8, 4>}]} {
    %c0 = arith.constant 0 : index
    %c0_0 = arith.constant 0 : index
    %c0_1 = arith.constant 0 : index
    %0 = vector.load %arg1[%c0, %c0_0, %c0_1] : memref<1x8x256xf32, #tpu.memory_space<vmem>>, vector<1x8x256xf32>
    %1 = vector.shape_cast %0 : vector<1x8x256xf32> to vector<8x256xf32>
    %2 = arith.mulf %1, %1 : vector<8x256xf32>
    %cst = arith.constant dense<0.000000e+00> : vector<8xf32>
    %3 = vector.multi_reduction <add>, %2, %cst [1] : vector<8x256xf32> to vector<8xf32>
    %4 = vector.shape_cast %3 : vector<8xf32> to vector<8x1xf32>
    %cst_2 = arith.constant 2.560000e+02 : f32
    %5 = vector.broadcast %cst_2 : f32 to vector<8x1xf32>
    %6 = arith.divf %4, %5 : vector<8x1xf32>
    %cst_3 = arith.constant 9.99999974E-6 : f32
    %7 = vector.broadcast %cst_3 : f32 to vector<8x1xf32>
    %8 = arith.addf %6, %7 : vector<8x1xf32>
    %9 = math.rsqrt %8 : vector<8x1xf32>
    %10 = vector.broadcast %9 : vector<8x1xf32> to vector<8x256xf32>
    %11 = arith.mulf %1, %10 : vector<8x256xf32>
    %c0_4 = arith.constant 0 : index
    %c0_5 = arith.constant 0 : index
    %12 = vector.load %arg2[%c0_4, %c0_5] : memref<1x256xf32, #tpu.memory_space<vmem>>, vector<1x256xf32>
    %13 = vector.broadcast %12 : vector<1x256xf32> to vector<8x256xf32>
    %14 = arith.mulf %11, %13 : vector<8x256xf32>
    %15 = arith.truncf %14 : vector<8x256xf32> to vector<8x256xbf16>
    %c0_6 = arith.constant 0 : index
    %c0_7 = arith.constant 0 : index
    %16 = vector.load %arg4[%c0_6, %c0_7] : memref<256x768xbf16, #tpu.memory_space<vmem>>, vector<256x768xbf16>
    %cst_8 = arith.constant dense<0.000000e+00> : vector<8x768xf32>
    %17 = tpu.matmul %15, %16, %cst_8 {dimension_numbers = #tpu.dot_dimension_numbers<[1], [0], [0], [1], [0, 0, 1, 1], [], []>} : vector<8x256xbf16>, vector<256x768xbf16>, vector<8x768xf32> -> vector<8x768xf32>
    %18 = vector.extract_strided_slice %17 {offsets = [0, 0], sizes = [8, 256], strides = [1, 1]} : vector<8x768xf32> to vector<8x256xf32>
    %19 = vector.shape_cast %18 : vector<8x256xf32> to vector<8x2x128xf32>
    %20 = tpu.transpose %19, [1, 0, 2] : vector<8x2x128xf32> -> vector<2x8x128xf32>
    %21 = vector.extract_strided_slice %17 {offsets = [0, 256], sizes = [8, 256], strides = [1, 1]} : vector<8x768xf32> to vector<8x256xf32>
    %22 = vector.shape_cast %21 : vector<8x256xf32> to vector<8x2x128xf32>
    %23 = tpu.transpose %22, [1, 0, 2] : vector<8x2x128xf32> -> vector<2x8x128xf32>
    %24 = vector.extract_strided_slice %17 {offsets = [0, 512], sizes = [8, 256], strides = [1, 1]} : vector<8x768xf32> to vector<8x256xf32>
    %25 = vector.shape_cast %24 : vector<8x256xf32> to vector<8x2x128xf32>
    %26 = tpu.transpose %25, [1, 0, 2] : vector<8x2x128xf32> -> vector<2x8x128xf32>
    %c0_9 = arith.constant 0 : index
    %c0_10 = arith.constant 0 : index
    %c0_11 = arith.constant 0 : index
    %27 = vector.load %arg8[%c0_9, %c0_10, %c0_11] : memref<1x8x128xf32, #tpu.memory_space<vmem>>, vector<1x8x128xf32>
    %28 = vector.shape_cast %27 : vector<1x8x128xf32> to vector<8x128xf32>
    %29 = vector.shape_cast %28 : vector<8x128xf32> to vector<1x8x128xf32>
    %c0_12 = arith.constant 0 : index
    %c0_13 = arith.constant 0 : index
    %c0_14 = arith.constant 0 : index
    %30 = vector.load %arg9[%c0_12, %c0_13, %c0_14] : memref<1x8x128xf32, #tpu.memory_space<vmem>>, vector<1x8x128xf32>
    %31 = vector.shape_cast %30 : vector<1x8x128xf32> to vector<8x128xf32>
    %32 = vector.shape_cast %31 : vector<8x128xf32> to vector<1x8x128xf32>
    %33 = tpu.iota {dimensions = array<i32: 2>} : vector<1x1x128xi32>
    %c64_i32 = arith.constant 64 : i32
    %34 = vector.broadcast %c64_i32 : i32 to vector<1x1x128xi32>
    %35 = arith.cmpi slt, %33, %34 : vector<1x1x128xi32>
    %cst_15 = arith.constant -1.000000e+00 : f32
    %cst_16 = arith.constant 1.000000e+00 : f32
    %36 = vector.broadcast %cst_15 : f32 to vector<1x1x128xf32>
    %37 = vector.broadcast %cst_16 : f32 to vector<1x1x128xf32>
    %38 = arith.select %35, %36, %37 : vector<1x1x128xi1>, vector<1x1x128xf32>
    %39 = vector.shape_cast %20 : vector<2x8x128xf32> to vector<16x128xf32>
    %c64_i32_17 = arith.constant 64 : i32
    %40 = tpu.dynamic_rotate %39 by %c64_i32_17 dim 1 : vector<16x128xf32>, i32 -> vector<16x128xf32>
    %41 = vector.broadcast %29 : vector<1x8x128xf32> to vector<2x8x128xf32>
    %42 = arith.mulf %20, %41 : vector<2x8x128xf32>
    %43 = vector.shape_cast %40 : vector<16x128xf32> to vector<2x8x128xf32>
    %44 = vector.broadcast %38 : vector<1x1x128xf32> to vector<2x8x128xf32>
    %45 = arith.mulf %43, %44 : vector<2x8x128xf32>
    %46 = vector.broadcast %32 : vector<1x8x128xf32> to vector<2x8x128xf32>
    %47 = arith.mulf %45, %46 : vector<2x8x128xf32>
    %48 = arith.addf %42, %47 : vector<2x8x128xf32>
    %49 = vector.shape_cast %23 : vector<2x8x128xf32> to vector<16x128xf32>
    %c64_i32_18 = arith.constant 64 : i32
    %50 = tpu.dynamic_rotate %49 by %c64_i32_18 dim 1 : vector<16x128xf32>, i32 -> vector<16x128xf32>
    %51 = vector.broadcast %29 : vector<1x8x128xf32> to vector<2x8x128xf32>
    %52 = arith.mulf %23, %51 : vector<2x8x128xf32>
    %53 = vector.shape_cast %50 : vector<16x128xf32> to vector<2x8x128xf32>
    %54 = vector.broadcast %38 : vector<1x1x128xf32> to vector<2x8x128xf32>
    %55 = arith.mulf %53, %54 : vector<2x8x128xf32>
    %56 = vector.broadcast %32 : vector<1x8x128xf32> to vector<2x8x128xf32>
    %57 = arith.mulf %55, %56 : vector<2x8x128xf32>
    %58 = arith.addf %52, %57 : vector<2x8x128xf32>
    %59 = tpu.iota {dimensions = array<i32: 0>} : vector<8x8xi32>
    %60 = tpu.iota {dimensions = array<i32: 1>} : vector<8x8xi32>
    %61 = arith.cmpi sle, %60, %59 : vector<8x8xi32>
    %cst_19 = arith.constant 0.000000e+00 : f32
    %cst_20 = arith.constant -1.000000e+30 : f32
    %62 = vector.broadcast %cst_19 : f32 to vector<8x8xf32>
    %63 = vector.broadcast %cst_20 : f32 to vector<8x8xf32>
    %64 = arith.select %61, %62, %63 : vector<8x8xi1>, vector<8x8xf32>
    %65 = arith.truncf %48 : vector<2x8x128xf32> to vector<2x8x128xbf16>
    %66 = arith.truncf %58 : vector<2x8x128xf32> to vector<2x8x128xbf16>
    "tpu.trace_start"() <{level = 10 : i32, message = "hqd,hkd->hqk"}> : () -> ()
    %cst_21 = arith.constant dense<0.000000e+00> : vector<2x8x8xf32>
    %67 = tpu.matmul %65, %66, %cst_21 {dimension_numbers = #tpu.dot_dimension_numbers<[2], [2], [1], [1], [0, 0, 0, 1, 1, 1], [0], [0]>} : vector<2x8x128xbf16>, vector<2x8x128xbf16>, vector<2x8x8xf32> -> vector<2x8x8xf32>
    "tpu.trace_stop"() : () -> ()
    %cst_22 = arith.constant 0.0883883461 : f32
    %68 = vector.broadcast %cst_22 : f32 to vector<2x8x8xf32>
    %69 = arith.mulf %67, %68 : vector<2x8x8xf32>
    %70 = vector.shape_cast %64 : vector<8x8xf32> to vector<1x8x8xf32>
    %71 = vector.broadcast %70 : vector<1x8x8xf32> to vector<2x8x8xf32>
    %72 = arith.addf %69, %71 : vector<2x8x8xf32>
    %cst_23 = arith.constant dense<0xFF800000> : vector<2x8xf32>
    %73 = vector.multi_reduction <maximumf>, %72, %cst_23 [2] : vector<2x8x8xf32> to vector<2x8xf32>
    %74 = vector.shape_cast %73 : vector<2x8xf32> to vector<2x8x1xf32>
    %75 = vector.broadcast %74 : vector<2x8x1xf32> to vector<2x8x8xf32>
    %76 = arith.subf %72, %75 : vector<2x8x8xf32>
    %77 = math.exp %76 : vector<2x8x8xf32>
    %cst_24 = arith.constant dense<0.000000e+00> : vector<2x8xf32>
    %78 = vector.multi_reduction <add>, %77, %cst_24 [2] : vector<2x8x8xf32> to vector<2x8xf32>
    %79 = vector.shape_cast %78 : vector<2x8xf32> to vector<2x8x1xf32>
    %80 = vector.broadcast %79 : vector<2x8x1xf32> to vector<2x8x8xf32>
    %81 = arith.divf %77, %80 : vector<2x8x8xf32>
    %82 = arith.truncf %81 : vector<2x8x8xf32> to vector<2x8x8xbf16>
    %83 = arith.truncf %26 : vector<2x8x128xf32> to vector<2x8x128xbf16>
    "tpu.trace_start"() <{level = 10 : i32, message = "hqk,hkd->hqd"}> : () -> ()
    %cst_25 = arith.constant dense<0.000000e+00> : vector<2x8x128xf32>
    %84 = tpu.matmul %82, %83, %cst_25 {dimension_numbers = #tpu.dot_dimension_numbers<[2], [1], [1], [2], [0, 0, 0, 1, 1, 2], [0], [0]>} : vector<2x8x8xbf16>, vector<2x8x128xbf16>, vector<2x8x128xf32> -> vector<2x8x128xf32>
    "tpu.trace_stop"() : () -> ()
    %85 = tpu.transpose %84, [1, 0, 2] : vector<2x8x128xf32> -> vector<8x2x128xf32>
    %86 = vector.shape_cast %85 : vector<8x2x128xf32> to vector<8x256xf32>
    %87 = arith.truncf %86 : vector<8x256xf32> to vector<8x256xbf16>
    %c0_26 = arith.constant 0 : index
    %c0_27 = arith.constant 0 : index
    %88 = vector.load %arg5[%c0_26, %c0_27] : memref<256x256xbf16, #tpu.memory_space<vmem>>, vector<256x256xbf16>
    %cst_28 = arith.constant dense<0.000000e+00> : vector<8x256xf32>
    %89 = tpu.matmul %87, %88, %cst_28 {dimension_numbers = #tpu.dot_dimension_numbers<[1], [0], [0], [1], [0, 0, 1, 1], [], []>} : vector<8x256xbf16>, vector<256x256xbf16>, vector<8x256xf32> -> vector<8x256xf32>
    %cst_29 = arith.constant 0.494974732 : f32
    %90 = vector.broadcast %cst_29 : f32 to vector<8x256xf32>
    %91 = arith.mulf %89, %90 : vector<8x256xf32>
    %92 = arith.addf %1, %91 : vector<8x256xf32>
    %c0_30 = arith.constant 0 : index
    %c0_31 = arith.constant 0 : index
    %c0_32 = arith.constant 0 : index
    %93 = vector.load %arg10[%c0_30, %c0_31, %c0_32] : memref<1x8x256xf32, #tpu.memory_space<vmem>>, vector<1x8x256xf32>
    %94 = vector.shape_cast %93 : vector<1x8x256xf32> to vector<8x256xf32>
    %95 = vector.shape_cast %92 : vector<8x256xf32> to vector<1x8x256xf32>
    tpu.vector_store %arg10[%c0_30, %c0_31, %c0_32], %95 {strides = array<i32>} : memref<1x8x256xf32, #tpu.memory_space<vmem>>, vector<1x8x256xf32>,
    %96 = arith.mulf %92, %92 : vector<8x256xf32>
    %cst_33 = arith.constant dense<0.000000e+00> : vector<8xf32>
    %97 = vector.multi_reduction <add>, %96, %cst_33 [1] : vector<8x256xf32> to vector<8xf32>
    %98 = vector.shape_cast %97 : vector<8xf32> to vector<8x1xf32>
    %cst_34 = arith.constant 2.560000e+02 : f32
    %99 = vector.broadcast %cst_34 : f32 to vector<8x1xf32>
    %100 = arith.divf %98, %99 : vector<8x1xf32>
    %cst_35 = arith.constant 9.99999974E-6 : f32
    %101 = vector.broadcast %cst_35 : f32 to vector<8x1xf32>
    %102 = arith.addf %100, %101 : vector<8x1xf32>
    %103 = math.rsqrt %102 : vector<8x1xf32>
    %104 = vector.broadcast %103 : vector<8x1xf32> to vector<8x256xf32>
    %105 = arith.mulf %92, %104 : vector<8x256xf32>
    %c0_36 = arith.constant 0 : index
    %c0_37 = arith.constant 0 : index
    %106 = vector.load %arg3[%c0_36, %c0_37] : memref<1x256xf32, #tpu.memory_space<vmem>>, vector<1x256xf32>
    %107 = vector.broadcast %106 : vector<1x256xf32> to vector<8x256xf32>
    %108 = arith.mulf %105, %107 : vector<8x256xf32>
    %109 = arith.truncf %108 : vector<8x256xf32> to vector<8x256xbf16>
    %c0_38 = arith.constant 0 : index
    %c0_39 = arith.constant 0 : index
    %110 = vector.load %arg7[%c0_38, %c0_39] : memref<256x64xbf16, #tpu.memory_space<vmem>>, vector<256x64xbf16>
    %cst_40 = arith.constant dense<0.000000e+00> : vector<8x64xf32>
    %111 = tpu.matmul %109, %110, %cst_40 {dimension_numbers = #tpu.dot_dimension_numbers<[1], [0], [0], [1], [0, 0, 1, 1], [], []>} : vector<8x256xbf16>, vector<256x64xbf16>, vector<8x64xf32> -> vector<8x64xf32>
    %112 = arith.truncf %111 : vector<8x64xf32> to vector<8x64xbf16>
    %c0_41 = arith.constant 0 : index
    %c0_42 = arith.constant 0 : index
    %c0_43 = arith.constant 0 : index
    %113 = vector.load %arg11[%c0_41, %c0_42, %c0_43] : memref<1x8x64xbf16, #tpu.memory_space<vmem>>, vector<1x8x64xbf16>
    %114 = vector.shape_cast %113 : vector<1x8x64xbf16> to vector<8x64xbf16>
    %115 = vector.shape_cast %112 : vector<8x64xbf16> to vector<1x8x64xbf16>
    tpu.vector_store %arg11[%c0_41, %c0_42, %c0_43], %115 {strides = array<i32>} : memref<1x8x64xbf16, #tpu.memory_space<vmem>>, vector<1x8x64xbf16>,
    %c0_44 = arith.constant 0 : index
    %c0_45 = arith.constant 0 : index
    %116 = vector.load %arg6[%c0_44, %c0_45] : memref<256x4xbf16, #tpu.memory_space<vmem>>, vector<256x4xbf16>
    %cst_46 = arith.constant dense<0.000000e+00> : vector<8x4xf32>
    %117 = tpu.matmul %109, %116, %cst_46 {dimension_numbers = #tpu.dot_dimension_numbers<[1], [0], [0], [1], [0, 0, 1, 1], [], []>} : vector<8x256xbf16>, vector<256x4xbf16>, vector<8x4xf32> -> vector<8x4xf32>
    %c0_47 = arith.constant 0 : index
    %c0_48 = arith.constant 0 : index
    %c0_49 = arith.constant 0 : index
    %118 = vector.load %arg12[%c0_47, %c0_48, %c0_49] : memref<1x8x4xf32, #tpu.memory_space<vmem>>, vector<1x8x4xf32>
    %119 = vector.shape_cast %118 : vector<1x8x4xf32> to vector<8x4xf32>
    %120 = vector.shape_cast %117 : vector<8x4xf32> to vector<1x8x4xf32>
    tpu.vector_store %arg12[%c0_47, %c0_48, %c0_49], %120 {strides = array<i32>} : memref<1x8x4xf32, #tpu.memory_space<vmem>>, vector<1x8x4xf32>,
    return
  }
  func.func @transform_0(%arg0: i32) -> (i32, i32, i32) {
    %c0_i32 = arith.constant 0 : i32
    %c0_i32_0 = arith.constant 0 : i32
    %c0_i32_1 = arith.constant 0 : i32
    return %arg0, %c0_i32, %c0_i32_0 : i32, i32, i32
  }
  func.func @transform_1(%arg0: i32) -> (i32, i32) {
    %c0_i32 = arith.constant 0 : i32
    %c0_i32_0 = arith.constant 0 : i32
    %c0_i32_1 = arith.constant 0 : i32
    return %c0_i32, %c0_i32_0 : i32, i32
  }
  func.func @transform_2(%arg0: i32) -> (i32, i32) {
    %c0_i32 = arith.constant 0 : i32
    %c0_i32_0 = arith.constant 0 : i32
    %c0_i32_1 = arith.constant 0 : i32
    return %c0_i32, %c0_i32_0 : i32, i32
  }
  func.func @transform_3(%arg0: i32) -> (i32, i32) {
    %c0_i32 = arith.constant 0 : i32
    %c0_i32_0 = arith.constant 0 : i32
    %c0_i32_1 = arith.constant 0 : i32
    return %c0_i32, %c0_i32_0 : i32, i32
  }
  func.func @transform_4(%arg0: i32) -> (i32, i32) {
    %c0_i32 = arith.constant 0 : i32
    %c0_i32_0 = arith.constant 0 : i32
    %c0_i32_1 = arith.constant 0 : i32
    return %c0_i32, %c0_i32_0 : i32, i32
  }
  func.func @transform_5(%arg0: i32) -> (i32, i32) {
    %c0_i32 = arith.constant 0 : i32
    %c0_i32_0 = arith.constant 0 : i32
    %c0_i32_1 = arith.constant 0 : i32
    return %c0_i32, %c0_i32_0 : i32, i32
  }
  func.func @transform_6(%arg0: i32) -> (i32, i32) {
    %c0_i32 = arith.constant 0 : i32
    %c0_i32_0 = arith.constant 0 : i32
    %c0_i32_1 = arith.constant 0 : i32
    return %c0_i32, %c0_i32_0 : i32, i32
  }
  func.func @transform_7(%arg0: i32) -> (i32, i32, i32) {
    %c0_i32 = arith.constant 0 : i32
    %c0_i32_0 = arith.constant 0 : i32
    %c0_i32_1 = arith.constant 0 : i32
    return %arg0, %c0_i32, %c0_i32_0 : i32, i32, i32
  }
  func.func @transform_8(%arg0: i32) -> (i32, i32, i32) {
    %c0_i32 = arith.constant 0 : i32
    %c0_i32_0 = arith.constant 0 : i32
    %c0_i32_1 = arith.constant 0 : i32
    return %arg0, %c0_i32, %c0_i32_0 : i32, i32, i32
  }
  func.func @transform_9(%arg0: i32) -> (i32, i32, i32) {
    %c0_i32 = arith.constant 0 : i32
    %c0_i32_0 = arith.constant 0 : i32
    %c0_i32_1 = arith.constant 0 : i32
    return %arg0, %c0_i32, %c0_i32_0 : i32, i32, i32
  }
  func.func @transform_10(%arg0: i32) -> (i32, i32, i32) {
    %c0_i32 = arith.constant 0 : i32
    %c0_i32_0 = arith.constant 0 : i32
    %c0_i32_1 = arith.constant 0 : i32
    return %arg0, %c0_i32, %c0_i32_0 : i32, i32, i32
  }
  func.func @transform_11(%arg0: i32) -> (i32, i32, i32) {
    %c0_i32 = arith.constant 0 : i32
    %c0_i32_0 = arith.constant 0 : i32
    %c0_i32_1 = arith.constant 0 : i32
    return %arg0, %c0_i32, %c0_i32_0 : i32, i32, i32
  }
}

module attributes {stable_mosaic.version = 11 : i64} {
  func.func @_moe_block_kernel(%arg0: i32, %arg1: i32, %arg2: i32, %arg3: memref<8xi32, #tpu.memory_space<smem>>, %arg4: memref<8x64xbf16, #tpu.memory_space<vmem>>, %arg5: memref<8x4xf32, #tpu.memory_space<vmem>>, %arg6: memref<8x256xf32, #tpu.memory_space<vmem>>, %arg7: memref<1x64x256xbf16, #tpu.memory_space<vmem>>, %arg8: memref<1x128x256xbf16, #tpu.memory_space<vmem>>, %arg9: memref<8x256xf32, #tpu.memory_space<vmem>>, %arg10: memref<8x256xf32, #tpu.memory_space<vmem>>) attributes {dimension_semantics = [#tpu.dimension_semantics<parallel>, #tpu.dimension_semantics<arbitrary>, #tpu.dimension_semantics<arbitrary>], iteration_bounds = array<i64: 2, 4, 1>, scalar_prefetch = 1 : i64, scratch_operands = 1 : i64, tpu.core_type = #tpu.core_type<tc>, window_params = [{transform_indices = @transform_0, window_bounds = array<i64: 8, 64>}, {transform_indices = @transform_1, window_bounds = array<i64: 8, 4>}, {transform_indices = @transform_2, window_bounds = array<i64: 8, 256>}, {transform_indices = @transform_3, window_bounds = array<i64: 1, 64, 256>}, {transform_indices = @transform_4, window_bounds = array<i64: 1, 128, 256>}, {transform_indices = @transform_5, window_bounds = array<i64: 8, 256>}]} {
    %c0_i32 = arith.constant 0 : i32
    %0 = arith.cmpi eq, %arg1, %c0_i32 : i32
    %c0_i32_0 = arith.constant 0 : i32
    %1 = arith.cmpi eq, %arg2, %c0_i32_0 : i32
    %2 = arith.andi %0, %1 : i1
    %3 = arith.extui %2 : i1 to i32
    %c0_i32_1 = arith.constant 0 : i32
    %4 = arith.cmpi ne, %3, %c0_i32_1 : i32
    scf.if %4 {
      %cst = arith.constant 0.000000e+00 : f32
      %17 = vector.broadcast %cst : f32 to vector<8x256xf32>
      %c0 = arith.constant 0 : index
      %c0_6 = arith.constant 0 : index
      %18 = vector.load %arg10[%c0, %c0_6] : memref<8x256xf32, #tpu.memory_space<vmem>>, vector<8x256xf32>
      tpu.vector_store %arg10[%c0, %c0_6], %17 {strides = array<i32>} : memref<8x256xf32, #tpu.memory_space<vmem>>, vector<8x256xf32>,
    } else {
    }
    %c4_i32 = arith.constant 4 : i32
    %5 = arith.muli %arg0, %c4_i32 : i32
    %6 = arith.addi %5, %arg1 : i32
    %7 = arith.index_cast %6 : i32 to index
    %8 = memref.load %arg3[%7] : memref<8xi32, #tpu.memory_space<smem>>
    %c0_i32_2 = arith.constant 0 : i32
    %9 = arith.cmpi sgt, %8, %c0_i32_2 : i32
    %10 = arith.extui %9 : i1 to i32
    %c0_i32_3 = arith.constant 0 : i32
    %11 = arith.cmpi ne, %10, %c0_i32_3 : i32
    scf.if %11 {
      %c0 = arith.constant 0 : index
      %c0_6 = arith.constant 0 : index
      %17 = vector.load %arg4[%c0, %c0_6] : memref<8x64xbf16, #tpu.memory_space<vmem>>, vector<8x64xbf16>
      %c0_7 = arith.constant 0 : index
      %c0_8 = arith.constant 0 : index
      %c0_9 = arith.constant 0 : index
      %18 = vector.load %arg7[%c0_7, %c0_8, %c0_9] : memref<1x64x256xbf16, #tpu.memory_space<vmem>>, vector<1x64x256xbf16>
      %19 = vector.shape_cast %18 : vector<1x64x256xbf16> to vector<64x256xbf16>
      %cst = arith.constant dense<0.000000e+00> : vector<8x256xf32>
      %20 = tpu.matmul %17, %19, %cst {dimension_numbers = #tpu.dot_dimension_numbers<[1], [0], [0], [1], [0, 0, 1, 1], [], []>} : vector<8x64xbf16>, vector<64x256xbf16>, vector<8x256xf32> -> vector<8x256xf32>
      %21 = vector.extract_strided_slice %20 {offsets = [0, 0], sizes = [8, 128], strides = [1, 1]} : vector<8x256xf32> to vector<8x128xf32>
      %22 = vector.extract_strided_slice %20 {offsets = [0, 128], sizes = [8, 128], strides = [1, 1]} : vector<8x256xf32> to vector<8x128xf32>
      %23 = arith.negf %21 : vector<8x128xf32>
      %24 = math.exp %23 : vector<8x128xf32>
      %cst_10 = arith.constant 1.000000e+00 : f32
      %25 = vector.broadcast %cst_10 : f32 to vector<8x128xf32>
      %26 = arith.addf %25, %24 : vector<8x128xf32>
      %27 = arith.divf %25, %26 : vector<8x128xf32>
      %28 = arith.mulf %21, %27 : vector<8x128xf32>
      %29 = arith.mulf %28, %22 : vector<8x128xf32>
      %30 = tpu.iota {dimensions = array<i32: 1>} : vector<8x4xi32>
      %31 = vector.broadcast %arg1 : i32 to vector<8x4xi32>
      %32 = arith.cmpi eq, %30, %31 : vector<8x4xi32>
      %c0_11 = arith.constant 0 : index
      %c0_12 = arith.constant 0 : index
      %33 = vector.load %arg5[%c0_11, %c0_12] : memref<8x4xf32, #tpu.memory_space<vmem>>, vector<8x4xf32>
      %cst_13 = arith.constant 0.000000e+00 : f32
      %34 = vector.broadcast %cst_13 : f32 to vector<8x4xf32>
      %35 = arith.select %32, %33, %34 : vector<8x4xi1>, vector<8x4xf32>
      %cst_14 = arith.constant dense<0.000000e+00> : vector<8xf32>
      %36 = vector.multi_reduction <add>, %35, %cst_14 [1] : vector<8x4xf32> to vector<8xf32>
      %37 = vector.shape_cast %36 : vector<8xf32> to vector<8x1xf32>
      %c0_15 = arith.constant 0 : index
      %c0_16 = arith.constant 0 : index
      %38 = vector.load %arg10[%c0_15, %c0_16] : memref<8x256xf32, #tpu.memory_space<vmem>>, vector<8x256xf32>
      %39 = vector.broadcast %37 : vector<8x1xf32> to vector<8x128xf32>
      %40 = arith.mulf %29, %39 : vector<8x128xf32>
      %41 = arith.truncf %40 : vector<8x128xf32> to vector<8x128xbf16>
      %c0_17 = arith.constant 0 : index
      %c0_18 = arith.constant 0 : index
      %c0_19 = arith.constant 0 : index
      %42 = vector.load %arg8[%c0_17, %c0_18, %c0_19] : memref<1x128x256xbf16, #tpu.memory_space<vmem>>, vector<1x128x256xbf16>
      %43 = vector.shape_cast %42 : vector<1x128x256xbf16> to vector<128x256xbf16>
      %cst_20 = arith.constant dense<0.000000e+00> : vector<8x256xf32>
      %44 = tpu.matmul %41, %43, %cst_20 {dimension_numbers = #tpu.dot_dimension_numbers<[1], [0], [0], [1], [0, 0, 1, 1], [], []>} : vector<8x128xbf16>, vector<128x256xbf16>, vector<8x256xf32> -> vector<8x256xf32>
      %45 = arith.addf %38, %44 : vector<8x256xf32>
      %c0_21 = arith.constant 0 : index
      %c0_22 = arith.constant 0 : index
      %46 = vector.load %arg10[%c0_21, %c0_22] : memref<8x256xf32, #tpu.memory_space<vmem>>, vector<8x256xf32>
      tpu.vector_store %arg10[%c0_21, %c0_22], %45 {strides = array<i32>} : memref<8x256xf32, #tpu.memory_space<vmem>>, vector<8x256xf32>,
    } else {
    }
    %c3_i32 = arith.constant 3 : i32
    %12 = arith.cmpi eq, %arg1, %c3_i32 : i32
    %c0_i32_4 = arith.constant 0 : i32
    %13 = arith.cmpi eq, %arg2, %c0_i32_4 : i32
    %14 = arith.andi %12, %13 : i1
    %15 = arith.extui %14 : i1 to i32
    %c0_i32_5 = arith.constant 0 : i32
    %16 = arith.cmpi ne, %15, %c0_i32_5 : i32
    scf.if %16 {
      %c0 = arith.constant 0 : index
      %c0_6 = arith.constant 0 : index
      %17 = vector.load %arg6[%c0, %c0_6] : memref<8x256xf32, #tpu.memory_space<vmem>>, vector<8x256xf32>
      %c0_7 = arith.constant 0 : index
      %c0_8 = arith.constant 0 : index
      %18 = vector.load %arg10[%c0_7, %c0_8] : memref<8x256xf32, #tpu.memory_space<vmem>>, vector<8x256xf32>
      %cst = arith.constant 0.494974732 : f32
      %19 = vector.broadcast %cst : f32 to vector<8x256xf32>
      %20 = arith.mulf %19, %18 : vector<8x256xf32>
      %21 = arith.addf %17, %20 : vector<8x256xf32>
      %c0_9 = arith.constant 0 : index
      %c0_10 = arith.constant 0 : index
      %22 = vector.load %arg9[%c0_9, %c0_10] : memref<8x256xf32, #tpu.memory_space<vmem>>, vector<8x256xf32>
      tpu.vector_store %arg9[%c0_9, %c0_10], %21 {strides = array<i32>} : memref<8x256xf32, #tpu.memory_space<vmem>>, vector<8x256xf32>,
    } else {
    }
    return
  }
  func.func @transform_0(%arg0: i32, %arg1: i32, %arg2: i32, %arg3: memref<8xi32, #tpu.memory_space<smem>>) -> (i32, i32) {
    %c0_i32 = arith.constant 0 : i32
    %c0_i32_0 = arith.constant 0 : i32
    return %arg0, %c0_i32 : i32, i32
  }
  func.func @transform_1(%arg0: i32, %arg1: i32, %arg2: i32, %arg3: memref<8xi32, #tpu.memory_space<smem>>) -> (i32, i32) {
    %c0_i32 = arith.constant 0 : i32
    %c0_i32_0 = arith.constant 0 : i32
    return %arg0, %c0_i32 : i32, i32
  }
  func.func @transform_2(%arg0: i32, %arg1: i32, %arg2: i32, %arg3: memref<8xi32, #tpu.memory_space<smem>>) -> (i32, i32) {
    %c0_i32 = arith.constant 0 : i32
    %c0_i32_0 = arith.constant 0 : i32
    return %arg0, %c0_i32 : i32, i32
  }
  func.func @transform_3(%arg0: i32, %arg1: i32, %arg2: i32, %arg3: memref<8xi32, #tpu.memory_space<smem>>) -> (i32, i32, i32) {
    %c0_i32 = arith.constant 0 : i32
    %c0_i32_0 = arith.constant 0 : i32
    return %arg1, %c0_i32, %arg2 : i32, i32, i32
  }
  func.func @transform_4(%arg0: i32, %arg1: i32, %arg2: i32, %arg3: memref<8xi32, #tpu.memory_space<smem>>) -> (i32, i32, i32) {
    %c0_i32 = arith.constant 0 : i32
    %c0_i32_0 = arith.constant 0 : i32
    return %arg1, %arg2, %c0_i32 : i32, i32, i32
  }
  func.func @transform_5(%arg0: i32, %arg1: i32, %arg2: i32, %arg3: memref<8xi32, #tpu.memory_space<smem>>) -> (i32, i32) {
    %c0_i32 = arith.constant 0 : i32
    %c0_i32_0 = arith.constant 0 : i32
    return %arg0, %c0_i32 : i32, i32
  }
}

</mosaic_0001>

<llo_original>
// kernel: div.17
$region0: #{div.17}
  %s0 = inlined_call_operand.vmem [shape: f32[2,8], index: 0, kind: input, shape index: {}]
  %s1 = inlined_call_operand.vmem [shape: f32[16], index: 1, kind: output, shape index: {}]
  $region1: #{div.17} parent=0
    #allocation0 [shape = 'u8[4096]{0}', space=vmem, size = 0x1000, scoped, tag = 'scoped mem for output reshape']
    #allocation1 [shape = 'u8[4096]{0}', space=vmem, size = 0x1000, scoped, tag = 'scoped mem for input reshape']
    %s3 = sshllo.u32 0, 2
    %v4 = vld [vmem:[%s0] sm:%s3]
    %5 = vst [vmem:[#allocation1] sm:%s3] %v4
    %v6 = vld [vmem:[#allocation1] sm:$0x1]
    %vm7 = vcmask 64512
    %8 = vst.msk [vmem:[#allocation0] sm:$0x1] %vm7, %v6
    %s9 = scalar_lea.vmem [#allocation1], 1
    %v10 = vld [vmem:[%s9] sm:$0x1]
    %11 = vrot.lane.b32.xlu0 %v10, 8
    %v12 = vpop.permute.xlu0 %11
    %vm13 = vcmask 130112
    %14 = vst.msk [vmem:[#allocation0] sm:$0x1] %vm13, %v12
    %s16 = sshllo.u32 0, 1
    %v18 = vld [vmem:[#allocation0] sm:%s16]
    %s19 = sshllo.u32 0, 1
    %20 = vst [vmem:[%s1] sm:%s19] %v18

// kernel: _lambda_.3
$region0: #{_lambda_.3}
  #allocation0 [shape = 'u32[]', space=smem, size = 0x4, offset = 0x4, fixed_abs, tag = 'smem constant byte address 0x4 - core index']
  #allocation1 [shape = 'u32[144,128]{1,0:T(1,128)}', space=vmem, size = 0x12000, scoped, tag = 'internal scratch']
  #allocation2 [shape = 'f32[8,256]{1,0:T(8,128)}', space=vmem, size = 0x2000, scoped, tag = 'scratch operand']
  #allocation3 [shape = 's32[1]{0}', space=sflag, size = 0x4, scoped, tag = 'scoped memory for _lambda_.3']
  #allocation4 [shape = 'u8[512]{0}', space=smem, size = 0x200, scoped, tag = 'prefetched SMEM operand 0']
  %s0 = inlined_call_operand.vmem [shape: s32[8], index: 0, kind: input, shape index: {}]
  %s1 = inlined_call_operand.vmem [shape: bf16[16,64], index: 1, kind: input, shape index: {}]
  %s2 = inlined_call_operand.vmem [shape: f32[16,4], index: 2, kind: input, shape index: {}]
  %s3 = inlined_call_operand.vmem [shape: f32[16,256], index: 3, kind: input, shape index: {}]
  %s4 = inlined_call_operand.vmem [shape: bf16[4,64,256], index: 4, kind: input, shape index: {}]
  %s5 = inlined_call_operand.vmem [shape: bf16[4,128,256], index: 5, kind: input, shape index: {}]
  %s6 = inlined_call_operand.hbm [shape: f32[16,256], index: 6, kind: output, shape index: {}]
  %s7 = sld [smem:[#allocation0]]
  $region65: #{_lambda_.3} parent=0
    _
  %s9 = ssub.s32 1, %s7
  %s10 = scalar_select 0, %s9, %s7
  %s11 = sshll.u32 %s0, 4
  %s12 = int_to_ptr.vmem [resolvable:$true] %s11
  %14 = dma.vmem_to_smem %s12, 16, [#allocation4], [#allocation3]
  %15 = dma.done [#allocation3], 16
  %16 = sfence
  $region1: #{_lambda_.3} parent=0
    #allocation5 [shape = 'u8[16384]{0}', space=vmem, size = 0x4000, scoped, tag = 'output window, operand 0']
    #allocation6 [shape = 's32[2]{0}', space=sflag, size = 0x8, scoped, tag = 'scoped memory for _lambda_.3']
    %17 = vsyncpa [#allocation6], 0
    %s18 = scalar_lea.sflag [#allocation6], 1
    %19 = vsyncpa %s18, 0
    loop: start=0, step=1, limit=10
    $region2: #{_lambda_.3} parent=1 // loop_pre_header
      _
    $region3: #{_lambda_.3} parent=1 // loop_header
      %s21 = sphi 0, %s25
      %p22 = scmp.ge.s32.totalorder %s21, 10
      %s28 = sphi 0, %s47
      %s29 = sphi 0, %s43
      %s30 = sphi 0, %s39
      %s31 = sphi 0, %s28
      %s32 = sphi 0, %s29
      %s33 = sphi 0, %s30
      %s34 = sphi 0, %s31
      %s35 = sphi 0, %s32
      %s36 = sphi 0, %s33
      %s50 = sphi 0, %s52
      %s53 = sphi 0, %s50
      %s54 = sphi 0, %s53
      %s70 = sphi 0, %s54
      %s76 = sphi 0, %s78
      %s79 = sphi 0, %s76
      %s80 = sphi 0, %s79
      %s96 = sphi 0, %s80
      %s102 = sphi 0, %s104
      %s105 = sphi 0, %s102
      %s106 = sphi 0, %s105
      %s122 = sphi 0, %s106
      %s130 = sphi 0, %s132
      %s133 = sphi 0, %s130
      %s134 = sphi 0, %s133
      %s150 = sphi 0, %s134
      %s158 = sphi 0, %s160
      %s161 = sphi 0, %s158
      %s162 = sphi 0, %s161
      %s178 = sphi 0, %s162
      %s184 = sphi 0, %s186
      %s187 = sphi 0, %s184
      %s188 = sphi 0, %s187
      %s204 = sphi 0, %s188
    $region4: #{_lambda_.3} parent=1 // loop_header_branch
      %24 = sbr.rel (%p22) target = $region8
    $region5: #{_lambda_.3} parent=1 // loop_body
      %s26 = ssub.s32 %s21, 1
      %s27 = ssub.s32 %s21, 2
      %s37 = sadd.s32 1, %s30
      %p38 = scmp.ge.s32.totalorder %s37, 1
      %s39 = scalar_select %p38, 0, %s37
      %s40 = sadd.s32 1, %s29
      %s41 = scalar_select %p38, %s40, %s29
      %p42 = scmp.ge.s32.totalorder %s41, 4
      %s43 = scalar_select %p42, 0, %s41
      %s44 = sadd.s32 1, %s28
      %s45 = scalar_select %p42, %s44, %s28
      %p46 = scmp.ge.s32.totalorder %s45, 2
      %s47 = scalar_select %p46, 0, %s45
      %s48 = ssub.s32 %s28, %s47
      %p49 = scmp.eq.s32.totalorder %s48, 0
      %s51 = sadd.s32 %s50, 1
      %s52 = scalar_select %p49, %s50, %s51
      %p55 = pneg %p49
      %p56 = scmp.eq.s32.totalorder %s21, 7
      %p57 = por %p55, %p56
      %p58 = scmp.ne.s32.totalorder %s50, %s53
      %p59 = scmp.eq.s32.totalorder %s21, 0
      %p60 = por %p58, %p59
      %p61 = scmp.ne.s32.totalorder %s50, %s53
      %p62 = scmp.eq.s32.totalorder %s26, 7
      %p63 = por %p61, %p62
      %p64 = scmp.ne.s32.totalorder %s53, %s54
      %p65 = scmp.eq.s32.totalorder %s26, 0
      %p66 = por %p64, %p65
      %p67 = scmp.ne.s32.totalorder %s53, %s54
      %p68 = scmp.eq.s32.totalorder %s27, 7
      %p69 = por %p67, %p68
      %p71 = scmp.ne.s32.totalorder %s54, %s70
      %p72 = scmp.eq.s32.totalorder %s27, 0
      %p73 = por %p71, %p72
      %s74 = ssub.s32 %s28, %s47
      %p75 = scmp.eq.s32.totalorder %s74, 0
      %s77 = sadd.s32 %s76, 1
      %s78 = scalar_select %p75, %s76, %s77
      %p81 = pneg %p75
      %p82 = scmp.eq.s32.totalorder %s21, 7
      %p83 = por %p81, %p82
      %p84 = scmp.ne.s32.totalorder %s76, %s79
      %p85 = scmp.eq.s32.totalorder %s21, 0
      %p86 = por %p84, %p85
      %p87 = scmp.ne.s32.totalorder %s76, %s79
      %p88 = scmp.eq.s32.totalorder %s26, 7
      %p89 = por %p87, %p88
      %p90 = scmp.ne.s32.totalorder %s79, %s80
      %p91 = scmp.eq.s32.totalorder %s26, 0
      %p92 = por %p90, %p91
      %p93 = scmp.ne.s32.totalorder %s79, %s80
      %p94 = scmp.eq.s32.totalorder %s27, 7
      %p95 = por %p93, %p94
      %p97 = scmp.ne.s32.totalorder %s80, %s96
      %p98 = scmp.eq.s32.totalorder %s27, 0
      %p99 = por %p97, %p98
      %s100 = ssub.s32 %s28, %s47
      %p101 = scmp.eq.s32.totalorder %s100, 0
      %s103 = sadd.s32 %s102, 1
      %s104 = scalar_select %p101, %s102, %s103
      %p107 = pneg %p101
      %p108 = scmp.eq.s32.totalorder %s21, 7
      %p109 = por %p107, %p108
      %p110 = scmp.ne.s32.totalorder %s102, %s105
      %p111 = scmp.eq.s32.totalorder %s21, 0
      %p112 = por %p110, %p111
      %p113 = scmp.ne.s32.totalorder %s102, %s105
      %p114 = scmp.eq.s32.totalorder %s26, 7
      %p115 = por %p113, %p114
      %p116 = scmp.ne.s32.totalorder %s105, %s106
      %p117 = scmp.eq.s32.totalorder %s26, 0
      %p118 = por %p116, %p117
      %p119 = scmp.ne.s32.totalorder %s105, %s106
      %p120 = scmp.eq.s32.totalorder %s27, 7
      %p121 = por %p119, %p120
      %p123 = scmp.ne.s32.totalorder %s106, %s122
      %p124 = scmp.eq.s32.totalorder %s27, 0
      %p125 = por %p123, %p124
      %s126 = ssub.s32 %s29, %s43
      %s127 = ssub.s32 %s30, %s39
      %s128 = sor.u32 %s126, %s127
      %p129 = scmp.eq.s32.totalorder %s128, 0
      %s131 = sadd.s32 %s130, 1
      %s132 = scalar_select %p129, %s130, %s131
      %p135 = pneg %p129
      %p136 = scmp.eq.s32.totalorder %s21, 7
      %p137 = por %p135, %p136
      %p138 = scmp.ne.s32.totalorder %s130, %s133
      %p139 = scmp.eq.s32.totalorder %s21, 0
      %p140 = por %p138, %p139
      %p141 = scmp.ne.s32.totalorder %s130, %s133
      %p142 = scmp.eq.s32.totalorder %s26, 7
      %p143 = por %p141, %p142
      %p144 = scmp.ne.s32.totalorder %s133, %s134
      %p145 = scmp.eq.s32.totalorder %s26, 0
      %p146 = por %p144, %p145
      %p147 = scmp.ne.s32.totalorder %s133, %s134
      %p148 = scmp.eq.s32.totalorder %s27, 7
      %p149 = por %p147, %p148
      %p151 = scmp.ne.s32.totalorder %s134, %s150
      %p152 = scmp.eq.s32.totalorder %s27, 0
      %p153 = por %p151, %p152
      %s154 = ssub.s32 %s29, %s43
      %s155 = ssub.s32 %s30, %s39
      %s156 = sor.u32 %s154, %s155
      %p157 = scmp.eq.s32.totalorder %s156, 0
      %s159 = sadd.s32 %s158, 1
      %s160 = scalar_select %p157, %s158, %s159
      %p163 = pneg %p157
      %p164 = scmp.eq.s32.totalorder %s21, 7
      %p165 = por %p163, %p164
      %p166 = scmp.ne.s32.totalorder %s158, %s161
      %p167 = scmp.eq.s32.totalorder %s21, 0
      %p168 = por %p166, %p167
      %p169 = scmp.ne.s32.totalorder %s158, %s161
      %p170 = scmp.eq.s32.totalorder %s26, 7
      %p171 = por %p169, %p170
      %p172 = scmp.ne.s32.totalorder %s161, %s162
      %p173 = scmp.eq.s32.totalorder %s26, 0
      %p174 = por %p172, %p173
      %p175 = scmp.ne.s32.totalorder %s161, %s162
      %p176 = scmp.eq.s32.totalorder %s27, 7
      %p177 = por %p175, %p176
      %p179 = scmp.ne.s32.totalorder %s162, %s178
      %p180 = scmp.eq.s32.totalorder %s27, 0
      %p181 = por %p179, %p180
      %s182 = ssub.s32 %s28, %s47
      %p183 = scmp.eq.s32.totalorder %s182, 0
      %s185 = sadd.s32 %s184, 1
      %s186 = scalar_select %p183, %s184, %s185
      %p189 = pneg %p183
      %p190 = scmp.eq.s32.totalorder %s21, 7
      %p191 = por %p189, %p190
      %p192 = scmp.ne.s32.totalorder %s184, %s187
      %p193 = scmp.eq.s32.totalorder %s21, 0
      %p194 = por %p192, %p193
      %p195 = scmp.ne.s32.totalorder %s184, %s187
      %p196 = scmp.eq.s32.totalorder %s26, 7
      %p197 = por %p195, %p196
      %p198 = scmp.ne.s32.totalorder %s187, %s188
      %p199 = scmp.eq.s32.totalorder %s26, 0
      %p200 = por %p198, %p199
      %p201 = scmp.ne.s32.totalorder %s187, %s188
      %p202 = scmp.eq.s32.totalorder %s27, 7
      %p203 = por %p201, %p202
      %p205 = scmp.ne.s32.totalorder %s188, %s204
      %p206 = scmp.eq.s32.totalorder %s27, 0
      %p207 = por %p205, %p206
      %p208 = scmp.le.s32.totalorder 1, %s21
      %p209 = scmp.lt.s32.totalorder %s21, 9
      %p210 = pnand %p208, %p209
      %p211 = pneg %p210
      // Predicated region
      $region9: #{_lambda_.3} parent=5 // pred_check
        _
      $region10: #{_lambda_.3} parent=5 // pred_check_branch
        %213 = sbr.rel (%p210) target = $region12
      $region11: #{_lambda_.3} parent=5 // pred_region
        %s214 = ssub.s32 %s21, 1
      $region12: #{_lambda_.3} parent=5 // pred_fallthru
        _
      %p215 = scmp.lt.s32.totalorder %s21, 8
      // Predicated region
      $region13: #{_lambda_.3} parent=5 // pred_check
        %p216 = pneg %p215
      $region14: #{_lambda_.3} parent=5 // pred_check_branch
        %218 = sbr.rel (%p216) target = $region16
      $region15: #{_lambda_.3} parent=5 // pred_region
        // Predicated region
        $region17: #{_lambda_.3} parent=15 // pred_check
          %p219 = pneg %p60
        $region18: #{_lambda_.3} parent=15 // pred_check_branch
          %221 = sbr.rel (%p219) target = $region20
        $region19: #{_lambda_.3} parent=15 // pred_region
          %p222 = scmp.lt.s32.totalorder %s28, 1
          %s223 = scalar_select %p222, %s28, 1
          %s224 = smul.addr %s223, 4
          %s225 = scalar_lea.vmem %s1, %s224
        $region20: #{_lambda_.3} parent=15 // pred_fallthru
          _
        // Predicated region
        $region21: #{_lambda_.3} parent=15 // pred_check
          %p226 = pneg %p86
        $region22: #{_lambda_.3} parent=15 // pred_check_branch
          %228 = sbr.rel (%p226) target = $region24
        $region23: #{_lambda_.3} parent=15 // pred_region
          %p229 = scmp.lt.s32.totalorder %s28, 1
          %s230 = scalar_select %p229, %s28, 1
          %s231 = smul.addr %s230, 8
          %s232 = scalar_lea.vmem %s2, %s231
        $region24: #{_lambda_.3} parent=15 // pred_fallthru
          _
        // Predicated region
        $region25: #{_lambda_.3} parent=15 // pred_check
          %p233 = pneg %p112
        $region26: #{_lambda_.3} parent=15 // pred_check_branch
          %235 = sbr.rel (%p233) target = $region28
        $region27: #{_lambda_.3} parent=15 // pred_region
          %p236 = scmp.lt.s32.totalorder %s28, 1
          %s237 = scalar_select %p236, %s28, 1
          %s238 = smul.addr %s237, 2
          %s239 = smul.addr %s238, 8
          %s240 = scalar_lea.vmem %s3, %s239
        $region28: #{_lambda_.3} parent=15 // pred_fallthru
          _
        // Predicated region
        $region29: #{_lambda_.3} parent=15 // pred_check
          %p241 = pneg %p140
        $region30: #{_lambda_.3} parent=15 // pred_check_branch
          %243 = sbr.rel (%p241) target = $region32
        $region31: #{_lambda_.3} parent=15 // pred_region
          %s244 = smul.u32 2, %s30
          %p245 = scmp.lt.s32.totalorder %s29, 3
          %s246 = scalar_select %p245, %s29, 3
          %p247 = scmp.lt.s32.totalorder %s244, 1
          %s248 = scalar_select %p247, %s244, 1
          %s249 = smul.addr %s246, 16
          %s250 = sadd.s32 %s248, %s249
          %s251 = smul.addr %s250, 4
          %s252 = scalar_lea.vmem %s4, %s251
          %s253 = smul.u32 2, %s30
        $region32: #{_lambda_.3} parent=15 // pred_fallthru
          _
        // Predicated region
        $region33: #{_lambda_.3} parent=15 // pred_check
          %p254 = pneg %p168
        $region34: #{_lambda_.3} parent=15 // pred_check_branch
          %256 = sbr.rel (%p254) target = $region36
        $region35: #{_lambda_.3} parent=15 // pred_region
          %s257 = smul.u32 16, %s30
          %p258 = scmp.lt.s32.totalorder %s29, 3
          %s259 = scalar_select %p258, %s29, 3
          %p260 = scmp.lt.s32.totalorder %s257, 15
          %s261 = scalar_select %p260, %s257, 15
          %s262 = smul.addr %s261, 2
          %s263 = smul.addr %s259, 32
          %s264 = sadd.s32 %s262, %s263
          %s265 = smul.addr %s264, 4
          %s266 = scalar_lea.vmem %s5, %s265
          %s267 = smul.u32 16, %s30
        $region36: #{_lambda_.3} parent=15 // pred_fallthru
          _
      $region16: #{_lambda_.3} parent=5 // pred_fallthru
        _
      %p268 = scmp.le.s32.totalorder 1, %s21
      %p269 = scmp.lt.s32.totalorder %s21, 9
      %p270 = pnand %p268, %p269
      %p271 = pneg %p270
      // Predicated region
      $region37: #{_lambda_.3} parent=5 // pred_check
        _
      $region38: #{_lambda_.3} parent=5 // pred_check_branch
        %273 = sbr.rel (%p270) target = $region40
      $region39: #{_lambda_.3} parent=5 // pred_region
        %s274 = ssub.s32 %s21, 1
        %p275 = scmp.lt.s32.totalorder %s31, 1
        %s276 = scalar_select %p275, %s31, 1
        %s277 = smul.addr %s276, 4
        %s278 = scalar_lea.vmem %s1, %s277
        %p279 = pneg %p66
        %p280 = pneg %p63
        %p281 = scmp.lt.s32.totalorder %s31, 1
        %s282 = scalar_select %p281, %s31, 1
        %s283 = smul.addr %s282, 8
        %s284 = scalar_lea.vmem %s2, %s283
        %p285 = pneg %p92
        %p286 = pneg %p89
        %p287 = scmp.lt.s32.totalorder %s31, 1
        %s288 = scalar_select %p287, %s31, 1
        %s289 = smul.addr %s288, 2
        %s290 = smul.addr %s289, 8
        %s291 = scalar_lea.vmem %s3, %s290
        %p292 = pneg %p118
        %p293 = pneg %p115
        %s294 = smul.u32 2, %s33
        %p295 = scmp.lt.s32.totalorder %s32, 3
        %s296 = scalar_select %p295, %s32, 3
        %p297 = scmp.lt.s32.totalorder %s294, 1
        %s298 = scalar_select %p297, %s294, 1
        %s299 = smul.addr %s296, 16
        %s300 = sadd.s32 %s298, %s299
        %s301 = smul.addr %s300, 4
        %s302 = scalar_lea.vmem %s4, %s301
        %p303 = pneg %p146
        %p304 = pneg %p143
        %s305 = smul.u32 16, %s33
        %p306 = scmp.lt.s32.totalorder %s32, 3
        %s307 = scalar_select %p306, %s32, 3
        %p308 = scmp.lt.s32.totalorder %s305, 15
        %s309 = scalar_select %p308, %s305, 15
        %s310 = smul.addr %s309, 2
        %s311 = smul.addr %s307, 32
        %s312 = sadd.s32 %s310, %s311
        %s313 = smul.addr %s312, 4
        %s314 = scalar_lea.vmem %s5, %s313
        %p315 = pneg %p174
        %p316 = pneg %p171
        %p317 = pneg %p200
        %p318 = pneg %p197
        %s319 = sand.u32 %s187, 1
        %s320 = scalar_lea.sflag [#allocation6], %s319
        %s321 = sand.u32 %s187, 1
        %s322 = smul.addr %s321, 16
        %s323 = scalar_lea.vmem [#allocation5], %s322
        %p324 = scmp.lt.s32.totalorder %s31, 1
        %s325 = scalar_select %p324, %s31, 1
        %s326 = smul.addr %s325, 4
        %s327 = scalar_lea.vmem %s1, %s326
        %p328 = scmp.lt.s32.totalorder %s31, 1
        %s329 = scalar_select %p328, %s31, 1
        %s330 = smul.addr %s329, 8
        %s331 = scalar_lea.vmem %s2, %s330
        %p332 = scmp.lt.s32.totalorder %s31, 1
        %s333 = scalar_select %p332, %s31, 1
        %s334 = smul.addr %s333, 2
        %s335 = smul.addr %s334, 8
        %s336 = scalar_lea.vmem %s3, %s335
        %s337 = smul.u32 2, %s33
        %p338 = scmp.lt.s32.totalorder %s32, 3
        %s339 = scalar_select %p338, %s32, 3
        %p340 = scmp.lt.s32.totalorder %s337, 1
        %s341 = scalar_select %p340, %s337, 1
        %s342 = smul.addr %s339, 16
        %s343 = sadd.s32 %s341, %s342
        %s344 = smul.addr %s343, 4
        %s345 = scalar_lea.vmem %s4, %s344
        %s346 = smul.u32 2, %s33
        %s347 = smul.u32 16, %s33
        %p348 = scmp.lt.s32.totalorder %s32, 3
        %s349 = scalar_select %p348, %s32, 3
        %p350 = scmp.lt.s32.totalorder %s347, 15
        %s351 = scalar_select %p350, %s347, 15
        %s352 = smul.addr %s351, 2
        %s353 = smul.addr %s349, 32
        %s354 = sadd.s32 %s352, %s353
        %s355 = smul.addr %s354, 4
        %s356 = scalar_lea.vmem %s5, %s355
        %s357 = smul.u32 16, %s33
        %p359 = scmp.eq.s32.totalorder %s32, 0
        %p360 = scmp.eq.s32.totalorder %s33, 0
        %p361 = pnand %p359, %p360
        %p362 = pneg %p361
        // Predicated region
        $region41: #{_lambda_.3} parent=39 // pred_check
          _
        $region42: #{_lambda_.3} parent=39 // pred_check_branch
          %364 = sbr.rel (%p361) target = $region44
        $region43: #{_lambda_.3} parent=39 // pred_region
          %365 = vst [vmem:[#allocation2] sm:$0xff] 0.0
          %366 = vst [vmem:[#allocation2 + $0x8] sm:$0xff] 0.0
        $region44: #{_lambda_.3} parent=39 // pred_fallthru
          _
        %s367 = smul.u32 %s31, 4
        %s368 = sadd.s32 %s367, %s32
        %s369 = sld [smem:[#allocation4 + %s368]]
        %p370 = scmp.gt.s32.totalorder %s369, 0
        // Predicated region
        $region45: #{_lambda_.3} parent=39 // pred_check
          %p371 = pneg %p370
        $region46: #{_lambda_.3} parent=39 // pred_check_branch
          %373 = sbr.rel (%p371) target = $region48
        $region47: #{_lambda_.3} parent=39 // pred_region
          %v374 = vld [vmem:[%s327] sm:$0xf]
          %v375 = vld [vmem:[%s345] sm:$0xff]
          %v376 = vld [vmem:[%s345 + $0x8] sm:$0xff]
          %v377 = vld [vmem:[%s345 + $0x10] sm:$0xff]
          %v378 = vld [vmem:[%s345 + $0x18] sm:$0xff]
          %v379 = vld [vmem:[%s345 + $0x20] sm:$0xff]
          %v380 = vld [vmem:[%s345 + $0x28] sm:$0xff]
          %v381 = vld [vmem:[%s345 + $0x30] sm:$0xff]
          %v382 = vld [vmem:[%s345 + $0x38] sm:$0xff]
          %v391 = vunpack.c.l.b16 %v375
          %v392 = vunpack.c.h.b16 %v375
          %v393 = vunpack.c.l.b16 %v376
          %v394 = vunpack.c.h.b16 %v376
          %v395 = vunpack.c.l.b16 %v377
          %v396 = vunpack.c.h.b16 %v377
          %v397 = vunpack.c.l.b16 %v378
          %v398 = vunpack.c.h.b16 %v378
          %v399 = vunpack.c.l.b16 %v379
          %v400 = vunpack.c.h.b16 %v379
          %v401 = vunpack.c.l.b16 %v380
          %v402 = vunpack.c.h.b16 %v380
          %v403 = vunpack.c.l.b16 %v381
          %v404 = vunpack.c.h.b16 %v381
          %v405 = vunpack.c.l.b16 %v382
          %v406 = vunpack.c.h.b16 %v382
          %v407 = vpack.c.b16 %v393, %v391
          %v408 = vpack.c.b16 %v394, %v392
          %v409 = vpack.c.b16 %v397, %v395
          %v410 = vpack.c.b16 %v398, %v396
          %v411 = vpack.c.b16 %v401, %v399
          %v412 = vpack.c.b16 %v402, %v400
          %v413 = vpack.c.b16 %v405, %v403
          %v414 = vpack.c.b16 %v406, %v404
          %vm423 = vcmask 523264
          %v425 = vsel %vm423, %v374, 0
          %427 = vmatprep.subr.bf16.mxu0 %v408
          %428 = vmatpush1.bf16.msra.mxu0 %v407
          %429 = vmatprep.subr.bf16.mxu0 %v410
          %430 = vmatpush1.bf16.msra.mxu0 %v409
          %431 = vmatprep.subr.bf16.mxu0 %v412
          %432 = vmatpush1.bf16.msra.mxu0 %v411
          %433 = vmatprep.subr.bf16.mxu0 %v414
          %434 = vmatpush1.bf16.msra.mxu0 %v413
          %435 = vmatprep.subr.bf16.mxu0 0
          %436 = vmatpush1.bf16.msra.mxu0 0
          %437 = vmatprep.subr.bf16.mxu0 0
          %438 = vmatpush1.bf16.msra.mxu0 0
          %439 = vmatprep.subr.bf16.mxu0 0
          %440 = vmatpush1.bf16.msra.mxu0 0
          %441 = vmatprep.subr.bf16.mxu0 0
          %442 = vmatpush1.bf16.msra.mxu0 0
          %443 = vmatprep.subr.bf16.mxu0 0
          %444 = vmatpush1.bf16.msra.mxu0 0
          %445 = vmatprep.subr.bf16.mxu0 0
          %446 = vmatpush1.bf16.msra.mxu0 0
          %447 = vmatprep.subr.bf16.mxu0 0
          %448 = vmatpush1.bf16.msra.mxu0 0
          %449 = vmatprep.subr.bf16.mxu0 0
          %450 = vmatpush1.bf16.msra.mxu0 0
          %451 = vmatprep.subr.bf16.mxu0 0
          %452 = vmatpush1.bf16.msra.mxu0 0
          %453 = vmatprep.subr.bf16.mxu0 0
          %454 = vmatpush1.bf16.msra.mxu0 0
          %455 = vmatprep.subr.bf16.mxu0 0
          %456 = vmatpush1.bf16.msra.mxu0 0
          %457 = vmatprep.subr.bf16.mxu0 0
          %458 = vmatpush1.bf16.msra.mxu0 0
          %459 = vmatprep.mubr.bf16.mxu0 0
          %460 = vmatmul.mubr.bf16.gmra.mrb[0].mxu0 %v425
          %v461 = vpop.f32.mrb[0].mxu0
          %v462 = vadd.f32 0.0, %v461
          %v463 = vpop.f32.mrb[0].mxu0
          %v464 = vadd.f32 0.0, %v463
          %v465 = vpop.f32.mrb[0].mxu0
          %v466 = vpop.f32.mrb[0].mxu0
          %467 = vdwg.mxu0
          %v468 = vxor.u32 %v462, 2147483648
          %v469 = vmul.f32 %v468, 1.442695
          %v470 = vpow.pop %v469
          %v471 = vadd.f32 %v470, 1.0
          %v472 = vrcp.pop %v471
          %v473 = vmul.f32 1.0, %v472
          %v474 = vmul.f32 %v462, %v473
          %v475 = vmul.f32 %v474, %v464
          %v476 = vlaneseq
          %v477 = vand.u32 %v476, 127
          %v478 = vstv %s32
          %vm479 = vcmp.eq.s32.totalorder %v477, %v478
          %v480 = vld [vmem:[%s331] sm:$0xff]
          %v481 = vsel %vm479, %v480, 0.0
          %vm482 = vcmask 31744
          %v483 = vsel %vm482, %v481, 0.0
          %484 = vadd.xlane.f32.xlu0 %v483
          %v485 = vpop.xlane.xlu0 %484
          %v486 = vld [vmem:[#allocation2] sm:$0xff]
          %v487 = vld [vmem:[#allocation2 + $0x8] sm:$0xff]
          %v488 = vmul.f32 %v475, %v485
          %v489 = vpack.c.bf16 %v488, %v488
          %v490 = vld [vmem:[%s356] sm:$0xff]
          %v491 = vld [vmem:[%s356 + $0x8] sm:$0xff]
          %v492 = vld [vmem:[%s356 + $0x10] sm:$0xff]
          %v493 = vld [vmem:[%s356 + $0x18] sm:$0xff]
          %v494 = vld [vmem:[%s356 + $0x20] sm:$0xff]
          %v495 = vld [vmem:[%s356 + $0x28] sm:$0xff]
          %v496 = vld [vmem:[%s356 + $0x30] sm:$0xff]
          %v497 = vld [vmem:[%s356 + $0x38] sm:$0xff]
          %v498 = vld [vmem:[%s356 + $0x40] sm:$0xff]
          %v499 = vld [vmem:[%s356 + $0x48] sm:$0xff]
          %v500 = vld [vmem:[%s356 + $0x50] sm:$0xff]
          %v501 = vld [vmem:[%s356 + $0x58] sm:$0xff]
          %v502 = vld [vmem:[%s356 + $0x60] sm:$0xff]
          %v503 = vld [vmem:[%s356 + $0x68] sm:$0xff]
          %v504 = vld [vmem:[%s356 + $0x70] sm:$0xff]
          %v505 = vld [vmem:[%s356 + $0x78] sm:$0xff]
          %v522 = vunpack.c.l.b16 %v490
          %v523 = vunpack.c.h.b16 %v490
          %v524 = vunpack.c.l.b16 %v491
          %v525 = vunpack.c.h.b16 %v491
          %v526 = vunpack.c.l.b16 %v492
          %v527 = vunpack.c.h.b16 %v492
          %v528 = vunpack.c.l.b16 %v493
          %v529 = vunpack.c.h.b16 %v493
          %v530 = vunpack.c.l.b16 %v494
          %v531 = vunpack.c.h.b16 %v494
          %v532 = vunpack.c.l.b16 %v495
          %v533 = vunpack.c.h.b16 %v495
          %v534 = vunpack.c.l.b16 %v496
          %v535 = vunpack.c.h.b16 %v496
          %v536 = vunpack.c.l.b16 %v497
          %v537 = vunpack.c.h.b16 %v497
          %v538 = vunpack.c.l.b16 %v498
          %v539 = vunpack.c.h.b16 %v498
          %v540 = vunpack.c.l.b16 %v499
          %v541 = vunpack.c.h.b16 %v499
          %v542 = vunpack.c.l.b16 %v500
          %v543 = vunpack.c.h.b16 %v500
          %v544 = vunpack.c.l.b16 %v501
          %v545 = vunpack.c.h.b16 %v501
          %v546 = vunpack.c.l.b16 %v502
          %v547 = vunpack.c.h.b16 %v502
          %v548 = vunpack.c.l.b16 %v503
          %v549 = vunpack.c.h.b16 %v503
          %v550 = vunpack.c.l.b16 %v504
          %v551 = vunpack.c.h.b16 %v504
          %v552 = vunpack.c.l.b16 %v505
          %v553 = vunpack.c.h.b16 %v505
          %v554 = vpack.c.b16 %v524, %v522
          %v555 = vpack.c.b16 %v525, %v523
          %v556 = vpack.c.b16 %v528, %v526
          %v557 = vpack.c.b16 %v529, %v527
          %v558 = vpack.c.b16 %v532, %v530
          %v559 = vpack.c.b16 %v533, %v531
          %v560 = vpack.c.b16 %v536, %v534
          %v561 = vpack.c.b16 %v537, %v535
          %v562 = vpack.c.b16 %v540, %v538
          %v563 = vpack.c.b16 %v541, %v539
          %v564 = vpack.c.b16 %v544, %v542
          %v565 = vpack.c.b16 %v545, %v543
          %v566 = vpack.c.b16 %v548, %v546
          %v567 = vpack.c.b16 %v549, %v547
          %v568 = vpack.c.b16 %v552, %v550
          %v569 = vpack.c.b16 %v553, %v551
          %586 = vmatprep.subr.bf16.mxu0 %v555
          %587 = vmatpush1.bf16.msra.mxu0 %v554
          %588 = vmatprep.subr.bf16.mxu0 %v557
          %589 = vmatpush1.bf16.msra.mxu0 %v556
          %590 = vmatprep.subr.bf16.mxu0 %v559
          %591 = vmatpush1.bf16.msra.mxu0 %v558
          %592 = vmatprep.subr.bf16.mxu0 %v561
          %593 = vmatpush1.bf16.msra.mxu0 %v560
          %594 = vmatprep.subr.bf16.mxu0 %v563
          %595 = vmatpush1.bf16.msra.mxu0 %v562
          %596 = vmatprep.subr.bf16.mxu0 %v565
          %597 = vmatpush1.bf16.msra.mxu0 %v564
          %598 = vmatprep.subr.bf16.mxu0 %v567
          %599 = vmatpush1.bf16.msra.mxu0 %v566
          %600 = vmatprep.subr.bf16.mxu0 %v569
          %601 = vmatpush1.bf16.msra.mxu0 %v568
          %602 = vmatprep.subr.bf16.mxu0 0
          %603 = vmatpush1.bf16.msra.mxu0 0
          %604 = vmatprep.subr.bf16.mxu0 0
          %605 = vmatpush1.bf16.msra.mxu0 0
          %606 = vmatprep.subr.bf16.mxu0 0
          %607 = vmatpush1.bf16.msra.mxu0 0
          %608 = vmatprep.subr.bf16.mxu0 0
          %609 = vmatpush1.bf16.msra.mxu0 0
          %610 = vmatprep.subr.bf16.mxu0 0
          %611 = vmatpush1.bf16.msra.mxu0 0
          %612 = vmatprep.subr.bf16.mxu0 0
          %613 = vmatpush1.bf16.msra.mxu0 0
          %614 = vmatprep.subr.bf16.mxu0 0
          %615 = vmatpush1.bf16.msra.mxu0 0
          %616 = vmatprep.subr.bf16.mxu0 0
          %617 = vmatpush1.bf16.msra.mxu0 0
          %618 = vmatprep.mubr.bf16.mxu0 0
          %619 = vmatmul.mubr.bf16.gmra.mrb[0].mxu0 %v489
          %v620 = vpop.f32.mrb[0].mxu0
          %v621 = vadd.f32 0.0, %v620
          %v622 = vpop.f32.mrb[0].mxu0
          %v623 = vadd.f32 0.0, %v622
          %v624 = vpop.f32.mrb[0].mxu0
          %v625 = vpop.f32.mrb[0].mxu0
          %626 = vdwg.mxu0
          %v627 = vadd.f32 %v486, %v621
          %v628 = vadd.f32 %v487, %v623
          %629 = vst [vmem:[#allocation2] sm:$0xff] %v627
          %630 = vst [vmem:[#allocation2 + $0x8] sm:$0xff] %v628
        $region48: #{_lambda_.3} parent=39 // pred_fallthru
          _
        %p631 = scmp.eq.s32.totalorder %s32, 3
        %p632 = pnand %p631, %p360
        %p633 = pneg %p632
        // Predicated region
        $region49: #{_lambda_.3} parent=39 // pred_check
          _
        $region50: #{_lambda_.3} parent=39 // pred_check_branch
          %635 = sbr.rel (%p632) target = $region52
        $region51: #{_lambda_.3} parent=39 // pred_region
          %v636 = vld [vmem:[%s336] sm:$0xff]
          %v637 = vld [vmem:[%s336 + $0x8] sm:$0xff]
          %v638 = vld [vmem:[#allocation2] sm:$0xff]
          %v639 = vld [vmem:[#allocation2 + $0x8] sm:$0xff]
          %v640 = vmul.f32 %v638, 0.49497473
          %v641 = vmul.f32 %v639, 0.49497473
          %v642 = vadd.f32 %v636, %v640
          %v643 = vadd.f32 %v637, %v641
          %644 = vst [vmem:[%s323] sm:$0xff] %v642
          %645 = vst [vmem:[%s323 + $0x8] sm:$0xff] %v643
        $region52: #{_lambda_.3} parent=39 // pred_fallthru
          _
        %s646 = sand.u32 %s187, 1
        %s647 = scalar_lea.sflag [#allocation6], %s646
        %s648 = sand.u32 %s187, 1
        %s649 = smul.addr %s648, 16
        %s650 = scalar_lea.vmem [#allocation5], %s649
        // Predicated region
        $region53: #{_lambda_.3} parent=39 // pred_check
          %p651 = pneg %p197
        $region54: #{_lambda_.3} parent=39 // pred_check_branch
          %653 = sbr.rel (%p651) target = $region56
        $region55: #{_lambda_.3} parent=39 // pred_region
          %s655 = ssub.s32 256, 256
          %656 = vsyncadd %s647, %s655
          %s657 = smul.addr %s31, 2
          %s658 = smul.addr %s657, 128
          %s659 = scalar_lea.hbm %s6, %s658
          %s661 = sshll.u32 %s650, 4
          %s662 = int_to_ptr.vmem [resolvable:$true] %s661
          %664 = dma.vmem_to_hbm [thread:$0]  %s662, 256, %s659, %s647
        $region56: #{_lambda_.3} parent=39 // pred_fallthru
          _
      $region40: #{_lambda_.3} parent=5 // pred_fallthru
        _
      %p665 = scmp.le.s32.totalorder 2, %s21
      // Predicated region
      $region57: #{_lambda_.3} parent=5 // pred_check
        %p666 = pneg %p665
      $region58: #{_lambda_.3} parent=5 // pred_check_branch
        %668 = sbr.rel (%p666) target = $region60
      $region59: #{_lambda_.3} parent=5 // pred_region
        %s669 = ssub.s32 %s21, 2
        // Predicated region
        $region61: #{_lambda_.3} parent=59 // pred_check
          %p670 = pneg %p203
        $region62: #{_lambda_.3} parent=59 // pred_check_branch
          %672 = sbr.rel (%p670) target = $region64
        $region63: #{_lambda_.3} parent=59 // pred_region
          %s673 = sand.u32 %s188, 1
          %s674 = scalar_lea.sflag [#allocation6], %s673
          %s675 = sand.u32 %s188, 1
          %s676 = smul.addr %s675, 16
          %s677 = scalar_lea.vmem [#allocation5], %s676
          %678 = dma.done %s674, 256
        $region64: #{_lambda_.3} parent=59 // pred_fallthru
          _
      $region60: #{_lambda_.3} parent=5 // pred_fallthru
        _
    $region6: #{_lambda_.3} parent=1 // loop_footer
      %s25 = sadd.s32 1, %s21
    $region7: #{_lambda_.3} parent=1 // loop_footer_branch
      %20 = sbr.rel target = $region3
    $region8: #{_lambda_.3} parent=1 // loop_exit
      _
    %679 = vsyncpa [#allocation6], 1
    %s680 = scalar_lea.sflag [#allocation6], 1
    %681 = vsyncpa %s680, 1

// kernel: _lambda_.2
$region0: #{_lambda_.2}
  #allocation0 [shape = 'u32[]', space=smem, size = 0x4, offset = 0x4, fixed_abs, tag = 'smem constant byte address 0x4 - core index']
  #allocation1 [shape = 'u32[144,128]{1,0:T(1,128)}', space=vmem, size = 0x12000, scoped, tag = 'internal scratch']
  %s0 = inlined_call_operand.vmem [shape: f32[2,8,256], index: 0, kind: input, shape index: {}]
  %s1 = inlined_call_operand.vmem [shape: f32[1,256], index: 1, kind: input, shape index: {}]
  %s2 = inlined_call_operand.vmem [shape: f32[1,256], index: 2, kind: input, shape index: {}]
  %s3 = inlined_call_operand.hbm [shape: bf16[256,768], index: 3, kind: input, shape index: {}]
  %s4 = inlined_call_operand.vmem [shape: bf16[256,256], index: 4, kind: input, shape index: {}]
  %s5 = inlined_call_operand.vmem [shape: bf16[256,4], index: 5, kind: input, shape index: {}]
  %s6 = inlined_call_operand.vmem [shape: bf16[256,64], index: 6, kind: input, shape index: {}]
  %s7 = inlined_call_operand.vmem [shape: f32[2,8,128], index: 7, kind: input, shape index: {}]
  %s8 = inlined_call_operand.vmem [shape: f32[2,8,128], index: 8, kind: input, shape index: {}]
  %s9 = inlined_call_operand.vmem [shape: f32[2,8,256], index: 9, kind: output, shape index: {0}]
  %s10 = inlined_call_operand.vmem [shape: bf16[2,8,64], index: 10, kind: output, shape index: {1}]
  %s11 = inlined_call_operand.vmem [shape: f32[2,8,4], index: 11, kind: output, shape index: {2}]
  %12 = xla_tuple %s9, %s10, %s11
  %s13 = sld [smem:[#allocation0]]
  $region89: #{_lambda_.2} parent=0
    _
  %s15 = ssub.s32 1, %s13
  %s16 = scalar_select 0, %s15, %s13
  $region1: #{_lambda_.2} parent=0
    #allocation2 [shape = 'u8[393216]{0}', space=vmem, size = 0x60000, scoped, tag = 'input window, operand 3, single buffered']
    #allocation3 [shape = 's32[2]{0}', space=sflag, size = 0x8, scoped, tag = 'scoped memory for _lambda_.2']
    %17 = vsyncpa [#allocation3], 0
    loop: start=0, step=1, limit=4
    $region2: #{_lambda_.2} parent=1 // loop_pre_header
      _
    $region3: #{_lambda_.2} parent=1 // loop_header
      %s19 = sphi 0, %s23
      %p20 = scmp.ge.s32.totalorder %s19, 4
      %s29 = sphi 0, %s31
      %s32 = sphi 0, %s29
      %s33 = sphi 0, %s32
      %s49 = sphi 0, %s33
      %s53 = sphi 0, %s53
      %s55 = sphi 0, %s53
      %s56 = sphi 0, %s55
      %s70 = sphi 0, %s56
      %s74 = sphi 0, %s74
      %s76 = sphi 0, %s74
      %s77 = sphi 0, %s76
      %s91 = sphi 0, %s77
      %s95 = sphi 0, %s95
      %s97 = sphi 0, %s95
      %s98 = sphi 0, %s97
      %s112 = sphi 0, %s98
      %s116 = sphi 0, %s116
      %s118 = sphi 0, %s116
      %s119 = sphi 0, %s118
      %s133 = sphi 0, %s119
      %s137 = sphi 0, %s137
      %s139 = sphi 0, %s137
      %s140 = sphi 0, %s139
      %s154 = sphi 0, %s140
      %s158 = sphi 0, %s158
      %s160 = sphi 0, %s158
      %s161 = sphi 0, %s160
      %s175 = sphi 0, %s161
      %s181 = sphi 0, %s183
      %s184 = sphi 0, %s181
      %s185 = sphi 0, %s184
      %s201 = sphi 0, %s185
      %s207 = sphi 0, %s209
      %s210 = sphi 0, %s207
      %s211 = sphi 0, %s210
      %s227 = sphi 0, %s211
      %s233 = sphi 0, %s235
      %s236 = sphi 0, %s233
      %s237 = sphi 0, %s236
      %s253 = sphi 0, %s237
      %s259 = sphi 0, %s261
      %s262 = sphi 0, %s259
      %s263 = sphi 0, %s262
      %s279 = sphi 0, %s263
      %s285 = sphi 0, %s287
      %s288 = sphi 0, %s285
      %s289 = sphi 0, %s288
      %s305 = sphi 0, %s289
    $region4: #{_lambda_.2} parent=1 // loop_header_branch
      %22 = sbr.rel (%p20) target = $region8
    $region5: #{_lambda_.2} parent=1 // loop_body
      %s24 = ssub.s32 %s19, 1
      %s25 = ssub.s32 %s19, 2
      %s26 = sadd.s32 %s19, 1
      %s27 = ssub.s32 %s19, %s26
      %p28 = scmp.eq.s32.totalorder %s27, 0
      %s30 = sadd.s32 %s29, 1
      %s31 = scalar_select %p28, %s29, %s30
      %p34 = pneg %p28
      %p35 = scmp.eq.s32.totalorder %s19, 1
      %p36 = por %p34, %p35
      %p37 = scmp.ne.s32.totalorder %s29, %s32
      %p38 = scmp.eq.s32.totalorder %s19, 0
      %p39 = por %p37, %p38
      %p40 = scmp.ne.s32.totalorder %s29, %s32
      %p41 = scmp.eq.s32.totalorder %s24, 1
      %p42 = por %p40, %p41
      %p43 = scmp.ne.s32.totalorder %s32, %s33
      %p44 = scmp.eq.s32.totalorder %s24, 0
      %p45 = por %p43, %p44
      %p46 = scmp.ne.s32.totalorder %s32, %s33
      %p47 = scmp.eq.s32.totalorder %s25, 1
      %p48 = por %p46, %p47
      %p50 = scmp.ne.s32.totalorder %s33, %s49
      %p51 = scmp.eq.s32.totalorder %s25, 0
      %p52 = por %p50, %p51
      %s54 = sadd.s32 %s53, 1
      %p57 = scmp.eq.s32.totalorder %s19, 1
      %p58 = scmp.ne.s32.totalorder %s53, %s55
      %p59 = scmp.eq.s32.totalorder %s19, 0
      %p60 = por %p58, %p59
      %p61 = scmp.ne.s32.totalorder %s53, %s55
      %p62 = scmp.eq.s32.totalorder %s24, 1
      %p63 = por %p61, %p62
      %p64 = scmp.ne.s32.totalorder %s55, %s56
      %p65 = scmp.eq.s32.totalorder %s24, 0
      %p66 = por %p64, %p65
      %p67 = scmp.ne.s32.totalorder %s55, %s56
      %p68 = scmp.eq.s32.totalorder %s25, 1
      %p69 = por %p67, %p68
      %p71 = scmp.ne.s32.totalorder %s56, %s70
      %p72 = scmp.eq.s32.totalorder %s25, 0
      %p73 = por %p71, %p72
      %s75 = sadd.s32 %s74, 1
      %p78 = scmp.eq.s32.totalorder %s19, 1
      %p79 = scmp.ne.s32.totalorder %s74, %s76
      %p80 = scmp.eq.s32.totalorder %s19, 0
      %p81 = por %p79, %p80
      %p82 = scmp.ne.s32.totalorder %s74, %s76
      %p83 = scmp.eq.s32.totalorder %s24, 1
      %p84 = por %p82, %p83
      %p85 = scmp.ne.s32.totalorder %s76, %s77
      %p86 = scmp.eq.s32.totalorder %s24, 0
      %p87 = por %p85, %p86
      %p88 = scmp.ne.s32.totalorder %s76, %s77
      %p89 = scmp.eq.s32.totalorder %s25, 1
      %p90 = por %p88, %p89
      %p92 = scmp.ne.s32.totalorder %s77, %s91
      %p93 = scmp.eq.s32.totalorder %s25, 0
      %p94 = por %p92, %p93
      %s96 = sadd.s32 %s95, 1
      %p99 = scmp.eq.s32.totalorder %s19, 1
      %p100 = scmp.ne.s32.totalorder %s95, %s97
      %p101 = scmp.eq.s32.totalorder %s19, 0
      %p102 = por %p100, %p101
      %p103 = scmp.ne.s32.totalorder %s95, %s97
      %p104 = scmp.eq.s32.totalorder %s24, 1
      %p105 = por %p103, %p104
      %p106 = scmp.ne.s32.totalorder %s97, %s98
      %p107 = scmp.eq.s32.totalorder %s24, 0
      %p108 = por %p106, %p107
      %p109 = scmp.ne.s32.totalorder %s97, %s98
      %p110 = scmp.eq.s32.totalorder %s25, 1
      %p111 = por %p109, %p110
      %p113 = scmp.ne.s32.totalorder %s98, %s112
      %p114 = scmp.eq.s32.totalorder %s25, 0
      %p115 = por %p113, %p114
      %s117 = sadd.s32 %s116, 1
      %p120 = scmp.eq.s32.totalorder %s19, 1
      %p121 = scmp.ne.s32.totalorder %s116, %s118
      %p122 = scmp.eq.s32.totalorder %s19, 0
      %p123 = por %p121, %p122
      %p124 = scmp.ne.s32.totalorder %s116, %s118
      %p125 = scmp.eq.s32.totalorder %s24, 1
      %p126 = por %p124, %p125
      %p127 = scmp.ne.s32.totalorder %s118, %s119
      %p128 = scmp.eq.s32.totalorder %s24, 0
      %p129 = por %p127, %p128
      %p130 = scmp.ne.s32.totalorder %s118, %s119
      %p131 = scmp.eq.s32.totalorder %s25, 1
      %p132 = por %p130, %p131
      %p134 = scmp.ne.s32.totalorder %s119, %s133
      %p135 = scmp.eq.s32.totalorder %s25, 0
      %p136 = por %p134, %p135
      %s138 = sadd.s32 %s137, 1
      %p141 = scmp.eq.s32.totalorder %s19, 1
      %p142 = scmp.ne.s32.totalorder %s137, %s139
      %p143 = scmp.eq.s32.totalorder %s19, 0
      %p144 = por %p142, %p143
      %p145 = scmp.ne.s32.totalorder %s137, %s139
      %p146 = scmp.eq.s32.totalorder %s24, 1
      %p147 = por %p145, %p146
      %p148 = scmp.ne.s32.totalorder %s139, %s140
      %p149 = scmp.eq.s32.totalorder %s24, 0
      %p150 = por %p148, %p149
      %p151 = scmp.ne.s32.totalorder %s139, %s140
      %p152 = scmp.eq.s32.totalorder %s25, 1
      %p153 = por %p151, %p152
      %p155 = scmp.ne.s32.totalorder %s140, %s154
      %p156 = scmp.eq.s32.totalorder %s25, 0
      %p157 = por %p155, %p156
      %s159 = sadd.s32 %s158, 1
      %p162 = scmp.eq.s32.totalorder %s19, 1
      %p163 = scmp.ne.s32.totalorder %s158, %s160
      %p164 = scmp.eq.s32.totalorder %s19, 0
      %p165 = por %p163, %p164
      %p166 = scmp.ne.s32.totalorder %s158, %s160
      %p167 = scmp.eq.s32.totalorder %s24, 1
      %p168 = por %p166, %p167
      %p169 = scmp.ne.s32.totalorder %s160, %s161
      %p170 = scmp.eq.s32.totalorder %s24, 0
      %p171 = por %p169, %p170
      %p172 = scmp.ne.s32.totalorder %s160, %s161
      %p173 = scmp.eq.s32.totalorder %s25, 1
      %p174 = por %p172, %p173
      %p176 = scmp.ne.s32.totalorder %s161, %s175
      %p177 = scmp.eq.s32.totalorder %s25, 0
      %p178 = por %p176, %p177
      %s179 = ssub.s32 %s19, %s26
      %p180 = scmp.eq.s32.totalorder %s179, 0
      %s182 = sadd.s32 %s181, 1
      %s183 = scalar_select %p180, %s181, %s182
      %p186 = pneg %p180
      %p187 = scmp.eq.s32.totalorder %s19, 1
      %p188 = por %p186, %p187
      %p189 = scmp.ne.s32.totalorder %s181, %s184
      %p190 = scmp.eq.s32.totalorder %s19, 0
      %p191 = por %p189, %p190
      %p192 = scmp.ne.s32.totalorder %s181, %s184
      %p193 = scmp.eq.s32.totalorder %s24, 1
      %p194 = por %p192, %p193
      %p195 = scmp.ne.s32.totalorder %s184, %s185
      %p196 = scmp.eq.s32.totalorder %s24, 0
      %p197 = por %p195, %p196
      %p198 = scmp.ne.s32.totalorder %s184, %s185
      %p199 = scmp.eq.s32.totalorder %s25, 1
      %p200 = por %p198, %p199
      %p202 = scmp.ne.s32.totalorder %s185, %s201
      %p203 = scmp.eq.s32.totalorder %s25, 0
      %p204 = por %p202, %p203
      %s205 = ssub.s32 %s19, %s26
      %p206 = scmp.eq.s32.totalorder %s205, 0
      %s208 = sadd.s32 %s207, 1
      %s209 = scalar_select %p206, %s207, %s208
      %p212 = pneg %p206
      %p213 = scmp.eq.s32.totalorder %s19, 1
      %p214 = por %p212, %p213
      %p215 = scmp.ne.s32.totalorder %s207, %s210
      %p216 = scmp.eq.s32.totalorder %s19, 0
      %p217 = por %p215, %p216
      %p218 = scmp.ne.s32.totalorder %s207, %s210
      %p219 = scmp.eq.s32.totalorder %s24, 1
      %p220 = por %p218, %p219
      %p221 = scmp.ne.s32.totalorder %s210, %s211
      %p222 = scmp.eq.s32.totalorder %s24, 0
      %p223 = por %p221, %p222
      %p224 = scmp.ne.s32.totalorder %s210, %s211
      %p225 = scmp.eq.s32.totalorder %s25, 1
      %p226 = por %p224, %p225
      %p228 = scmp.ne.s32.totalorder %s211, %s227
      %p229 = scmp.eq.s32.totalorder %s25, 0
      %p230 = por %p228, %p229
      %s231 = ssub.s32 %s19, %s26
      %p232 = scmp.eq.s32.totalorder %s231, 0
      %s234 = sadd.s32 %s233, 1
      %s235 = scalar_select %p232, %s233, %s234
      %p238 = pneg %p232
      %p239 = scmp.eq.s32.totalorder %s19, 1
      %p240 = por %p238, %p239
      %p241 = scmp.ne.s32.totalorder %s233, %s236
      %p242 = scmp.eq.s32.totalorder %s19, 0
      %p243 = por %p241, %p242
      %p244 = scmp.ne.s32.totalorder %s233, %s236
      %p245 = scmp.eq.s32.totalorder %s24, 1
      %p246 = por %p244, %p245
      %p247 = scmp.ne.s32.totalorder %s236, %s237
      %p248 = scmp.eq.s32.totalorder %s24, 0
      %p249 = por %p247, %p248
      %p250 = scmp.ne.s32.totalorder %s236, %s237
      %p251 = scmp.eq.s32.totalorder %s25, 1
      %p252 = por %p250, %p251
      %p254 = scmp.ne.s32.totalorder %s237, %s253
      %p255 = scmp.eq.s32.totalorder %s25, 0
      %p256 = por %p254, %p255
      %s257 = ssub.s32 %s19, %s26
      %p258 = scmp.eq.s32.totalorder %s257, 0
      %s260 = sadd.s32 %s259, 1
      %s261 = scalar_select %p258, %s259, %s260
      %p264 = pneg %p258
      %p265 = scmp.eq.s32.totalorder %s19, 1
      %p266 = por %p264, %p265
      %p267 = scmp.ne.s32.totalorder %s259, %s262
      %p268 = scmp.eq.s32.totalorder %s19, 0
      %p269 = por %p267, %p268
      %p270 = scmp.ne.s32.totalorder %s259, %s262
      %p271 = scmp.eq.s32.totalorder %s24, 1
      %p272 = por %p270, %p271
      %p273 = scmp.ne.s32.totalorder %s262, %s263
      %p274 = scmp.eq.s32.totalorder %s24, 0
      %p275 = por %p273, %p274
      %p276 = scmp.ne.s32.totalorder %s262, %s263
      %p277 = scmp.eq.s32.totalorder %s25, 1
      %p278 = por %p276, %p277
      %p280 = scmp.ne.s32.totalorder %s263, %s279
      %p281 = scmp.eq.s32.totalorder %s25, 0
      %p282 = por %p280, %p281
      %s283 = ssub.s32 %s19, %s26
      %p284 = scmp.eq.s32.totalorder %s283, 0
      %s286 = sadd.s32 %s285, 1
      %s287 = scalar_select %p284, %s285, %s286
      %p290 = pneg %p284
      %p291 = scmp.eq.s32.totalorder %s19, 1
      %p292 = por %p290, %p291
      %p293 = scmp.ne.s32.totalorder %s285, %s288
      %p294 = scmp.eq.s32.totalorder %s19, 0
      %p295 = por %p293, %p294
      %p296 = scmp.ne.s32.totalorder %s285, %s288
      %p297 = scmp.eq.s32.totalorder %s24, 1
      %p298 = por %p296, %p297
      %p299 = scmp.ne.s32.totalorder %s288, %s289
      %p300 = scmp.eq.s32.totalorder %s24, 0
      %p301 = por %p299, %p300
      %p302 = scmp.ne.s32.totalorder %s288, %s289
      %p303 = scmp.eq.s32.totalorder %s25, 1
      %p304 = por %p302, %p303
      %p306 = scmp.ne.s32.totalorder %s289, %s305
      %p307 = scmp.eq.s32.totalorder %s25, 0
      %p308 = por %p306, %p307
      %p309 = scmp.le.s32.totalorder 1, %s19
      %p310 = scmp.lt.s32.totalorder %s19, 3
      %p311 = pnand %p309, %p310
      %p312 = pneg %p311
      // Predicated region
      $region9: #{_lambda_.2} parent=5 // pred_check
        _
      $region10: #{_lambda_.2} parent=5 // pred_check_branch
        %314 = sbr.rel (%p311) target = $region12
      $region11: #{_lambda_.2} parent=5 // pred_region
        %s315 = ssub.s32 %s19, 1
        // Predicated region
        $region13: #{_lambda_.2} parent=11 // pred_check
          %p316 = pneg %p66
        $region14: #{_lambda_.2} parent=11 // pred_check_branch
          %318 = sbr.rel (%p316) target = $region16
        $region15: #{_lambda_.2} parent=11 // pred_region
          _
        $region16: #{_lambda_.2} parent=11 // pred_fallthru
          _
        // Predicated region
        $region17: #{_lambda_.2} parent=11 // pred_check
          %p319 = pneg %p87
        $region18: #{_lambda_.2} parent=11 // pred_check_branch
          %321 = sbr.rel (%p319) target = $region20
        $region19: #{_lambda_.2} parent=11 // pred_region
          _
        $region20: #{_lambda_.2} parent=11 // pred_fallthru
          _
        // Predicated region
        $region21: #{_lambda_.2} parent=11 // pred_check
          %p322 = pneg %p108
        $region22: #{_lambda_.2} parent=11 // pred_check_branch
          %324 = sbr.rel (%p322) target = $region24
        $region23: #{_lambda_.2} parent=11 // pred_region
          %s326 = ssub.s32 12288, 12288
          %327 = vsyncadd [#allocation3], %s326
          %s328 = sshll.u32 [#allocation2], 4
          %s329 = int_to_ptr.vmem [resolvable:$true] %s328
          %334 = dma.hbm_to_vmem [thread:$0]  %s3, 12288, %s329, [#allocation3], 384, 384, 24
        $region24: #{_lambda_.2} parent=11 // pred_fallthru
          _
        // Predicated region
        $region25: #{_lambda_.2} parent=11 // pred_check
          %p335 = pneg %p129
        $region26: #{_lambda_.2} parent=11 // pred_check_branch
          %337 = sbr.rel (%p335) target = $region28
        $region27: #{_lambda_.2} parent=11 // pred_region
          _
        $region28: #{_lambda_.2} parent=11 // pred_fallthru
          _
        // Predicated region
        $region29: #{_lambda_.2} parent=11 // pred_check
          %p338 = pneg %p150
        $region30: #{_lambda_.2} parent=11 // pred_check_branch
          %340 = sbr.rel (%p338) target = $region32
        $region31: #{_lambda_.2} parent=11 // pred_region
          _
        $region32: #{_lambda_.2} parent=11 // pred_fallthru
          _
        // Predicated region
        $region33: #{_lambda_.2} parent=11 // pred_check
          %p341 = pneg %p171
        $region34: #{_lambda_.2} parent=11 // pred_check_branch
          %343 = sbr.rel (%p341) target = $region36
        $region35: #{_lambda_.2} parent=11 // pred_region
          _
        $region36: #{_lambda_.2} parent=11 // pred_fallthru
          _
      $region12: #{_lambda_.2} parent=5 // pred_fallthru
        _
      %p344 = scmp.lt.s32.totalorder %s19, 2
      // Predicated region
      $region37: #{_lambda_.2} parent=5 // pred_check
        %p345 = pneg %p344
      $region38: #{_lambda_.2} parent=5 // pred_check_branch
        %347 = sbr.rel (%p345) target = $region40
      $region39: #{_lambda_.2} parent=5 // pred_region
        // Predicated region
        $region41: #{_lambda_.2} parent=39 // pred_check
          %p348 = pneg %p39
        $region42: #{_lambda_.2} parent=39 // pred_check_branch
          %350 = sbr.rel (%p348) target = $region44
        $region43: #{_lambda_.2} parent=39 // pred_region
          %p351 = scmp.lt.s32.totalorder %s19, 1
          %s352 = scalar_select %p351, %s19, 1
          %s353 = smul.addr %s352, 2
          %s354 = smul.addr %s353, 8
          %s355 = scalar_lea.vmem %s0, %s354
        $region44: #{_lambda_.2} parent=39 // pred_fallthru
          _
        // Predicated region
        $region45: #{_lambda_.2} parent=39 // pred_check
          %p356 = pneg %p191
        $region46: #{_lambda_.2} parent=39 // pred_check_branch
          %358 = sbr.rel (%p356) target = $region48
        $region47: #{_lambda_.2} parent=39 // pred_region
          %p359 = scmp.lt.s32.totalorder %s19, 1
          %s360 = scalar_select %p359, %s19, 1
          %s361 = smul.addr %s360, 8
          %s362 = scalar_lea.vmem %s7, %s361
        $region48: #{_lambda_.2} parent=39 // pred_fallthru
          _
        // Predicated region
        $region49: #{_lambda_.2} parent=39 // pred_check
          %p363 = pneg %p217
        $region50: #{_lambda_.2} parent=39 // pred_check_branch
          %365 = sbr.rel (%p363) target = $region52
        $region51: #{_lambda_.2} parent=39 // pred_region
          %p366 = scmp.lt.s32.totalorder %s19, 1
          %s367 = scalar_select %p366, %s19, 1
          %s368 = smul.addr %s367, 8
          %s369 = scalar_lea.vmem %s8, %s368
        $region52: #{_lambda_.2} parent=39 // pred_fallthru
          _
      $region40: #{_lambda_.2} parent=5 // pred_fallthru
        _
      %p370 = scmp.le.s32.totalorder 1, %s19
      %p371 = scmp.lt.s32.totalorder %s19, 3
      %p372 = pnand %p370, %p371
      %p373 = pneg %p372
      // Predicated region
      $region53: #{_lambda_.2} parent=5 // pred_check
        _
      $region54: #{_lambda_.2} parent=5 // pred_check_branch
        %375 = sbr.rel (%p372) target = $region56
      $region55: #{_lambda_.2} parent=5 // pred_region
        %s376 = ssub.s32 %s19, 1
        // Predicated region
        $region57: #{_lambda_.2} parent=55 // pred_check
          %p377 = pneg %p108
        $region58: #{_lambda_.2} parent=55 // pred_check_branch
          %379 = sbr.rel (%p377) target = $region60
        $region59: #{_lambda_.2} parent=55 // pred_region
          %380 = dma.done [#allocation3], 12288
        $region60: #{_lambda_.2} parent=55 // pred_fallthru
          _
        %p381 = scmp.lt.s32.totalorder %s24, 1
        %s382 = scalar_select %p381, %s24, 1
        %s383 = smul.addr %s382, 2
        %s384 = smul.addr %s383, 8
        %s385 = scalar_lea.vmem %s0, %s384
        %p386 = pneg %p45
        %p387 = pneg %p42
        %p388 = pneg %p66
        %p389 = pneg %p63
        %p390 = pneg %p87
        %p391 = pneg %p84
        %p392 = pneg %p108
        %p393 = pneg %p105
        %p394 = pneg %p129
        %p395 = pneg %p126
        %p396 = pneg %p150
        %p397 = pneg %p147
        %p398 = pneg %p171
        %p399 = pneg %p168
        %p400 = scmp.lt.s32.totalorder %s24, 1
        %s401 = scalar_select %p400, %s24, 1
        %s402 = smul.addr %s401, 8
        %s403 = scalar_lea.vmem %s7, %s402
        %p404 = pneg %p197
        %p405 = pneg %p194
        %p406 = scmp.lt.s32.totalorder %s24, 1
        %s407 = scalar_select %p406, %s24, 1
        %s408 = smul.addr %s407, 8
        %s409 = scalar_lea.vmem %s8, %s408
        %p410 = pneg %p223
        %p411 = pneg %p220
        %p412 = pneg %p249
        %p413 = pneg %p246
        %p414 = scmp.lt.s32.totalorder %s24, 1
        %s415 = scalar_select %p414, %s24, 1
        %s416 = smul.addr %s415, 2
        %s417 = smul.addr %s416, 8
        %s418 = scalar_lea.vmem %s9, %s417
        %p419 = pneg %p275
        %p420 = pneg %p272
        %p421 = scmp.lt.s32.totalorder %s24, 1
        %s422 = scalar_select %p421, %s24, 1
        %s423 = smul.addr %s422, 4
        %s424 = scalar_lea.vmem %s10, %s423
        %p425 = pneg %p301
        %p426 = pneg %p298
        %p427 = scmp.lt.s32.totalorder %s24, 1
        %s428 = scalar_select %p427, %s24, 1
        %s429 = smul.addr %s428, 8
        %s430 = scalar_lea.vmem %s11, %s429
        %p431 = scmp.lt.s32.totalorder %s24, 1
        %s432 = scalar_select %p431, %s24, 1
        %s433 = smul.addr %s432, 2
        %s434 = smul.addr %s433, 8
        %s435 = scalar_lea.vmem %s0, %s434
        %p436 = scmp.lt.s32.totalorder %s24, 1
        %s437 = scalar_select %p436, %s24, 1
        %s438 = smul.addr %s437, 8
        %s439 = scalar_lea.vmem %s7, %s438
        %p440 = scmp.lt.s32.totalorder %s24, 1
        %s441 = scalar_select %p440, %s24, 1
        %s442 = smul.addr %s441, 8
        %s443 = scalar_lea.vmem %s8, %s442
        %p444 = scmp.lt.s32.totalorder %s24, 1
        %s445 = scalar_select %p444, %s24, 1
        %s446 = smul.addr %s445, 2
        %s447 = smul.addr %s446, 8
        %s448 = scalar_lea.vmem %s9, %s447
        %p449 = scmp.lt.s32.totalorder %s24, 1
        %s450 = scalar_select %p449, %s24, 1
        %s451 = smul.addr %s450, 4
        %s452 = scalar_lea.vmem %s10, %s451
        %p453 = scmp.lt.s32.totalorder %s24, 1
        %s454 = scalar_select %p453, %s24, 1
        %s455 = smul.addr %s454, 8
        %s456 = scalar_lea.vmem %s11, %s455
        %v458 = vld [vmem:[%s435] sm:$0xff]
        %v459 = vld [vmem:[%s435 + $0x8] sm:$0xff]
        %v460 = vmul.f32 %v458, %v458
        %v461 = vmul.f32 %v459, %v459
        %v462 = vadd.f32 %v460, %v461
        %463 = vadd.xlane.f32.xlu0 %v462
        %v464 = vpop.xlane.xlu0 %463
        %v465 = vrcp.pop 256.0
        %v466 = vmul.f32 %v464, %v465
        %v467 = vadd.f32 %v466, 1e-05
        %v468 = vrsqrt.pop %v467
        %v469 = vmul.f32 %v458, %v468
        %v470 = vmul.f32 %v459, %v468
        %v471 = vld [vmem:[%s1] sm:$0x3]
        %v473 = vlaneseq
        %v474 = vshrl.u32 %v473, 7
        %v475 = vsub.s32 0, %v474
        %v476 = vrot.slane %v471, %v475
        %v477 = vlaneseq
        %v478 = vshrl.u32 %v477, 7
        %v479 = vsub.s32 1, %v478
        %v480 = vrot.slane %v471, %v479
        %v483 = vmul.f32 %v469, %v476
        %v484 = vmul.f32 %v470, %v480
        %v485 = vpack.c.bf16 %v483, %v483
        %v486 = vpack.c.bf16 %v484, %v484
        %v487 = vld [vmem:[#allocation2] sm:$0xff]
        %v488 = vld [vmem:[#allocation2 + $0x8] sm:$0xff]
        %v489 = vld [vmem:[#allocation2 + $0x10] sm:$0xff]
        %v490 = vld [vmem:[#allocation2 + $0x18] sm:$0xff]
        %v491 = vld [vmem:[#allocation2 + $0x20] sm:$0xff]
        %v492 = vld [vmem:[#allocation2 + $0x28] sm:$0xff]
        %v493 = vld [vmem:[#allocation2 + $0x30] sm:$0xff]
        %v494 = vld [vmem:[#allocation2 + $0x38] sm:$0xff]
        %v495 = vld [vmem:[#allocation2 + $0x40] sm:$0xff]
        %v496 = vld [vmem:[#allocation2 + $0x48] sm:$0xff]
        %v497 = vld [vmem:[#allocation2 + $0x50] sm:$0xff]
        %v498 = vld [vmem:[#allocation2 + $0x58] sm:$0xff]
        %v499 = vld [vmem:[#allocation2 + $0x60] sm:$0xff]
        %v500 = vld [vmem:[#allocation2 + $0x68] sm:$0xff]
        %v501 = vld [vmem:[#allocation2 + $0x70] sm:$0xff]
        %v502 = vld [vmem:[#allocation2 + $0x78] sm:$0xff]
        %v503 = vld [vmem:[#allocation2 + $0x80] sm:$0xff]
        %v504 = vld [vmem:[#allocation2 + $0x88] sm:$0xff]
        %v505 = vld [vmem:[#allocation2 + $0x90] sm:$0xff]
        %v506 = vld [vmem:[#allocation2 + $0x98] sm:$0xff]
        %v507 = vld [vmem:[#allocation2 + $0xa0] sm:$0xff]
        %v508 = vld [vmem:[#allocation2 + $0xa8] sm:$0xff]
        %v509 = vld [vmem:[#allocation2 + $0xb0] sm:$0xff]
        %v510 = vld [vmem:[#allocation2 + $0xb8] sm:$0xff]
        %v511 = vld [vmem:[#allocation2 + $0xc0] sm:$0xff]
        %v512 = vld [vmem:[#allocation2 + $0xc8] sm:$0xff]
        %v513 = vld [vmem:[#allocation2 + $0xd0] sm:$0xff]
        %v514 = vld [vmem:[#allocation2 + $0xd8] sm:$0xff]
        %v515 = vld [vmem:[#allocation2 + $0xe0] sm:$0xff]
        %v516 = vld [vmem:[#allocation2 + $0xe8] sm:$0xff]
        %v517 = vld [vmem:[#allocation2 + $0xf0] sm:$0xff]
        %v518 = vld [vmem:[#allocation2 + $0xf8] sm:$0xff]
        %v519 = vld [vmem:[#allocation2 + $0x100] sm:$0xff]
        %v520 = vld [vmem:[#allocation2 + $0x108] sm:$0xff]
        %v521 = vld [vmem:[#allocation2 + $0x110] sm:$0xff]
        %v522 = vld [vmem:[#allocation2 + $0x118] sm:$0xff]
        %v523 = vld [vmem:[#allocation2 + $0x120] sm:$0xff]
        %v524 = vld [vmem:[#allocation2 + $0x128] sm:$0xff]
        %v525 = vld [vmem:[#allocation2 + $0x130] sm:$0xff]
        %v526 = vld [vmem:[#allocation2 + $0x138] sm:$0xff]
        %v527 = vld [vmem:[#allocation2 + $0x140] sm:$0xff]
        %v528 = vld [vmem:[#allocation2 + $0x148] sm:$0xff]
        %v529 = vld [vmem:[#allocation2 + $0x150] sm:$0xff]
        %v530 = vld [vmem:[#allocation2 + $0x158] sm:$0xff]
        %v531 = vld [vmem:[#allocation2 + $0x160] sm:$0xff]
        %v532 = vld [vmem:[#allocation2 + $0x168] sm:$0xff]
        %v533 = vld [vmem:[#allocation2 + $0x170] sm:$0xff]
        %v534 = vld [vmem:[#allocation2 + $0x178] sm:$0xff]
        %v535 = vld [vmem:[#allocation2 + $0x180] sm:$0xff]
        %v536 = vld [vmem:[#allocation2 + $0x188] sm:$0xff]
        %v537 = vld [vmem:[#allocation2 + $0x190] sm:$0xff]
        %v538 = vld [vmem:[#allocation2 + $0x198] sm:$0xff]
        %v539 = vld [vmem:[#allocation2 + $0x1a0] sm:$0xff]
        %v540 = vld [vmem:[#allocation2 + $0x1a8] sm:$0xff]
        %v541 = vld [vmem:[#allocation2 + $0x1b0] sm:$0xff]
        %v542 = vld [vmem:[#allocation2 + $0x1b8] sm:$0xff]
        %v543 = vld [vmem:[#allocation2 + $0x1c0] sm:$0xff]
        %v544 = vld [vmem:[#allocation2 + $0x1c8] sm:$0xff]
        %v545 = vld [vmem:[#allocation2 + $0x1d0] sm:$0xff]
        %v546 = vld [vmem:[#allocation2 + $0x1d8] sm:$0xff]
        %v547 = vld [vmem:[#allocation2 + $0x1e0] sm:$0xff]
        %v548 = vld [vmem:[#allocation2 + $0x1e8] sm:$0xff]
        %v549 = vld [vmem:[#allocation2 + $0x1f0] sm:$0xff]
        %v550 = vld [vmem:[#allocation2 + $0x1f8] sm:$0xff]
        %v551 = vld [vmem:[#allocation2 + $0x200] sm:$0xff]
        %v552 = vld [vmem:[#allocation2 + $0x208] sm:$0xff]
        %v553 = vld [vmem:[#allocation2 + $0x210] sm:$0xff]
        %v554 = vld [vmem:[#allocation2 + $0x218] sm:$0xff]
        %v555 = vld [vmem:[#allocation2 + $0x220] sm:$0xff]
        %v556 = vld [vmem:[#allocation2 + $0x228] sm:$0xff]
        %v557 = vld [vmem:[#allocation2 + $0x230] sm:$0xff]
        %v558 = vld [vmem:[#allocation2 + $0x238] sm:$0xff]
        %v559 = vld [vmem:[#allocation2 + $0x240] sm:$0xff]
        %v560 = vld [vmem:[#allocation2 + $0x248] sm:$0xff]
        %v561 = vld [vmem:[#allocation2 + $0x250] sm:$0xff]
        %v562 = vld [vmem:[#allocation2 + $0x258] sm:$0xff]
        %v563 = vld [vmem:[#allocation2 + $0x260] sm:$0xff]
        %v564 = vld [vmem:[#allocation2 + $0x268] sm:$0xff]
        %v565 = vld [vmem:[#allocation2 + $0x270] sm:$0xff]
        %v566 = vld [vmem:[#allocation2 + $0x278] sm:$0xff]
        %v567 = vld [vmem:[#allocation2 + $0x280] sm:$0xff]
        %v568 = vld [vmem:[#allocation2 + $0x288] sm:$0xff]
        %v569 = vld [vmem:[#allocation2 + $0x290] sm:$0xff]
        %v570 = vld [vmem:[#allocation2 + $0x298] sm:$0xff]
        %v571 = vld [vmem:[#allocation2 + $0x2a0] sm:$0xff]
        %v572 = vld [vmem:[#allocation2 + $0x2a8] sm:$0xff]
        %v573 = vld [vmem:[#allocation2 + $0x2b0] sm:$0xff]
        %v574 = vld [vmem:[#allocation2 + $0x2b8] sm:$0xff]
        %v575 = vld [vmem:[#allocation2 + $0x2c0] sm:$0xff]
        %v576 = vld [vmem:[#allocation2 + $0x2c8] sm:$0xff]
        %v577 = vld [vmem:[#allocation2 + $0x2d0] sm:$0xff]
        %v578 = vld [vmem:[#allocation2 + $0x2d8] sm:$0xff]
        %v579 = vld [vmem:[#allocation2 + $0x2e0] sm:$0xff]
        %v580 = vld [vmem:[#allocation2 + $0x2e8] sm:$0xff]
        %v581 = vld [vmem:[#allocation2 + $0x2f0] sm:$0xff]
        %v582 = vld [vmem:[#allocation2 + $0x2f8] sm:$0xff]
        %v679 = vunpack.c.l.b16 %v487
        %v680 = vunpack.c.h.b16 %v487
        %v681 = vunpack.c.l.b16 %v488
        %v682 = vunpack.c.h.b16 %v488
        %v683 = vunpack.c.l.b16 %v489
        %v684 = vunpack.c.h.b16 %v489
        %v685 = vunpack.c.l.b16 %v490
        %v686 = vunpack.c.h.b16 %v490
        %v687 = vunpack.c.l.b16 %v491
        %v688 = vunpack.c.h.b16 %v491
        %v689 = vunpack.c.l.b16 %v492
        %v690 = vunpack.c.h.b16 %v492
        %v691 = vunpack.c.l.b16 %v493
        %v692 = vunpack.c.h.b16 %v493
        %v693 = vunpack.c.l.b16 %v494
        %v694 = vunpack.c.h.b16 %v494
        %v695 = vunpack.c.l.b16 %v495
        %v696 = vunpack.c.h.b16 %v495
        %v697 = vunpack.c.l.b16 %v496
        %v698 = vunpack.c.h.b16 %v496
        %v699 = vunpack.c.l.b16 %v497
        %v700 = vunpack.c.h.b16 %v497
        %v701 = vunpack.c.l.b16 %v498
        %v702 = vunpack.c.h.b16 %v498
        %v703 = vunpack.c.l.b16 %v499
        %v704 = vunpack.c.h.b16 %v499
        %v705 = vunpack.c.l.b16 %v500
        %v706 = vunpack.c.h.b16 %v500
        %v707 = vunpack.c.l.b16 %v501
        %v708 = vunpack.c.h.b16 %v501
        %v709 = vunpack.c.l.b16 %v502
        %v710 = vunpack.c.h.b16 %v502
        %v711 = vunpack.c.l.b16 %v503
        %v712 = vunpack.c.h.b16 %v503
        %v713 = vunpack.c.l.b16 %v504
        %v714 = vunpack.c.h.b16 %v504
        %v715 = vunpack.c.l.b16 %v505
        %v716 = vunpack.c.h.b16 %v505
        %v717 = vunpack.c.l.b16 %v506
        %v718 = vunpack.c.h.b16 %v506
        %v719 = vunpack.c.l.b16 %v507
        %v720 = vunpack.c.h.b16 %v507
        %v721 = vunpack.c.l.b16 %v508
        %v722 = vunpack.c.h.b16 %v508
        %v723 = vunpack.c.l.b16 %v509
        %v724 = vunpack.c.h.b16 %v509
        %v725 = vunpack.c.l.b16 %v510
        %v726 = vunpack.c.h.b16 %v510
        %v727 = vunpack.c.l.b16 %v511
        %v728 = vunpack.c.h.b16 %v511
        %v729 = vunpack.c.l.b16 %v512
        %v730 = vunpack.c.h.b16 %v512
        %v731 = vunpack.c.l.b16 %v513
        %v732 = vunpack.c.h.b16 %v513
        %v733 = vunpack.c.l.b16 %v514
        %v734 = vunpack.c.h.b16 %v514
        %v735 = vunpack.c.l.b16 %v515
        %v736 = vunpack.c.h.b16 %v515
        %v737 = vunpack.c.l.b16 %v516
        %v738 = vunpack.c.h.b16 %v516
        %v739 = vunpack.c.l.b16 %v517
        %v740 = vunpack.c.h.b16 %v517
        %v741 = vunpack.c.l.b16 %v518
        %v742 = vunpack.c.h.b16 %v518
        %v743 = vunpack.c.l.b16 %v519
        %v744 = vunpack.c.h.b16 %v519
        %v745 = vunpack.c.l.b16 %v520
        %v746 = vunpack.c.h.b16 %v520
        %v747 = vunpack.c.l.b16 %v521
        %v748 = vunpack.c.h.b16 %v521
        %v749 = vunpack.c.l.b16 %v522
        %v750 = vunpack.c.h.b16 %v522
        %v751 = vunpack.c.l.b16 %v523
        %v752 = vunpack.c.h.b16 %v523
        %v753 = vunpack.c.l.b16 %v524
        %v754 = vunpack.c.h.b16 %v524
        %v755 = vunpack.c.l.b16 %v525
        %v756 = vunpack.c.h.b16 %v525
        %v757 = vunpack.c.l.b16 %v526
        %v758 = vunpack.c.h.b16 %v526
        %v759 = vunpack.c.l.b16 %v527
        %v760 = vunpack.c.h.b16 %v527
        %v761 = vunpack.c.l.b16 %v528
        %v762 = vunpack.c.h.b16 %v528
        %v763 = vunpack.c.l.b16 %v529
        %v764 = vunpack.c.h.b16 %v529
        %v765 = vunpack.c.l.b16 %v530
        %v766 = vunpack.c.h.b16 %v530
        %v767 = vunpack.c.l.b16 %v531
        %v768 = vunpack.c.h.b16 %v531
        %v769 = vunpack.c.l.b16 %v532
        %v770 = vunpack.c.h.b16 %v532
        %v771 = vunpack.c.l.b16 %v533
        %v772 = vunpack.c.h.b16 %v533
        %v773 = vunpack.c.l.b16 %v534
        %v774 = vunpack.c.h.b16 %v534
        %v775 = vunpack.c.l.b16 %v535
        %v776 = vunpack.c.h.b16 %v535
        %v777 = vunpack.c.l.b16 %v536
        %v778 = vunpack.c.h.b16 %v536
        %v779 = vunpack.c.l.b16 %v537
        %v780 = vunpack.c.h.b16 %v537
        %v781 = vunpack.c.l.b16 %v538
        %v782 = vunpack.c.h.b16 %v538
        %v783 = vunpack.c.l.b16 %v539
        %v784 = vunpack.c.h.b16 %v539
        %v785 = vunpack.c.l.b16 %v540
        %v786 = vunpack.c.h.b16 %v540
        %v787 = vunpack.c.l.b16 %v541
        %v788 = vunpack.c.h.b16 %v541
        %v789 = vunpack.c.l.b16 %v542
        %v790 = vunpack.c.h.b16 %v542
        %v791 = vunpack.c.l.b16 %v543
        %v792 = vunpack.c.h.b16 %v543
        %v793 = vunpack.c.l.b16 %v544
        %v794 = vunpack.c.h.b16 %v544
        %v795 = vunpack.c.l.b16 %v545
        %v796 = vunpack.c.h.b16 %v545
        %v797 = vunpack.c.l.b16 %v546
        %v798 = vunpack.c.h.b16 %v546
        %v799 = vunpack.c.l.b16 %v547
        %v800 = vunpack.c.h.b16 %v547
        %v801 = vunpack.c.l.b16 %v548
        %v802 = vunpack.c.h.b16 %v548
        %v803 = vunpack.c.l.b16 %v549
        %v804 = vunpack.c.h.b16 %v549
        %v805 = vunpack.c.l.b16 %v550
        %v806 = vunpack.c.h.b16 %v550
        %v807 = vunpack.c.l.b16 %v551
        %v808 = vunpack.c.h.b16 %v551
        %v809 = vunpack.c.l.b16 %v552
        %v810 = vunpack.c.h.b16 %v552
        %v811 = vunpack.c.l.b16 %v553
        %v812 = vunpack.c.h.b16 %v553
        %v813 = vunpack.c.l.b16 %v554
        %v814 = vunpack.c.h.b16 %v554
        %v815 = vunpack.c.l.b16 %v555
        %v816 = vunpack.c.h.b16 %v555
        %v817 = vunpack.c.l.b16 %v556
        %v818 = vunpack.c.h.b16 %v556
        %v819 = vunpack.c.l.b16 %v557
        %v820 = vunpack.c.h.b16 %v557
        %v821 = vunpack.c.l.b16 %v558
        %v822 = vunpack.c.h.b16 %v558
        %v823 = vunpack.c.l.b16 %v559
        %v824 = vunpack.c.h.b16 %v559
        %v825 = vunpack.c.l.b16 %v560
        %v826 = vunpack.c.h.b16 %v560
        %v827 = vunpack.c.l.b16 %v561
        %v828 = vunpack.c.h.b16 %v561
        %v829 = vunpack.c.l.b16 %v562
        %v830 = vunpack.c.h.b16 %v562
        %v831 = vunpack.c.l.b16 %v563
        %v832 = vunpack.c.h.b16 %v563
        %v833 = vunpack.c.l.b16 %v564
        %v834 = vunpack.c.h.b16 %v564
        %v835 = vunpack.c.l.b16 %v565
        %v836 = vunpack.c.h.b16 %v565
        %v837 = vunpack.c.l.b16 %v566
        %v838 = vunpack.c.h.b16 %v566
        %v839 = vunpack.c.l.b16 %v567
        %v840 = vunpack.c.h.b16 %v567
        %v841 = vunpack.c.l.b16 %v568
        %v842 = vunpack.c.h.b16 %v568
        %v843 = vunpack.c.l.b16 %v569
        %v844 = vunpack.c.h.b16 %v569
        %v845 = vunpack.c.l.b16 %v570
        %v846 = vunpack.c.h.b16 %v570
        %v847 = vunpack.c.l.b16 %v571
        %v848 = vunpack.c.h.b16 %v571
        %v849 = vunpack.c.l.b16 %v572
        %v850 = vunpack.c.h.b16 %v572
        %v851 = vunpack.c.l.b16 %v573
        %v852 = vunpack.c.h.b16 %v573
        %v853 = vunpack.c.l.b16 %v574
        %v854 = vunpack.c.h.b16 %v574
        %v855 = vunpack.c.l.b16 %v575
        %v856 = vunpack.c.h.b16 %v575
        %v857 = vunpack.c.l.b16 %v576
        %v858 = vunpack.c.h.b16 %v576
        %v859 = vunpack.c.l.b16 %v577
        %v860 = vunpack.c.h.b16 %v577
        %v861 = vunpack.c.l.b16 %v578
        %v862 = vunpack.c.h.b16 %v578
        %v863 = vunpack.c.l.b16 %v579
        %v864 = vunpack.c.h.b16 %v579
        %v865 = vunpack.c.l.b16 %v580
        %v866 = vunpack.c.h.b16 %v580
        %v867 = vunpack.c.l.b16 %v581
        %v868 = vunpack.c.h.b16 %v581
        %v869 = vunpack.c.l.b16 %v582
        %v870 = vunpack.c.h.b16 %v582
        %v871 = vpack.c.b16 %v685, %v679
        %v872 = vpack.c.b16 %v686, %v680
        %v873 = vpack.c.b16 %v687, %v681
        %v874 = vpack.c.b16 %v688, %v682
        %v875 = vpack.c.b16 %v689, %v683
        %v876 = vpack.c.b16 %v690, %v684
        %v877 = vpack.c.b16 %v697, %v691
        %v878 = vpack.c.b16 %v698, %v692
        %v879 = vpack.c.b16 %v699, %v693
        %v880 = vpack.c.b16 %v700, %v694
        %v881 = vpack.c.b16 %v701, %v695
        %v882 = vpack.c.b16 %v702, %v696
        %v883 = vpack.c.b16 %v709, %v703
        %v884 = vpack.c.b16 %v710, %v704
        %v885 = vpack.c.b16 %v711, %v705
        %v886 = vpack.c.b16 %v712, %v706
        %v887 = vpack.c.b16 %v713, %v707
        %v888 = vpack.c.b16 %v714, %v708
        %v889 = vpack.c.b16 %v721, %v715
        %v890 = vpack.c.b16 %v722, %v716
        %v891 = vpack.c.b16 %v723, %v717
        %v892 = vpack.c.b16 %v724, %v718
        %v893 = vpack.c.b16 %v725, %v719
        %v894 = vpack.c.b16 %v726, %v720
        %v895 = vpack.c.b16 %v733, %v727
        %v896 = vpack.c.b16 %v734, %v728
        %v897 = vpack.c.b16 %v735, %v729
        %v898 = vpack.c.b16 %v736, %v730
        %v899 = vpack.c.b16 %v737, %v731
        %v900 = vpack.c.b16 %v738, %v732
        %v901 = vpack.c.b16 %v745, %v739
        %v902 = vpack.c.b16 %v746, %v740
        %v903 = vpack.c.b16 %v747, %v741
        %v904 = vpack.c.b16 %v748, %v742
        %v905 = vpack.c.b16 %v749, %v743
        %v906 = vpack.c.b16 %v750, %v744
        %v907 = vpack.c.b16 %v757, %v751
        %v908 = vpack.c.b16 %v758, %v752
        %v909 = vpack.c.b16 %v759, %v753
        %v910 = vpack.c.b16 %v760, %v754
        %v911 = vpack.c.b16 %v761, %v755
        %v912 = vpack.c.b16 %v762, %v756
        %v913 = vpack.c.b16 %v769, %v763
        %v914 = vpack.c.b16 %v770, %v764
        %v915 = vpack.c.b16 %v771, %v765
        %v916 = vpack.c.b16 %v772, %v766
        %v917 = vpack.c.b16 %v773, %v767
        %v918 = vpack.c.b16 %v774, %v768
        %v919 = vpack.c.b16 %v781, %v775
        %v920 = vpack.c.b16 %v782, %v776
        %v921 = vpack.c.b16 %v783, %v777
        %v922 = vpack.c.b16 %v784, %v778
        %v923 = vpack.c.b16 %v785, %v779
        %v924 = vpack.c.b16 %v786, %v780
        %v925 = vpack.c.b16 %v793, %v787
        %v926 = vpack.c.b16 %v794, %v788
        %v927 = vpack.c.b16 %v795, %v789
        %v928 = vpack.c.b16 %v796, %v790
        %v929 = vpack.c.b16 %v797, %v791
        %v930 = vpack.c.b16 %v798, %v792
        %v931 = vpack.c.b16 %v805, %v799
        %v932 = vpack.c.b16 %v806, %v800
        %v933 = vpack.c.b16 %v807, %v801
        %v934 = vpack.c.b16 %v808, %v802
        %v935 = vpack.c.b16 %v809, %v803
        %v936 = vpack.c.b16 %v810, %v804
        %v937 = vpack.c.b16 %v817, %v811
        %v938 = vpack.c.b16 %v818, %v812
        %v939 = vpack.c.b16 %v819, %v813
        %v940 = vpack.c.b16 %v820, %v814
        %v941 = vpack.c.b16 %v821, %v815
        %v942 = vpack.c.b16 %v822, %v816
        %v943 = vpack.c.b16 %v829, %v823
        %v944 = vpack.c.b16 %v830, %v824
        %v945 = vpack.c.b16 %v831, %v825
        %v946 = vpack.c.b16 %v832, %v826
        %v947 = vpack.c.b16 %v833, %v827
        %v948 = vpack.c.b16 %v834, %v828
        %v949 = vpack.c.b16 %v841, %v835
        %v950 = vpack.c.b16 %v842, %v836
        %v951 = vpack.c.b16 %v843, %v837
        %v952 = vpack.c.b16 %v844, %v838
        %v953 = vpack.c.b16 %v845, %v839
        %v954 = vpack.c.b16 %v846, %v840
        %v955 = vpack.c.b16 %v853, %v847
        %v956 = vpack.c.b16 %v854, %v848
        %v957 = vpack.c.b16 %v855, %v849
        %v958 = vpack.c.b16 %v856, %v850
        %v959 = vpack.c.b16 %v857, %v851
        %v960 = vpack.c.b16 %v858, %v852
        %v961 = vpack.c.b16 %v865, %v859
        %v962 = vpack.c.b16 %v866, %v860
        %v963 = vpack.c.b16 %v867, %v861
        %v964 = vpack.c.b16 %v868, %v862
        %v965 = vpack.c.b16 %v869, %v863
        %v966 = vpack.c.b16 %v870, %v864
        %1063 = vmatprep.subr.bf16.mxu0 %v872
        %1064 = vmatpush1.bf16.msra.mxu0 %v871
        %1065 = vmatprep.subr.bf16.mxu0 %v878
        %1066 = vmatpush1.bf16.msra.mxu0 %v877
        %1067 = vmatprep.subr.bf16.mxu0 %v884
        %1068 = vmatpush1.bf16.msra.mxu0 %v883
        %1069 = vmatprep.subr.bf16.mxu0 %v890
        %1070 = vmatpush1.bf16.msra.mxu0 %v889
        %1071 = vmatprep.subr.bf16.mxu0 %v896
        %1072 = vmatpush1.bf16.msra.mxu0 %v895
        %1073 = vmatprep.subr.bf16.mxu0 %v902
        %1074 = vmatpush1.bf16.msra.mxu0 %v901
        %1075 = vmatprep.subr.bf16.mxu0 %v908
        %1076 = vmatpush1.bf16.msra.mxu0 %v907
        %1077 = vmatprep.subr.bf16.mxu0 %v914
        %1078 = vmatpush1.bf16.msra.mxu0 %v913
        %1079 = vmatprep.subr.bf16.mxu0 %v920
        %1080 = vmatpush1.bf16.msra.mxu0 %v919
        %1081 = vmatprep.subr.bf16.mxu0 %v926
        %1082 = vmatpush1.bf16.msra.mxu0 %v925
        %1083 = vmatprep.subr.bf16.mxu0 %v932
        %1084 = vmatpush1.bf16.msra.mxu0 %v931
        %1085 = vmatprep.subr.bf16.mxu0 %v938
        %1086 = vmatpush1.bf16.msra.mxu0 %v937
        %1087 = vmatprep.subr.bf16.mxu0 %v944
        %1088 = vmatpush1.bf16.msra.mxu0 %v943
        %1089 = vmatprep.subr.bf16.mxu0 %v950
        %1090 = vmatpush1.bf16.msra.mxu0 %v949
        %1091 = vmatprep.subr.bf16.mxu0 %v956
        %1092 = vmatpush1.bf16.msra.mxu0 %v955
        %1093 = vmatprep.subr.bf16.mxu0 %v962
        %1094 = vmatpush1.bf16.msra.mxu0 %v961
        %1095 = vmatprep.mubr.bf16.mxu0 %v486
        %1096 = vmatmul.mubr.bf16.gmra.mrb[0].mxu0 %v485
        %v1097 = vpop.f32.mrb[0].mxu0
        %v1098 = vadd.f32 0.0, %v1097
        %v1099 = vpop.f32.mrb[0].mxu0
        %v1100 = vadd.f32 0.0, %v1099
        %v1101 = vpop.f32.mrb[0].mxu0
        %v1102 = vpop.f32.mrb[0].mxu0
        %1103 = vdwg.mxu0
        %1104 = vmatprep.subr.bf16.mxu0 %v874
        %1105 = vmatpush1.bf16.msra.mxu0 %v873
        %1106 = vmatprep.subr.bf16.mxu0 %v880
        %1107 = vmatpush1.bf16.msra.mxu0 %v879
        %1108 = vmatprep.subr.bf16.mxu0 %v886
        %1109 = vmatpush1.bf16.msra.mxu0 %v885
        %1110 = vmatprep.subr.bf16.mxu0 %v892
        %1111 = vmatpush1.bf16.msra.mxu0 %v891
        %1112 = vmatprep.subr.bf16.mxu0 %v898
        %1113 = vmatpush1.bf16.msra.mxu0 %v897
        %1114 = vmatprep.subr.bf16.mxu0 %v904
        %1115 = vmatpush1.bf16.msra.mxu0 %v903
        %1116 = vmatprep.subr.bf16.mxu0 %v910
        %1117 = vmatpush1.bf16.msra.mxu0 %v909
        %1118 = vmatprep.subr.bf16.mxu0 %v916
        %1119 = vmatpush1.bf16.msra.mxu0 %v915
        %1120 = vmatprep.subr.bf16.mxu0 %v922
        %1121 = vmatpush1.bf16.msra.mxu0 %v921
        %1122 = vmatprep.subr.bf16.mxu0 %v928
        %1123 = vmatpush1.bf16.msra.mxu0 %v927
        %1124 = vmatprep.subr.bf16.mxu0 %v934
        %1125 = vmatpush1.bf16.msra.mxu0 %v933
        %1126 = vmatprep.subr.bf16.mxu0 %v940
        %1127 = vmatpush1.bf16.msra.mxu0 %v939
        %1128 = vmatprep.subr.bf16.mxu0 %v946
        %1129 = vmatpush1.bf16.msra.mxu0 %v945
        %1130 = vmatprep.subr.bf16.mxu0 %v952
        %1131 = vmatpush1.bf16.msra.mxu0 %v951
        %1132 = vmatprep.subr.bf16.mxu0 %v958
        %1133 = vmatpush1.bf16.msra.mxu0 %v957
        %1134 = vmatprep.subr.bf16.mxu0 %v964
        %1135 = vmatpush1.bf16.msra.mxu0 %v963
        %1136 = vmatprep.mubr.bf16.mxu0 %v486
        %1137 = vmatmul.mubr.bf16.gmra.mrb[0].mxu0 %v485
        %v1138 = vpop.f32.mrb[0].mxu0
        %v1139 = vadd.f32 0.0, %v1138
        %v1140 = vpop.f32.mrb[0].mxu0
        %v1141 = vadd.f32 0.0, %v1140
        %v1142 = vpop.f32.mrb[0].mxu0
        %v1143 = vpop.f32.mrb[0].mxu0
        %1144 = vdwg.mxu0
        %1145 = vmatprep.subr.bf16.mxu0 %v876
        %1146 = vmatpush1.bf16.msra.mxu0 %v875
        %1147 = vmatprep.subr.bf16.mxu0 %v882
        %1148 = vmatpush1.bf16.msra.mxu0 %v881
        %1149 = vmatprep.subr.bf16.mxu0 %v888
        %1150 = vmatpush1.bf16.msra.mxu0 %v887
        %1151 = vmatprep.subr.bf16.mxu0 %v894
        %1152 = vmatpush1.bf16.msra.mxu0 %v893
        %1153 = vmatprep.subr.bf16.mxu0 %v900
        %1154 = vmatpush1.bf16.msra.mxu0 %v899
        %1155 = vmatprep.subr.bf16.mxu0 %v906
        %1156 = vmatpush1.bf16.msra.mxu0 %v905
        %1157 = vmatprep.subr.bf16.mxu0 %v912
        %1158 = vmatpush1.bf16.msra.mxu0 %v911
        %1159 = vmatprep.subr.bf16.mxu0 %v918
        %1160 = vmatpush1.bf16.msra.mxu0 %v917
        %1161 = vmatprep.subr.bf16.mxu0 %v924
        %1162 = vmatpush1.bf16.msra.mxu0 %v923
        %1163 = vmatprep.subr.bf16.mxu0 %v930
        %1164 = vmatpush1.bf16.msra.mxu0 %v929
        %1165 = vmatprep.subr.bf16.mxu0 %v936
        %1166 = vmatpush1.bf16.msra.mxu0 %v935
        %1167 = vmatprep.subr.bf16.mxu0 %v942
        %1168 = vmatpush1.bf16.msra.mxu0 %v941
        %1169 = vmatprep.subr.bf16.mxu0 %v948
        %1170 = vmatpush1.bf16.msra.mxu0 %v947
        %1171 = vmatprep.subr.bf16.mxu0 %v954
        %1172 = vmatpush1.bf16.msra.mxu0 %v953
        %1173 = vmatprep.subr.bf16.mxu0 %v960
        %1174 = vmatpush1.bf16.msra.mxu0 %v959
        %1175 = vmatprep.subr.bf16.mxu0 %v966
        %1176 = vmatpush1.bf16.msra.mxu0 %v965
        %1177 = vmatprep.mubr.bf16.mxu0 %v486
        %1178 = vmatmul.mubr.bf16.gmra.mrb[0].mxu0 %v485
        %v1179 = vpop.f32.mrb[0].mxu0
        %v1180 = vadd.f32 0.0, %v1179
        %v1181 = vpop.f32.mrb[0].mxu0
        %v1182 = vadd.f32 0.0, %v1181
        %v1183 = vpop.f32.mrb[0].mxu0
        %v1184 = vpop.f32.mrb[0].mxu0
        %1185 = vdwg.mxu0
        %v1186 = vcombine.high %v1098, 0.0
        %v1188 = vunpack.c.l.s4 1983009808
        %v1189 = vunpack.c.0.s8 %v1188
        %v1190 = vlaneseq
        %v1191 = vshrl.u32 %v1190, 7
        %v1192 = vsub.s32 %v1189, %v1191
        %v1193 = vrot.slane %v1098, %v1192
        %v1195 = vunpack.c.l.s4 1983009808
        %v1196 = vunpack.c.0.s8 %v1195
        %v1197 = vlaneseq
        %v1198 = vshrl.u32 %v1197, 7
        %v1199 = vsub.s32 %v1196, %v1198
        %v1200 = vrot.slane %v1186, %v1199
        %v1201 = vcombine.high %v1100, 0.0
        %v1203 = vunpack.c.l.s4 1983009808
        %v1204 = vunpack.c.0.s8 %v1203
        %v1205 = vlaneseq
        %v1206 = vshrl.u32 %v1205, 7
        %v1207 = vsub.s32 %v1204, %v1206
        %v1208 = vrot.slane %v1100, %v1207
        %v1210 = vunpack.c.l.s4 1983009808
        %v1211 = vunpack.c.0.s8 %v1210
        %v1212 = vlaneseq
        %v1213 = vshrl.u32 %v1212, 7
        %v1214 = vsub.s32 %v1211, %v1213
        %v1215 = vrot.slane %v1201, %v1214
        %v1216 = vcombine.low %v1193, %v1208
        %v1217 = vcombine.high %v1193, %v1208
        %v1219 = vunpack.c.l.s4 1934713408
        %v1220 = vunpack.c.0.s8 %v1219
        %v1221 = vlaneseq
        %v1222 = vshrl.u32 %v1221, 7
        %v1223 = vsub.s32 %v1220, %v1222
        %v1224 = vrot.slane %v1216, %v1223
        %v1226 = vunpack.c.l.s4 1934713408
        %v1227 = vunpack.c.0.s8 %v1226
        %v1228 = vlaneseq
        %v1229 = vshrl.u32 %v1228, 7
        %v1230 = vsub.s32 %v1227, %v1229
        %v1231 = vrot.slane %v1217, %v1230
        %v1232 = vcombine.low %v1200, %v1215
        %v1233 = vcombine.high %v1200, %v1215
        %v1235 = vunpack.c.l.s4 1934713408
        %v1236 = vunpack.c.0.s8 %v1235
        %v1237 = vlaneseq
        %v1238 = vshrl.u32 %v1237, 7
        %v1239 = vsub.s32 %v1236, %v1238
        %v1240 = vrot.slane %v1232, %v1239
        %v1242 = vunpack.c.l.s4 1934713408
        %v1243 = vunpack.c.0.s8 %v1242
        %v1244 = vlaneseq
        %v1245 = vshrl.u32 %v1244, 7
        %v1246 = vsub.s32 %v1243, %v1245
        %v1247 = vrot.slane %v1233, %v1246
        %v1248 = vcombine.high %v1224, 0.0
        %v1249 = vcombine.high %v1231, 0.0
        %v1250 = vcombine.high %v1240, 0.0
        %v1251 = vcombine.high %v1247, 0.0
        %v1252 = vcombine.low %v1224, %v1231
        %v1254 = vunpack.c.l.s4 1983009808
        %v1255 = vunpack.c.0.s8 %v1254
        %v1256 = vlaneseq
        %v1257 = vshrl.u32 %v1256, 7
        %v1258 = vsub.s32 %v1255, %v1257
        %v1259 = vrot.slane %v1252, %v1258
        %v1260 = vcombine.low %v1248, %v1249
        %v1262 = vunpack.c.l.s4 1983009808
        %v1263 = vunpack.c.0.s8 %v1262
        %v1264 = vlaneseq
        %v1265 = vshrl.u32 %v1264, 7
        %v1266 = vsub.s32 %v1263, %v1265
        %v1267 = vrot.slane %v1260, %v1266
        %v1268 = vcombine.low %v1240, %v1247
        %v1270 = vunpack.c.l.s4 1983009808
        %v1271 = vunpack.c.0.s8 %v1270
        %v1272 = vlaneseq
        %v1273 = vshrl.u32 %v1272, 7
        %v1274 = vsub.s32 %v1271, %v1273
        %v1275 = vrot.slane %v1268, %v1274
        %v1276 = vcombine.low %v1250, %v1251
        %v1278 = vunpack.c.l.s4 1983009808
        %v1279 = vunpack.c.0.s8 %v1278
        %v1280 = vlaneseq
        %v1281 = vshrl.u32 %v1280, 7
        %v1282 = vsub.s32 %v1279, %v1281
        %v1283 = vrot.slane %v1276, %v1282
        %v1284 = vcombine.low %v1259, %v1267
        %v1286 = vunpack.c.l.s4 1934713408
        %v1287 = vunpack.c.0.s8 %v1286
        %v1288 = vlaneseq
        %v1289 = vshrl.u32 %v1288, 7
        %v1290 = vsub.s32 %v1287, %v1289
        %v1291 = vrot.slane %v1284, %v1290
        %v1292 = vcombine.low %v1275, %v1283
        %v1294 = vunpack.c.l.s4 1934713408
        %v1295 = vunpack.c.0.s8 %v1294
        %v1296 = vlaneseq
        %v1297 = vshrl.u32 %v1296, 7
        %v1298 = vsub.s32 %v1295, %v1297
        %v1299 = vrot.slane %v1292, %v1298
        %v1300 = vcombine.low %v1291, %v1299
        %v1301 = vcombine.high %v1291, %v1299
        %v1302 = vcombine.high %v1139, 0.0
        %v1304 = vunpack.c.l.s4 1983009808
        %v1305 = vunpack.c.0.s8 %v1304
        %v1306 = vlaneseq
        %v1307 = vshrl.u32 %v1306, 7
        %v1308 = vsub.s32 %v1305, %v1307
        %v1309 = vrot.slane %v1139, %v1308
        %v1311 = vunpack.c.l.s4 1983009808
        %v1312 = vunpack.c.0.s8 %v1311
        %v1313 = vlaneseq
        %v1314 = vshrl.u32 %v1313, 7
        %v1315 = vsub.s32 %v1312, %v1314
        %v1316 = vrot.slane %v1302, %v1315
        %v1317 = vcombine.high %v1141, 0.0
        %v1319 = vunpack.c.l.s4 1983009808
        %v1320 = vunpack.c.0.s8 %v1319
        %v1321 = vlaneseq
        %v1322 = vshrl.u32 %v1321, 7
        %v1323 = vsub.s32 %v1320, %v1322
        %v1324 = vrot.slane %v1141, %v1323
        %v1326 = vunpack.c.l.s4 1983009808
        %v1327 = vunpack.c.0.s8 %v1326
        %v1328 = vlaneseq
        %v1329 = vshrl.u32 %v1328, 7
        %v1330 = vsub.s32 %v1327, %v1329
        %v1331 = vrot.slane %v1317, %v1330
        %v1332 = vcombine.low %v1309, %v1324
        %v1333 = vcombine.high %v1309, %v1324
        %v1335 = vunpack.c.l.s4 1934713408
        %v1336 = vunpack.c.0.s8 %v1335
        %v1337 = vlaneseq
        %v1338 = vshrl.u32 %v1337, 7
        %v1339 = vsub.s32 %v1336, %v1338
        %v1340 = vrot.slane %v1332, %v1339
        %v1342 = vunpack.c.l.s4 1934713408
        %v1343 = vunpack.c.0.s8 %v1342
        %v1344 = vlaneseq
        %v1345 = vshrl.u32 %v1344, 7
        %v1346 = vsub.s32 %v1343, %v1345
        %v1347 = vrot.slane %v1333, %v1346
        %v1348 = vcombine.low %v1316, %v1331
        %v1349 = vcombine.high %v1316, %v1331
        %v1351 = vunpack.c.l.s4 1934713408
        %v1352 = vunpack.c.0.s8 %v1351
        %v1353 = vlaneseq
        %v1354 = vshrl.u32 %v1353, 7
        %v1355 = vsub.s32 %v1352, %v1354
        %v1356 = vrot.slane %v1348, %v1355
        %v1358 = vunpack.c.l.s4 1934713408
        %v1359 = vunpack.c.0.s8 %v1358
        %v1360 = vlaneseq
        %v1361 = vshrl.u32 %v1360, 7
        %v1362 = vsub.s32 %v1359, %v1361
        %v1363 = vrot.slane %v1349, %v1362
        %v1364 = vcombine.high %v1340, 0.0
        %v1365 = vcombine.high %v1347, 0.0
        %v1366 = vcombine.high %v1356, 0.0
        %v1367 = vcombine.high %v1363, 0.0
        %v1368 = vcombine.low %v1340, %v1347
        %v1370 = vunpack.c.l.s4 1983009808
        %v1371 = vunpack.c.0.s8 %v1370
        %v1372 = vlaneseq
        %v1373 = vshrl.u32 %v1372, 7
        %v1374 = vsub.s32 %v1371, %v1373
        %v1375 = vrot.slane %v1368, %v1374
        %v1376 = vcombine.low %v1364, %v1365
        %v1378 = vunpack.c.l.s4 1983009808
        %v1379 = vunpack.c.0.s8 %v1378
        %v1380 = vlaneseq
        %v1381 = vshrl.u32 %v1380, 7
        %v1382 = vsub.s32 %v1379, %v1381
        %v1383 = vrot.slane %v1376, %v1382
        %v1384 = vcombine.low %v1356, %v1363
        %v1386 = vunpack.c.l.s4 1983009808
        %v1387 = vunpack.c.0.s8 %v1386
        %v1388 = vlaneseq
        %v1389 = vshrl.u32 %v1388, 7
        %v1390 = vsub.s32 %v1387, %v1389
        %v1391 = vrot.slane %v1384, %v1390
        %v1392 = vcombine.low %v1366, %v1367
        %v1394 = vunpack.c.l.s4 1983009808
        %v1395 = vunpack.c.0.s8 %v1394
        %v1396 = vlaneseq
        %v1397 = vshrl.u32 %v1396, 7
        %v1398 = vsub.s32 %v1395, %v1397
        %v1399 = vrot.slane %v1392, %v1398
        %v1400 = vcombine.low %v1375, %v1383
        %v1402 = vunpack.c.l.s4 1934713408
        %v1403 = vunpack.c.0.s8 %v1402
        %v1404 = vlaneseq
        %v1405 = vshrl.u32 %v1404, 7
        %v1406 = vsub.s32 %v1403, %v1405
        %v1407 = vrot.slane %v1400, %v1406
        %v1408 = vcombine.low %v1391, %v1399
        %v1410 = vunpack.c.l.s4 1934713408
        %v1411 = vunpack.c.0.s8 %v1410
        %v1412 = vlaneseq
        %v1413 = vshrl.u32 %v1412, 7
        %v1414 = vsub.s32 %v1411, %v1413
        %v1415 = vrot.slane %v1408, %v1414
        %v1416 = vcombine.low %v1407, %v1415
        %v1417 = vcombine.high %v1407, %v1415
        %v1418 = vcombine.high %v1180, 0.0
        %v1420 = vunpack.c.l.s4 1983009808
        %v1421 = vunpack.c.0.s8 %v1420
        %v1422 = vlaneseq
        %v1423 = vshrl.u32 %v1422, 7
        %v1424 = vsub.s32 %v1421, %v1423
        %v1425 = vrot.slane %v1180, %v1424
        %v1427 = vunpack.c.l.s4 1983009808
        %v1428 = vunpack.c.0.s8 %v1427
        %v1429 = vlaneseq
        %v1430 = vshrl.u32 %v1429, 7
        %v1431 = vsub.s32 %v1428, %v1430
        %v1432 = vrot.slane %v1418, %v1431
        %v1433 = vcombine.high %v1182, 0.0
        %v1435 = vunpack.c.l.s4 1983009808
        %v1436 = vunpack.c.0.s8 %v1435
        %v1437 = vlaneseq
        %v1438 = vshrl.u32 %v1437, 7
        %v1439 = vsub.s32 %v1436, %v1438
        %v1440 = vrot.slane %v1182, %v1439
        %v1442 = vunpack.c.l.s4 1983009808
        %v1443 = vunpack.c.0.s8 %v1442
        %v1444 = vlaneseq
        %v1445 = vshrl.u32 %v1444, 7
        %v1446 = vsub.s32 %v1443, %v1445
        %v1447 = vrot.slane %v1433, %v1446
        %v1448 = vcombine.low %v1425, %v1440
        %v1449 = vcombine.high %v1425, %v1440
        %v1451 = vunpack.c.l.s4 1934713408
        %v1452 = vunpack.c.0.s8 %v1451
        %v1453 = vlaneseq
        %v1454 = vshrl.u32 %v1453, 7
        %v1455 = vsub.s32 %v1452, %v1454
        %v1456 = vrot.slane %v1448, %v1455
        %v1458 = vunpack.c.l.s4 1934713408
        %v1459 = vunpack.c.0.s8 %v1458
        %v1460 = vlaneseq
        %v1461 = vshrl.u32 %v1460, 7
        %v1462 = vsub.s32 %v1459, %v1461
        %v1463 = vrot.slane %v1449, %v1462
        %v1464 = vcombine.low %v1432, %v1447
        %v1465 = vcombine.high %v1432, %v1447
        %v1467 = vunpack.c.l.s4 1934713408
        %v1468 = vunpack.c.0.s8 %v1467
        %v1469 = vlaneseq
        %v1470 = vshrl.u32 %v1469, 7
        %v1471 = vsub.s32 %v1468, %v1470
        %v1472 = vrot.slane %v1464, %v1471
        %v1474 = vunpack.c.l.s4 1934713408
        %v1475 = vunpack.c.0.s8 %v1474
        %v1476 = vlaneseq
        %v1477 = vshrl.u32 %v1476, 7
        %v1478 = vsub.s32 %v1475, %v1477
        %v1479 = vrot.slane %v1465, %v1478
        %v1480 = vcombine.high %v1456, 0.0
        %v1481 = vcombine.high %v1463, 0.0
        %v1482 = vcombine.high %v1472, 0.0
        %v1483 = vcombine.high %v1479, 0.0
        %v1484 = vcombine.low %v1456, %v1463
        %v1486 = vunpack.c.l.s4 1983009808
        %v1487 = vunpack.c.0.s8 %v1486
        %v1488 = vlaneseq
        %v1489 = vshrl.u32 %v1488, 7
        %v1490 = vsub.s32 %v1487, %v1489
        %v1491 = vrot.slane %v1484, %v1490
        %v1492 = vcombine.low %v1480, %v1481
        %v1494 = vunpack.c.l.s4 1983009808
        %v1495 = vunpack.c.0.s8 %v1494
        %v1496 = vlaneseq
        %v1497 = vshrl.u32 %v1496, 7
        %v1498 = vsub.s32 %v1495, %v1497
        %v1499 = vrot.slane %v1492, %v1498
        %v1500 = vcombine.low %v1472, %v1479
        %v1502 = vunpack.c.l.s4 1983009808
        %v1503 = vunpack.c.0.s8 %v1502
        %v1504 = vlaneseq
        %v1505 = vshrl.u32 %v1504, 7
        %v1506 = vsub.s32 %v1503, %v1505
        %v1507 = vrot.slane %v1500, %v1506
        %v1508 = vcombine.low %v1482, %v1483
        %v1510 = vunpack.c.l.s4 1983009808
        %v1511 = vunpack.c.0.s8 %v1510
        %v1512 = vlaneseq
        %v1513 = vshrl.u32 %v1512, 7
        %v1514 = vsub.s32 %v1511, %v1513
        %v1515 = vrot.slane %v1508, %v1514
        %v1516 = vcombine.low %v1491, %v1499
        %v1518 = vunpack.c.l.s4 1934713408
        %v1519 = vunpack.c.0.s8 %v1518
        %v1520 = vlaneseq
        %v1521 = vshrl.u32 %v1520, 7
        %v1522 = vsub.s32 %v1519, %v1521
        %v1523 = vrot.slane %v1516, %v1522
        %v1524 = vcombine.low %v1507, %v1515
        %v1526 = vunpack.c.l.s4 1934713408
        %v1527 = vunpack.c.0.s8 %v1526
        %v1528 = vlaneseq
        %v1529 = vshrl.u32 %v1528, 7
        %v1530 = vsub.s32 %v1527, %v1529
        %v1531 = vrot.slane %v1524, %v1530
        %v1532 = vcombine.low %v1523, %v1531
        %v1533 = vcombine.high %v1523, %v1531
        %v1534 = vld [vmem:[%s439] sm:$0xff]
        %v1535 = vld [vmem:[%s443] sm:$0xff]
        %v1536 = vlaneseq
        %v1537 = vand.u32 %v1536, 127
        %vm1538 = vcmp.lt.s32.totalorder %v1537, 64
        %v1539 = vsel %vm1538, -1.0, 1.0
        %1540 = vrot.lane.b32.xlu0 %v1300, 64
        %v1541 = vpop.permute.xlu0 %1540
        %1542 = vrot.lane.b32.xlu0 %v1301, 64
        %v1543 = vpop.permute.xlu0 %1542
        %v1544 = vmul.f32 %v1300, %v1534
        %v1545 = vmul.f32 %v1301, %v1534
        %v1546 = vmul.f32 %v1541, %v1539
        %v1547 = vmul.f32 %v1543, %v1539
        %v1548 = vmul.f32 %v1546, %v1535
        %v1549 = vmul.f32 %v1547, %v1535
        %v1550 = vadd.f32 %v1544, %v1548
        %v1551 = vadd.f32 %v1545, %v1549
        %1552 = vrot.lane.b32.xlu0 %v1416, 64
        %v1553 = vpop.permute.xlu0 %1552
        %1554 = vrot.lane.b32.xlu0 %v1417, 64
        %v1555 = vpop.permute.xlu0 %1554
        %v1556 = vmul.f32 %v1416, %v1534
        %v1557 = vmul.f32 %v1417, %v1534
        %v1558 = vmul.f32 %v1553, %v1539
        %v1559 = vmul.f32 %v1555, %v1539
        %v1560 = vmul.f32 %v1558, %v1535
        %v1561 = vmul.f32 %v1559, %v1535
        %v1562 = vadd.f32 %v1556, %v1560
        %v1563 = vadd.f32 %v1557, %v1561
        %v1564 = vlaneseq
        %v1565 = vshrl.u32 %v1564, 7
        %vm1566 = vcmp.le.s32.totalorder %v1537, %v1565
        %v1567 = vsel %vm1566, 0.0, -1e+30
        %v1568 = vpack.c.bf16 %v1550, %v1550
        %v1569 = vpack.c.bf16 %v1551, %v1551
        %v1570 = vpack.c.bf16 %v1562, %v1562
        %v1571 = vpack.c.bf16 %v1563, %v1563
        %1572 = vmatprep.subr.bf16.mxu0 0
        %1573 = vmatpush1.bf16.xpose.msra.mxu0 %v1570
        %1574 = vmatprep.subr.bf16.mxu0 0
        %1575 = vmatpush1.bf16.xpose.msra.mxu0 0
        %1576 = vmatprep.subr.bf16.mxu0 0
        %1577 = vmatpush1.bf16.xpose.msra.mxu0 0
        %1578 = vmatprep.subr.bf16.mxu0 0
        %1579 = vmatpush1.bf16.xpose.msra.mxu0 0
        %1580 = vmatprep.subr.bf16.mxu0 0
        %1581 = vmatpush1.bf16.xpose.msra.mxu0 0
        %1582 = vmatprep.subr.bf16.mxu0 0
        %1583 = vmatpush1.bf16.xpose.msra.mxu0 0
        %1584 = vmatprep.subr.bf16.mxu0 0
        %1585 = vmatpush1.bf16.xpose.msra.mxu0 0
        %1586 = vmatprep.subr.bf16.mxu0 0
        %1587 = vmatpush1.bf16.xpose.msra.mxu0 0
        %1588 = vmatprep.subr.bf16.mxu0 0
        %1589 = vmatpush1.bf16.xpose.msra.mxu0 0
        %1590 = vmatprep.subr.bf16.mxu0 0
        %1591 = vmatpush1.bf16.xpose.msra.mxu0 0
        %1592 = vmatprep.subr.bf16.mxu0 0
        %1593 = vmatpush1.bf16.xpose.msra.mxu0 0
        %1594 = vmatprep.subr.bf16.mxu0 0
        %1595 = vmatpush1.bf16.xpose.msra.mxu0 0
        %1596 = vmatprep.subr.bf16.mxu0 0
        %1597 = vmatpush1.bf16.xpose.msra.mxu0 0
        %1598 = vmatprep.subr.bf16.mxu0 0
        %1599 = vmatpush1.bf16.xpose.msra.mxu0 0
        %1600 = vmatprep.subr.bf16.mxu0 0
        %1601 = vmatpush1.bf16.xpose.msra.mxu0 0
        %1602 = vmatprep.subr.bf16.mxu0 0
        %1603 = vmatpush1.bf16.xpose.msra.mxu0 0
        %1604 = vmatprep.mubr.bf16.mxu0 0
        %1605 = vmatmul.mubr.bf16.gmra.mrb[0].mxu0 %v1568
        %v1606 = vpop.f32.mrb[0].mxu0
        %v1607 = vadd.f32 0.0, %v1606
        %v1608 = vpop.f32.mrb[0].mxu0
        %v1609 = vpop.f32.mrb[0].mxu0
        %v1610 = vpop.f32.mrb[0].mxu0
        %1611 = vdwg.mxu0
        %1612 = vmatprep.subr.bf16.mxu0 0
        %1613 = vmatpush1.bf16.xpose.msra.mxu0 %v1571
        %1614 = vmatprep.subr.bf16.mxu0 0
        %1615 = vmatpush1.bf16.xpose.msra.mxu0 0
        %1616 = vmatprep.subr.bf16.mxu0 0
        %1617 = vmatpush1.bf16.xpose.msra.mxu0 0
        %1618 = vmatprep.subr.bf16.mxu0 0
        %1619 = vmatpush1.bf16.xpose.msra.mxu0 0
        %1620 = vmatprep.subr.bf16.mxu0 0
        %1621 = vmatpush1.bf16.xpose.msra.mxu0 0
        %1622 = vmatprep.subr.bf16.mxu0 0
        %1623 = vmatpush1.bf16.xpose.msra.mxu0 0
        %1624 = vmatprep.subr.bf16.mxu0 0
        %1625 = vmatpush1.bf16.xpose.msra.mxu0 0
        %1626 = vmatprep.subr.bf16.mxu0 0
        %1627 = vmatpush1.bf16.xpose.msra.mxu0 0
        %1628 = vmatprep.subr.bf16.mxu0 0
        %1629 = vmatpush1.bf16.xpose.msra.mxu0 0
        %1630 = vmatprep.subr.bf16.mxu0 0
        %1631 = vmatpush1.bf16.xpose.msra.mxu0 0
        %1632 = vmatprep.subr.bf16.mxu0 0
        %1633 = vmatpush1.bf16.xpose.msra.mxu0 0
        %1634 = vmatprep.subr.bf16.mxu0 0
        %1635 = vmatpush1.bf16.xpose.msra.mxu0 0
        %1636 = vmatprep.subr.bf16.mxu0 0
        %1637 = vmatpush1.bf16.xpose.msra.mxu0 0
        %1638 = vmatprep.subr.bf16.mxu0 0
        %1639 = vmatpush1.bf16.xpose.msra.mxu0 0
        %1640 = vmatprep.subr.bf16.mxu0 0
        %1641 = vmatpush1.bf16.xpose.msra.mxu0 0
        %1642 = vmatprep.subr.bf16.mxu0 0
        %1643 = vmatpush1.bf16.xpose.msra.mxu0 0
        %1644 = vmatprep.mubr.bf16.mxu0 0
        %1645 = vmatmul.mubr.bf16.gmra.mrb[0].mxu0 %v1569
        %v1646 = vpop.f32.mrb[0].mxu0
        %v1647 = vadd.f32 0.0, %v1646
        %v1648 = vpop.f32.mrb[0].mxu0
        %v1649 = vpop.f32.mrb[0].mxu0
        %v1650 = vpop.f32.mrb[0].mxu0
        %1651 = vdwg.mxu0
        %v1652 = vmul.f32 %v1607, 0.088388346
        %v1653 = vmul.f32 %v1647, 0.088388346
        %v1654 = vadd.f32 %v1652, %v1567
        %v1655 = vadd.f32 %v1653, %v1567
        %vm1656 = vcmask 64512
        %v1657 = vsel %vm1656, %v1654, -inf
        %1658 = vmax.xlane.f32.xlu0 %v1657
        %v1659 = vpop.xlane.xlu0 %1658
        %v1660 = vsel %vm1656, %v1655, -inf
        %1661 = vmax.xlane.f32.xlu0 %v1660
        %v1662 = vpop.xlane.xlu0 %1661
        %v1663 = vsub.f32 %v1654, %v1659
        %v1664 = vsub.f32 %v1655, %v1662
        %v1665 = vmul.f32 %v1663, 1.442695
        %v1666 = vpow.pop %v1665
        %v1667 = vmul.f32 %v1664, 1.442695
        %v1668 = vpow.pop %v1667
        %v1669 = vsel %vm1656, %v1666, 0.0
        %1670 = vadd.xlane.f32.xlu0 %v1669
        %v1671 = vpop.xlane.xlu0 %1670
        %v1672 = vsel %vm1656, %v1668, 0.0
        %1673 = vadd.xlane.f32.xlu0 %v1672
        %v1674 = vpop.xlane.xlu0 %1673
        %v1675 = vrcp.pop %v1671
        %v1676 = vmul.f32 %v1666, %v1675
        %v1677 = vrcp.pop %v1674
        %v1678 = vmul.f32 %v1668, %v1677
        %v1679 = vpack.c.bf16 %v1676, %v1676
        %v1680 = vpack.c.bf16 %v1678, %v1678
        %v1681 = vpack.c.bf16 %v1532, %v1532
        %v1682 = vpack.c.bf16 %v1533, %v1533
        %v1684 = vsel %vm1656, %v1679, 0
        %vm1686 = vcmask 1043456
        %v1688 = vsel %vm1686, %v1681, 0
        %1690 = vmatprep.subr.bf16.mxu0 0
        %1691 = vmatpush1.bf16.msra.mxu0 %v1688
        %1692 = vmatprep.subr.bf16.mxu0 0
        %1693 = vmatpush1.bf16.msra.mxu0 0
        %1694 = vmatprep.subr.bf16.mxu0 0
        %1695 = vmatpush1.bf16.msra.mxu0 0
        %1696 = vmatprep.subr.bf16.mxu0 0
        %1697 = vmatpush1.bf16.msra.mxu0 0
        %1698 = vmatprep.subr.bf16.mxu0 0
        %1699 = vmatpush1.bf16.msra.mxu0 0
        %1700 = vmatprep.subr.bf16.mxu0 0
        %1701 = vmatpush1.bf16.msra.mxu0 0
        %1702 = vmatprep.subr.bf16.mxu0 0
        %1703 = vmatpush1.bf16.msra.mxu0 0
        %1704 = vmatprep.subr.bf16.mxu0 0
        %1705 = vmatpush1.bf16.msra.mxu0 0
        %1706 = vmatprep.subr.bf16.mxu0 0
        %1707 = vmatpush1.bf16.msra.mxu0 0
        %1708 = vmatprep.subr.bf16.mxu0 0
        %1709 = vmatpush1.bf16.msra.mxu0 0
        %1710 = vmatprep.subr.bf16.mxu0 0
        %1711 = vmatpush1.bf16.msra.mxu0 0
        %1712 = vmatprep.subr.bf16.mxu0 0
        %1713 = vmatpush1.bf16.msra.mxu0 0
        %1714 = vmatprep.subr.bf16.mxu0 0
        %1715 = vmatpush1.bf16.msra.mxu0 0
        %1716 = vmatprep.subr.bf16.mxu0 0
        %1717 = vmatpush1.bf16.msra.mxu0 0
        %1718 = vmatprep.subr.bf16.mxu0 0
        %1719 = vmatpush1.bf16.msra.mxu0 0
        %1720 = vmatprep.subr.bf16.mxu0 0
        %1721 = vmatpush1.bf16.msra.mxu0 0
        %1722 = vmatprep.mubr.bf16.mxu0 0
        %1723 = vmatmul.mubr.bf16.gmra.mrb[0].mxu0 %v1684
        %v1724 = vpop.f32.mrb[0].mxu0
        %v1725 = vadd.f32 0.0, %v1724
        %v1726 = vpop.f32.mrb[0].mxu0
        %v1727 = vpop.f32.mrb[0].mxu0
        %v1728 = vpop.f32.mrb[0].mxu0
        %1729 = vdwg.mxu0
        %v1731 = vsel %vm1656, %v1680, 0
        %v1734 = vsel %vm1686, %v1682, 0
        %1736 = vmatprep.subr.bf16.mxu0 0
        %1737 = vmatpush1.bf16.msra.mxu0 %v1734
        %1738 = vmatprep.subr.bf16.mxu0 0
        %1739 = vmatpush1.bf16.msra.mxu0 0
        %1740 = vmatprep.subr.bf16.mxu0 0
        %1741 = vmatpush1.bf16.msra.mxu0 0
        %1742 = vmatprep.subr.bf16.mxu0 0
        %1743 = vmatpush1.bf16.msra.mxu0 0
        %1744 = vmatprep.subr.bf16.mxu0 0
        %1745 = vmatpush1.bf16.msra.mxu0 0
        %1746 = vmatprep.subr.bf16.mxu0 0
        %1747 = vmatpush1.bf16.msra.mxu0 0
        %1748 = vmatprep.subr.bf16.mxu0 0
        %1749 = vmatpush1.bf16.msra.mxu0 0
        %1750 = vmatprep.subr.bf16.mxu0 0
        %1751 = vmatpush1.bf16.msra.mxu0 0
        %1752 = vmatprep.subr.bf16.mxu0 0
        %1753 = vmatpush1.bf16.msra.mxu0 0
        %1754 = vmatprep.subr.bf16.mxu0 0
        %1755 = vmatpush1.bf16.msra.mxu0 0
        %1756 = vmatprep.subr.bf16.mxu0 0
        %1757 = vmatpush1.bf16.msra.mxu0 0
        %1758 = vmatprep.subr.bf16.mxu0 0
        %1759 = vmatpush1.bf16.msra.mxu0 0
        %1760 = vmatprep.subr.bf16.mxu0 0
        %1761 = vmatpush1.bf16.msra.mxu0 0
        %1762 = vmatprep.subr.bf16.mxu0 0
        %1763 = vmatpush1.bf16.msra.mxu0 0
        %1764 = vmatprep.subr.bf16.mxu0 0
        %1765 = vmatpush1.bf16.msra.mxu0 0
        %1766 = vmatprep.subr.bf16.mxu0 0
        %1767 = vmatpush1.bf16.msra.mxu0 0
        %1768 = vmatprep.mubr.bf16.mxu0 0
        %1769 = vmatmul.mubr.bf16.gmra.mrb[0].mxu0 %v1731
        %v1770 = vpop.f32.mrb[0].mxu0
        %v1771 = vadd.f32 0.0, %v1770
        %v1772 = vpop.f32.mrb[0].mxu0
        %v1773 = vpop.f32.mrb[0].mxu0
        %v1774 = vpop.f32.mrb[0].mxu0
        %1775 = vdwg.mxu0
        %v1776 = vcombine.high %v1725, 0.0
        %v1778 = vunpack.c.l.s4 1983009808
        %v1779 = vunpack.c.0.s8 %v1778
        %v1780 = vlaneseq
        %v1781 = vshrl.u32 %v1780, 7
        %v1782 = vsub.s32 %v1779, %v1781
        %v1783 = vrot.slane %v1725, %v1782
        %v1785 = vunpack.c.l.s4 1983009808
        %v1786 = vunpack.c.0.s8 %v1785
        %v1787 = vlaneseq
        %v1788 = vshrl.u32 %v1787, 7
        %v1789 = vsub.s32 %v1786, %v1788
        %v1790 = vrot.slane %v1776, %v1789
        %v1791 = vcombine.high %v1771, 0.0
        %v1793 = vunpack.c.l.s4 1983009808
        %v1794 = vunpack.c.0.s8 %v1793
        %v1795 = vlaneseq
        %v1796 = vshrl.u32 %v1795, 7
        %v1797 = vsub.s32 %v1794, %v1796
        %v1798 = vrot.slane %v1771, %v1797
        %v1800 = vunpack.c.l.s4 1983009808
        %v1801 = vunpack.c.0.s8 %v1800
        %v1802 = vlaneseq
        %v1803 = vshrl.u32 %v1802, 7
        %v1804 = vsub.s32 %v1801, %v1803
        %v1805 = vrot.slane %v1791, %v1804
        %v1806 = vcombine.low %v1783, %v1798
        %v1807 = vcombine.high %v1783, %v1798
        %v1809 = vunpack.c.l.s4 1934713408
        %v1810 = vunpack.c.0.s8 %v1809
        %v1811 = vlaneseq
        %v1812 = vshrl.u32 %v1811, 7
        %v1813 = vsub.s32 %v1810, %v1812
        %v1814 = vrot.slane %v1806, %v1813
        %v1816 = vunpack.c.l.s4 1934713408
        %v1817 = vunpack.c.0.s8 %v1816
        %v1818 = vlaneseq
        %v1819 = vshrl.u32 %v1818, 7
        %v1820 = vsub.s32 %v1817, %v1819
        %v1821 = vrot.slane %v1807, %v1820
        %v1822 = vcombine.low %v1790, %v1805
        %v1823 = vcombine.high %v1790, %v1805
        %v1825 = vunpack.c.l.s4 1934713408
        %v1826 = vunpack.c.0.s8 %v1825
        %v1827 = vlaneseq
        %v1828 = vshrl.u32 %v1827, 7
        %v1829 = vsub.s32 %v1826, %v1828
        %v1830 = vrot.slane %v1822, %v1829
        %v1832 = vunpack.c.l.s4 1934713408
        %v1833 = vunpack.c.0.s8 %v1832
        %v1834 = vlaneseq
        %v1835 = vshrl.u32 %v1834, 7
        %v1836 = vsub.s32 %v1833, %v1835
        %v1837 = vrot.slane %v1823, %v1836
        %v1838 = vcombine.high %v1814, 0.0
        %v1839 = vcombine.high %v1821, 0.0
        %v1840 = vcombine.high %v1830, 0.0
        %v1841 = vcombine.high %v1837, 0.0
        %v1842 = vcombine.low %v1814, %v1821
        %v1844 = vunpack.c.l.s4 1983009808
        %v1845 = vunpack.c.0.s8 %v1844
        %v1846 = vlaneseq
        %v1847 = vshrl.u32 %v1846, 7
        %v1848 = vsub.s32 %v1845, %v1847
        %v1849 = vrot.slane %v1842, %v1848
        %v1850 = vcombine.low %v1838, %v1839
        %v1852 = vunpack.c.l.s4 1983009808
        %v1853 = vunpack.c.0.s8 %v1852
        %v1854 = vlaneseq
        %v1855 = vshrl.u32 %v1854, 7
        %v1856 = vsub.s32 %v1853, %v1855
        %v1857 = vrot.slane %v1850, %v1856
        %v1858 = vcombine.low %v1830, %v1837
        %v1860 = vunpack.c.l.s4 1983009808
        %v1861 = vunpack.c.0.s8 %v1860
        %v1862 = vlaneseq
        %v1863 = vshrl.u32 %v1862, 7
        %v1864 = vsub.s32 %v1861, %v1863
        %v1865 = vrot.slane %v1858, %v1864
        %v1866 = vcombine.low %v1840, %v1841
        %v1868 = vunpack.c.l.s4 1983009808
        %v1869 = vunpack.c.0.s8 %v1868
        %v1870 = vlaneseq
        %v1871 = vshrl.u32 %v1870, 7
        %v1872 = vsub.s32 %v1869, %v1871
        %v1873 = vrot.slane %v1866, %v1872
        %v1874 = vcombine.low %v1849, %v1857
        %v1876 = vunpack.c.l.s4 1934713408
        %v1877 = vunpack.c.0.s8 %v1876
        %v1878 = vlaneseq
        %v1879 = vshrl.u32 %v1878, 7
        %v1880 = vsub.s32 %v1877, %v1879
        %v1881 = vrot.slane %v1874, %v1880
        %v1882 = vcombine.low %v1865, %v1873
        %v1884 = vunpack.c.l.s4 1934713408
        %v1885 = vunpack.c.0.s8 %v1884
        %v1886 = vlaneseq
        %v1887 = vshrl.u32 %v1886, 7
        %v1888 = vsub.s32 %v1885, %v1887
        %v1889 = vrot.slane %v1882, %v1888
        %v1890 = vcombine.low %v1881, %v1889
        %v1891 = vcombine.high %v1881, %v1889
        %v1892 = vpack.c.bf16 %v1890, %v1890
        %v1893 = vpack.c.bf16 %v1891, %v1891
        %v1894 = vld [vmem:[%s4] sm:$0xff]
        %v1895 = vld [vmem:[%s4 + $0x8] sm:$0xff]
        %v1896 = vld [vmem:[%s4 + $0x10] sm:$0xff]
        %v1897 = vld [vmem:[%s4 + $0x18] sm:$0xff]
        %v1898 = vld [vmem:[%s4 + $0x20] sm:$0xff]
        %v1899 = vld [vmem:[%s4 + $0x28] sm:$0xff]
        %v1900 = vld [vmem:[%s4 + $0x30] sm:$0xff]
        %v1901 = vld [vmem:[%s4 + $0x38] sm:$0xff]
        %v1902 = vld [vmem:[%s4 + $0x40] sm:$0xff]
        %v1903 = vld [vmem:[%s4 + $0x48] sm:$0xff]
        %v1904 = vld [vmem:[%s4 + $0x50] sm:$0xff]
        %v1905 = vld [vmem:[%s4 + $0x58] sm:$0xff]
        %v1906 = vld [vmem:[%s4 + $0x60] sm:$0xff]
        %v1907 = vld [vmem:[%s4 + $0x68] sm:$0xff]
        %v1908 = vld [vmem:[%s4 + $0x70] sm:$0xff]
        %v1909 = vld [vmem:[%s4 + $0x78] sm:$0xff]
        %v1910 = vld [vmem:[%s4 + $0x80] sm:$0xff]
        %v1911 = vld [vmem:[%s4 + $0x88] sm:$0xff]
        %v1912 = vld [vmem:[%s4 + $0x90] sm:$0xff]
        %v1913 = vld [vmem:[%s4 + $0x98] sm:$0xff]
        %v1914 = vld [vmem:[%s4 + $0xa0] sm:$0xff]
        %v1915 = vld [vmem:[%s4 + $0xa8] sm:$0xff]
        %v1916 = vld [vmem:[%s4 + $0xb0] sm:$0xff]
        %v1917 = vld [vmem:[%s4 + $0xb8] sm:$0xff]
        %v1918 = vld [vmem:[%s4 + $0xc0] sm:$0xff]
        %v1919 = vld [vmem:[%s4 + $0xc8] sm:$0xff]
        %v1920 = vld [vmem:[%s4 + $0xd0] sm:$0xff]
        %v1921 = vld [vmem:[%s4 + $0xd8] sm:$0xff]
        %v1922 = vld [vmem:[%s4 + $0xe0] sm:$0xff]
        %v1923 = vld [vmem:[%s4 + $0xe8] sm:$0xff]
        %v1924 = vld [vmem:[%s4 + $0xf0] sm:$0xff]
        %v1925 = vld [vmem:[%s4 + $0xf8] sm:$0xff]
        %v1958 = vunpack.c.l.b16 %v1894
        %v1959 = vunpack.c.h.b16 %v1894
        %v1960 = vunpack.c.l.b16 %v1895
        %v1961 = vunpack.c.h.b16 %v1895
        %v1962 = vunpack.c.l.b16 %v1896
        %v1963 = vunpack.c.h.b16 %v1896
        %v1964 = vunpack.c.l.b16 %v1897
        %v1965 = vunpack.c.h.b16 %v1897
        %v1966 = vunpack.c.l.b16 %v1898
        %v1967 = vunpack.c.h.b16 %v1898
        %v1968 = vunpack.c.l.b16 %v1899
        %v1969 = vunpack.c.h.b16 %v1899
        %v1970 = vunpack.c.l.b16 %v1900
        %v1971 = vunpack.c.h.b16 %v1900
        %v1972 = vunpack.c.l.b16 %v1901
        %v1973 = vunpack.c.h.b16 %v1901
        %v1974 = vunpack.c.l.b16 %v1902
        %v1975 = vunpack.c.h.b16 %v1902
        %v1976 = vunpack.c.l.b16 %v1903
        %v1977 = vunpack.c.h.b16 %v1903
        %v1978 = vunpack.c.l.b16 %v1904
        %v1979 = vunpack.c.h.b16 %v1904
        %v1980 = vunpack.c.l.b16 %v1905
        %v1981 = vunpack.c.h.b16 %v1905
        %v1982 = vunpack.c.l.b16 %v1906
        %v1983 = vunpack.c.h.b16 %v1906
        %v1984 = vunpack.c.l.b16 %v1907
        %v1985 = vunpack.c.h.b16 %v1907
        %v1986 = vunpack.c.l.b16 %v1908
        %v1987 = vunpack.c.h.b16 %v1908
        %v1988 = vunpack.c.l.b16 %v1909
        %v1989 = vunpack.c.h.b16 %v1909
        %v1990 = vunpack.c.l.b16 %v1910
        %v1991 = vunpack.c.h.b16 %v1910
        %v1992 = vunpack.c.l.b16 %v1911
        %v1993 = vunpack.c.h.b16 %v1911
        %v1994 = vunpack.c.l.b16 %v1912
        %v1995 = vunpack.c.h.b16 %v1912
        %v1996 = vunpack.c.l.b16 %v1913
        %v1997 = vunpack.c.h.b16 %v1913
        %v1998 = vunpack.c.l.b16 %v1914
        %v1999 = vunpack.c.h.b16 %v1914
        %v2000 = vunpack.c.l.b16 %v1915
        %v2001 = vunpack.c.h.b16 %v1915
        %v2002 = vunpack.c.l.b16 %v1916
        %v2003 = vunpack.c.h.b16 %v1916
        %v2004 = vunpack.c.l.b16 %v1917
        %v2005 = vunpack.c.h.b16 %v1917
        %v2006 = vunpack.c.l.b16 %v1918
        %v2007 = vunpack.c.h.b16 %v1918
        %v2008 = vunpack.c.l.b16 %v1919
        %v2009 = vunpack.c.h.b16 %v1919
        %v2010 = vunpack.c.l.b16 %v1920
        %v2011 = vunpack.c.h.b16 %v1920
        %v2012 = vunpack.c.l.b16 %v1921
        %v2013 = vunpack.c.h.b16 %v1921
        %v2014 = vunpack.c.l.b16 %v1922
        %v2015 = vunpack.c.h.b16 %v1922
        %v2016 = vunpack.c.l.b16 %v1923
        %v2017 = vunpack.c.h.b16 %v1923
        %v2018 = vunpack.c.l.b16 %v1924
        %v2019 = vunpack.c.h.b16 %v1924
        %v2020 = vunpack.c.l.b16 %v1925
        %v2021 = vunpack.c.h.b16 %v1925
        %v2022 = vpack.c.b16 %v1960, %v1958
        %v2023 = vpack.c.b16 %v1961, %v1959
        %v2024 = vpack.c.b16 %v1964, %v1962
        %v2025 = vpack.c.b16 %v1965, %v1963
        %v2026 = vpack.c.b16 %v1968, %v1966
        %v2027 = vpack.c.b16 %v1969, %v1967
        %v2028 = vpack.c.b16 %v1972, %v1970
        %v2029 = vpack.c.b16 %v1973, %v1971
        %v2030 = vpack.c.b16 %v1976, %v1974
        %v2031 = vpack.c.b16 %v1977, %v1975
        %v2032 = vpack.c.b16 %v1980, %v1978
        %v2033 = vpack.c.b16 %v1981, %v1979
        %v2034 = vpack.c.b16 %v1984, %v1982
        %v2035 = vpack.c.b16 %v1985, %v1983
        %v2036 = vpack.c.b16 %v1988, %v1986
        %v2037 = vpack.c.b16 %v1989, %v1987
        %v2038 = vpack.c.b16 %v1992, %v1990
        %v2039 = vpack.c.b16 %v1993, %v1991
        %v2040 = vpack.c.b16 %v1996, %v1994
        %v2041 = vpack.c.b16 %v1997, %v1995
        %v2042 = vpack.c.b16 %v2000, %v1998
        %v2043 = vpack.c.b16 %v2001, %v1999
        %v2044 = vpack.c.b16 %v2004, %v2002
        %v2045 = vpack.c.b16 %v2005, %v2003
        %v2046 = vpack.c.b16 %v2008, %v2006
        %v2047 = vpack.c.b16 %v2009, %v2007
        %v2048 = vpack.c.b16 %v2012, %v2010
        %v2049 = vpack.c.b16 %v2013, %v2011
        %v2050 = vpack.c.b16 %v2016, %v2014
        %v2051 = vpack.c.b16 %v2017, %v2015
        %v2052 = vpack.c.b16 %v2020, %v2018
        %v2053 = vpack.c.b16 %v2021, %v2019
        %2086 = vmatprep.subr.bf16.mxu0 %v2023
        %2087 = vmatpush1.bf16.msra.mxu0 %v2022
        %2088 = vmatprep.subr.bf16.mxu0 %v2025
        %2089 = vmatpush1.bf16.msra.mxu0 %v2024
        %2090 = vmatprep.subr.bf16.mxu0 %v2027
        %2091 = vmatpush1.bf16.msra.mxu0 %v2026
        %2092 = vmatprep.subr.bf16.mxu0 %v2029
        %2093 = vmatpush1.bf16.msra.mxu0 %v2028
        %2094 = vmatprep.subr.bf16.mxu0 %v2031
        %2095 = vmatpush1.bf16.msra.mxu0 %v2030
        %2096 = vmatprep.subr.bf16.mxu0 %v2033
        %2097 = vmatpush1.bf16.msra.mxu0 %v2032
        %2098 = vmatprep.subr.bf16.mxu0 %v2035
        %2099 = vmatpush1.bf16.msra.mxu0 %v2034
        %2100 = vmatprep.subr.bf16.mxu0 %v2037
        %2101 = vmatpush1.bf16.msra.mxu0 %v2036
        %2102 = vmatprep.subr.bf16.mxu0 %v2039
        %2103 = vmatpush1.bf16.msra.mxu0 %v2038
        %2104 = vmatprep.subr.bf16.mxu0 %v2041
        %2105 = vmatpush1.bf16.msra.mxu0 %v2040
        %2106 = vmatprep.subr.bf16.mxu0 %v2043
        %2107 = vmatpush1.bf16.msra.mxu0 %v2042
        %2108 = vmatprep.subr.bf16.mxu0 %v2045
        %2109 = vmatpush1.bf16.msra.mxu0 %v2044
        %2110 = vmatprep.subr.bf16.mxu0 %v2047
        %2111 = vmatpush1.bf16.msra.mxu0 %v2046
        %2112 = vmatprep.subr.bf16.mxu0 %v2049
        %2113 = vmatpush1.bf16.msra.mxu0 %v2048
        %2114 = vmatprep.subr.bf16.mxu0 %v2051
        %2115 = vmatpush1.bf16.msra.mxu0 %v2050
        %2116 = vmatprep.subr.bf16.mxu0 %v2053
        %2117 = vmatpush1.bf16.msra.mxu0 %v2052
        %2118 = vmatprep.mubr.bf16.mxu0 %v1893
        %2119 = vmatmul.mubr.bf16.gmra.mrb[0].mxu0 %v1892
        %v2120 = vpop.f32.mrb[0].mxu0
        %v2121 = vadd.f32 0.0, %v2120
        %v2122 = vpop.f32.mrb[0].mxu0
        %v2123 = vadd.f32 0.0, %v2122
        %v2124 = vpop.f32.mrb[0].mxu0
        %v2125 = vpop.f32.mrb[0].mxu0
        %2126 = vdwg.mxu0
        %v2127 = vmul.f32 %v2121, 0.49497473
        %v2128 = vmul.f32 %v2123, 0.49497473
        %v2129 = vadd.f32 %v458, %v2127
        %v2130 = vadd.f32 %v459, %v2128
        %2131 = vst [vmem:[%s448] sm:$0xff] %v2129
        %2132 = vst [vmem:[%s448 + $0x8] sm:$0xff] %v2130
        %v2133 = vmul.f32 %v2129, %v2129
        %v2134 = vmul.f32 %v2130, %v2130
        %v2135 = vadd.f32 %v2133, %v2134
        %2136 = vadd.xlane.f32.xlu0 %v2135
        %v2137 = vpop.xlane.xlu0 %2136
        %v2138 = vmul.f32 %v2137, %v465
        %v2139 = vadd.f32 %v2138, 1e-05
        %v2140 = vrsqrt.pop %v2139
        %v2141 = vmul.f32 %v2129, %v2140
        %v2142 = vmul.f32 %v2130, %v2140
        %v2143 = vld [vmem:[%s2] sm:$0x3]
        %v2145 = vlaneseq
        %v2146 = vshrl.u32 %v2145, 7
        %v2147 = vsub.s32 0, %v2146
        %v2148 = vrot.slane %v2143, %v2147
        %v2149 = vlaneseq
        %v2150 = vshrl.u32 %v2149, 7
        %v2151 = vsub.s32 1, %v2150
        %v2152 = vrot.slane %v2143, %v2151
        %v2155 = vmul.f32 %v2141, %v2148
        %v2156 = vmul.f32 %v2142, %v2152
        %v2157 = vpack.c.bf16 %v2155, %v2155
        %v2158 = vpack.c.bf16 %v2156, %v2156
        %v2159 = vld [vmem:[%s6] sm:$0xf]
        %v2160 = vld [vmem:[%s6 + $0x4] sm:$0xf]
        %v2161 = vld [vmem:[%s6 + $0x8] sm:$0xf]
        %v2162 = vld [vmem:[%s6 + $0xc] sm:$0xf]
        %v2163 = vld [vmem:[%s6 + $0x10] sm:$0xf]
        %v2164 = vld [vmem:[%s6 + $0x14] sm:$0xf]
        %v2165 = vld [vmem:[%s6 + $0x18] sm:$0xf]
        %v2166 = vld [vmem:[%s6 + $0x1c] sm:$0xf]
        %v2167 = vld [vmem:[%s6 + $0x20] sm:$0xf]
        %v2168 = vld [vmem:[%s6 + $0x24] sm:$0xf]
        %v2169 = vld [vmem:[%s6 + $0x28] sm:$0xf]
        %v2170 = vld [vmem:[%s6 + $0x2c] sm:$0xf]
        %v2171 = vld [vmem:[%s6 + $0x30] sm:$0xf]
        %v2172 = vld [vmem:[%s6 + $0x34] sm:$0xf]
        %v2173 = vld [vmem:[%s6 + $0x38] sm:$0xf]
        %v2174 = vld [vmem:[%s6 + $0x3c] sm:$0xf]
        %v2175 = vld [vmem:[%s6 + $0x40] sm:$0xf]
        %v2176 = vld [vmem:[%s6 + $0x44] sm:$0xf]
        %v2177 = vld [vmem:[%s6 + $0x48] sm:$0xf]
        %v2178 = vld [vmem:[%s6 + $0x4c] sm:$0xf]
        %v2179 = vld [vmem:[%s6 + $0x50] sm:$0xf]
        %v2180 = vld [vmem:[%s6 + $0x54] sm:$0xf]
        %v2181 = vld [vmem:[%s6 + $0x58] sm:$0xf]
        %v2182 = vld [vmem:[%s6 + $0x5c] sm:$0xf]
        %v2183 = vld [vmem:[%s6 + $0x60] sm:$0xf]
        %v2184 = vld [vmem:[%s6 + $0x64] sm:$0xf]
        %v2185 = vld [vmem:[%s6 + $0x68] sm:$0xf]
        %v2186 = vld [vmem:[%s6 + $0x6c] sm:$0xf]
        %v2187 = vld [vmem:[%s6 + $0x70] sm:$0xf]
        %v2188 = vld [vmem:[%s6 + $0x74] sm:$0xf]
        %v2189 = vld [vmem:[%s6 + $0x78] sm:$0xf]
        %v2190 = vld [vmem:[%s6 + $0x7c] sm:$0xf]
        %v2223 = vunpack.c.l.b16 %v2159
        %v2224 = vunpack.c.l.b16 %v2160
        %v2225 = vunpack.c.l.b16 %v2161
        %v2226 = vunpack.c.l.b16 %v2162
        %v2227 = vunpack.c.l.b16 %v2163
        %v2228 = vunpack.c.l.b16 %v2164
        %v2229 = vunpack.c.l.b16 %v2165
        %v2230 = vunpack.c.l.b16 %v2166
        %v2231 = vunpack.c.l.b16 %v2167
        %v2232 = vunpack.c.l.b16 %v2168
        %v2233 = vunpack.c.l.b16 %v2169
        %v2234 = vunpack.c.l.b16 %v2170
        %v2235 = vunpack.c.l.b16 %v2171
        %v2236 = vunpack.c.l.b16 %v2172
        %v2237 = vunpack.c.l.b16 %v2173
        %v2238 = vunpack.c.l.b16 %v2174
        %v2239 = vunpack.c.l.b16 %v2175
        %v2240 = vunpack.c.l.b16 %v2176
        %v2241 = vunpack.c.l.b16 %v2177
        %v2242 = vunpack.c.l.b16 %v2178
        %v2243 = vunpack.c.l.b16 %v2179
        %v2244 = vunpack.c.l.b16 %v2180
        %v2245 = vunpack.c.l.b16 %v2181
        %v2246 = vunpack.c.l.b16 %v2182
        %v2247 = vunpack.c.l.b16 %v2183
        %v2248 = vunpack.c.l.b16 %v2184
        %v2249 = vunpack.c.l.b16 %v2185
        %v2250 = vunpack.c.l.b16 %v2186
        %v2251 = vunpack.c.l.b16 %v2187
        %v2252 = vunpack.c.l.b16 %v2188
        %v2253 = vunpack.c.l.b16 %v2189
        %v2254 = vunpack.c.l.b16 %v2190
        %v2255 = vpack.c.b16 %v2224, %v2223
        %v2256 = vpack.c.b16 %v2226, %v2225
        %v2257 = vpack.c.b16 %v2228, %v2227
        %v2258 = vpack.c.b16 %v2230, %v2229
        %v2259 = vpack.c.b16 %v2232, %v2231
        %v2260 = vpack.c.b16 %v2234, %v2233
        %v2261 = vpack.c.b16 %v2236, %v2235
        %v2262 = vpack.c.b16 %v2238, %v2237
        %v2263 = vpack.c.b16 %v2240, %v2239
        %v2264 = vpack.c.b16 %v2242, %v2241
        %v2265 = vpack.c.b16 %v2244, %v2243
        %v2266 = vpack.c.b16 %v2246, %v2245
        %v2267 = vpack.c.b16 %v2248, %v2247
        %v2268 = vpack.c.b16 %v2250, %v2249
        %v2269 = vpack.c.b16 %v2252, %v2251
        %v2270 = vpack.c.b16 %v2254, %v2253
        %2287 = vmatprep.subr.bf16.mxu0 0
        %2288 = vmatpush1.bf16.msra.mxu0 %v2255
        %2289 = vmatprep.subr.bf16.mxu0 0
        %2290 = vmatpush1.bf16.msra.mxu0 %v2256
        %2291 = vmatprep.subr.bf16.mxu0 0
        %2292 = vmatpush1.bf16.msra.mxu0 %v2257
        %2293 = vmatprep.subr.bf16.mxu0 0
        %2294 = vmatpush1.bf16.msra.mxu0 %v2258
        %2295 = vmatprep.subr.bf16.mxu0 0
        %2296 = vmatpush1.bf16.msra.mxu0 %v2259
        %2297 = vmatprep.subr.bf16.mxu0 0
        %2298 = vmatpush1.bf16.msra.mxu0 %v2260
        %2299 = vmatprep.subr.bf16.mxu0 0
        %2300 = vmatpush1.bf16.msra.mxu0 %v2261
        %2301 = vmatprep.subr.bf16.mxu0 0
        %2302 = vmatpush1.bf16.msra.mxu0 %v2262
        %2303 = vmatprep.subr.bf16.mxu0 0
        %2304 = vmatpush1.bf16.msra.mxu0 %v2263
        %2305 = vmatprep.subr.bf16.mxu0 0
        %2306 = vmatpush1.bf16.msra.mxu0 %v2264
        %2307 = vmatprep.subr.bf16.mxu0 0
        %2308 = vmatpush1.bf16.msra.mxu0 %v2265
        %2309 = vmatprep.subr.bf16.mxu0 0
        %2310 = vmatpush1.bf16.msra.mxu0 %v2266
        %2311 = vmatprep.subr.bf16.mxu0 0
        %2312 = vmatpush1.bf16.msra.mxu0 %v2267
        %2313 = vmatprep.subr.bf16.mxu0 0
        %2314 = vmatpush1.bf16.msra.mxu0 %v2268
        %2315 = vmatprep.subr.bf16.mxu0 0
        %2316 = vmatpush1.bf16.msra.mxu0 %v2269
        %2317 = vmatprep.subr.bf16.mxu0 0
        %2318 = vmatpush1.bf16.msra.mxu0 %v2270
        %2319 = vmatprep.mubr.bf16.mxu0 %v2158
        %2320 = vmatmul.mubr.bf16.gmra.mrb[0].mxu0 %v2157
        %v2321 = vpop.f32.mrb[0].mxu0
        %v2322 = vadd.f32 0.0, %v2321
        %v2323 = vpop.f32.mrb[0].mxu0
        %v2324 = vpop.f32.mrb[0].mxu0
        %v2325 = vpop.f32.mrb[0].mxu0
        %2326 = vdwg.mxu0
        %v2327 = vpack.c.bf16 %v2322, %v2322
        %vm2328 = vcmask 519168
        %2329 = vst.msk [vmem:[%s452] sm:$0xf] %vm2328, %v2327
        %v2330 = vld [vmem:[%s5] sm:$0xf]
        %v2331 = vld [vmem:[%s5 + $0x4] sm:$0xf]
        %v2332 = vld [vmem:[%s5 + $0x8] sm:$0xf]
        %v2333 = vld [vmem:[%s5 + $0xc] sm:$0xf]
        %v2334 = vld [vmem:[%s5 + $0x10] sm:$0xf]
        %v2335 = vld [vmem:[%s5 + $0x14] sm:$0xf]
        %v2336 = vld [vmem:[%s5 + $0x18] sm:$0xf]
        %v2337 = vld [vmem:[%s5 + $0x1c] sm:$0xf]
        %v2338 = vld [vmem:[%s5 + $0x20] sm:$0xf]
        %v2339 = vld [vmem:[%s5 + $0x24] sm:$0xf]
        %v2340 = vld [vmem:[%s5 + $0x28] sm:$0xf]
        %v2341 = vld [vmem:[%s5 + $0x2c] sm:$0xf]
        %v2342 = vld [vmem:[%s5 + $0x30] sm:$0xf]
        %v2343 = vld [vmem:[%s5 + $0x34] sm:$0xf]
        %v2344 = vld [vmem:[%s5 + $0x38] sm:$0xf]
        %v2345 = vld [vmem:[%s5 + $0x3c] sm:$0xf]
        %v2346 = vld [vmem:[%s5 + $0x40] sm:$0xf]
        %v2347 = vld [vmem:[%s5 + $0x44] sm:$0xf]
        %v2348 = vld [vmem:[%s5 + $0x48] sm:$0xf]
        %v2349 = vld [vmem:[%s5 + $0x4c] sm:$0xf]
        %v2350 = vld [vmem:[%s5 + $0x50] sm:$0xf]
        %v2351 = vld [vmem:[%s5 + $0x54] sm:$0xf]
        %v2352 = vld [vmem:[%s5 + $0x58] sm:$0xf]
        %v2353 = vld [vmem:[%s5 + $0x5c] sm:$0xf]
        %v2354 = vld [vmem:[%s5 + $0x60] sm:$0xf]
        %v2355 = vld [vmem:[%s5 + $0x64] sm:$0xf]
        %v2356 = vld [vmem:[%s5 + $0x68] sm:$0xf]
        %v2357 = vld [vmem:[%s5 + $0x6c] sm:$0xf]
        %v2358 = vld [vmem:[%s5 + $0x70] sm:$0xf]
        %v2359 = vld [vmem:[%s5 + $0x74] sm:$0xf]
        %v2360 = vld [vmem:[%s5 + $0x78] sm:$0xf]
        %v2361 = vld [vmem:[%s5 + $0x7c] sm:$0xf]
        %v2394 = vunpack.c.l.b16 %v2330
        %v2395 = vunpack.c.l.b16 %v2331
        %v2396 = vunpack.c.l.b16 %v2332
        %v2397 = vunpack.c.l.b16 %v2333
        %v2398 = vunpack.c.l.b16 %v2334
        %v2399 = vunpack.c.l.b16 %v2335
        %v2400 = vunpack.c.l.b16 %v2336
        %v2401 = vunpack.c.l.b16 %v2337
        %v2402 = vunpack.c.l.b16 %v2338
        %v2403 = vunpack.c.l.b16 %v2339
        %v2404 = vunpack.c.l.b16 %v2340
        %v2405 = vunpack.c.l.b16 %v2341
        %v2406 = vunpack.c.l.b16 %v2342
        %v2407 = vunpack.c.l.b16 %v2343
        %v2408 = vunpack.c.l.b16 %v2344
        %v2409 = vunpack.c.l.b16 %v2345
        %v2410 = vunpack.c.l.b16 %v2346
        %v2411 = vunpack.c.l.b16 %v2347
        %v2412 = vunpack.c.l.b16 %v2348
        %v2413 = vunpack.c.l.b16 %v2349
        %v2414 = vunpack.c.l.b16 %v2350
        %v2415 = vunpack.c.l.b16 %v2351
        %v2416 = vunpack.c.l.b16 %v2352
        %v2417 = vunpack.c.l.b16 %v2353
        %v2418 = vunpack.c.l.b16 %v2354
        %v2419 = vunpack.c.l.b16 %v2355
        %v2420 = vunpack.c.l.b16 %v2356
        %v2421 = vunpack.c.l.b16 %v2357
        %v2422 = vunpack.c.l.b16 %v2358
        %v2423 = vunpack.c.l.b16 %v2359
        %v2424 = vunpack.c.l.b16 %v2360
        %v2425 = vunpack.c.l.b16 %v2361
        %v2426 = vpack.c.b16 %v2395, %v2394
        %v2427 = vpack.c.b16 %v2397, %v2396
        %v2428 = vpack.c.b16 %v2399, %v2398
        %v2429 = vpack.c.b16 %v2401, %v2400
        %v2430 = vpack.c.b16 %v2403, %v2402
        %v2431 = vpack.c.b16 %v2405, %v2404
        %v2432 = vpack.c.b16 %v2407, %v2406
        %v2433 = vpack.c.b16 %v2409, %v2408
        %v2434 = vpack.c.b16 %v2411, %v2410
        %v2435 = vpack.c.b16 %v2413, %v2412
        %v2436 = vpack.c.b16 %v2415, %v2414
        %v2437 = vpack.c.b16 %v2417, %v2416
        %v2438 = vpack.c.b16 %v2419, %v2418
        %v2439 = vpack.c.b16 %v2421, %v2420
        %v2440 = vpack.c.b16 %v2423, %v2422
        %v2441 = vpack.c.b16 %v2425, %v2424
        %2458 = vmatprep.subr.bf16.mxu0 0
        %2459 = vmatpush1.bf16.msra.mxu0 %v2426
        %2460 = vmatprep.subr.bf16.mxu0 0
        %2461 = vmatpush1.bf16.msra.mxu0 %v2427
        %2462 = vmatprep.subr.bf16.mxu0 0
        %2463 = vmatpush1.bf16.msra.mxu0 %v2428
        %2464 = vmatprep.subr.bf16.mxu0 0
        %2465 = vmatpush1.bf16.msra.mxu0 %v2429
        %2466 = vmatprep.subr.bf16.mxu0 0
        %2467 = vmatpush1.bf16.msra.mxu0 %v2430
        %2468 = vmatprep.subr.bf16.mxu0 0
        %2469 = vmatpush1.bf16.msra.mxu0 %v2431
        %2470 = vmatprep.subr.bf16.mxu0 0
        %2471 = vmatpush1.bf16.msra.mxu0 %v2432
        %2472 = vmatprep.subr.bf16.mxu0 0
        %2473 = vmatpush1.bf16.msra.mxu0 %v2433
        %2474 = vmatprep.subr.bf16.mxu0 0
        %2475 = vmatpush1.bf16.msra.mxu0 %v2434
        %2476 = vmatprep.subr.bf16.mxu0 0
        %2477 = vmatpush1.bf16.msra.mxu0 %v2435
        %2478 = vmatprep.subr.bf16.mxu0 0
        %2479 = vmatpush1.bf16.msra.mxu0 %v2436
        %2480 = vmatprep.subr.bf16.mxu0 0
        %2481 = vmatpush1.bf16.msra.mxu0 %v2437
        %2482 = vmatprep.subr.bf16.mxu0 0
        %2483 = vmatpush1.bf16.msra.mxu0 %v2438
        %2484 = vmatprep.subr.bf16.mxu0 0
        %2485 = vmatpush1.bf16.msra.mxu0 %v2439
        %2486 = vmatprep.subr.bf16.mxu0 0
        %2487 = vmatpush1.bf16.msra.mxu0 %v2440
        %2488 = vmatprep.subr.bf16.mxu0 0
        %2489 = vmatpush1.bf16.msra.mxu0 %v2441
        %2490 = vmatprep.mubr.bf16.mxu0 %v2158
        %2491 = vmatmul.mubr.bf16.gmra.mrb[0].mxu0 %v2157
        %v2492 = vpop.f32.mrb[0].mxu0
        %v2493 = vadd.f32 0.0, %v2492
        %v2494 = vpop.f32.mrb[0].mxu0
        %v2495 = vpop.f32.mrb[0].mxu0
        %v2496 = vpop.f32.mrb[0].mxu0
        %2497 = vdwg.mxu0
        %vm2498 = vcmask 31744
        %2499 = vst.msk [vmem:[%s456] sm:$0xff] %vm2498, %v2493
        %p2500 = scmp.lt.s32.totalorder %s24, 1
        %s2501 = scalar_select %p2500, %s24, 1
        %s2502 = smul.addr %s2501, 2
        %s2503 = smul.addr %s2502, 8
        %s2504 = scalar_lea.vmem %s9, %s2503
        %p2505 = scmp.lt.s32.totalorder %s24, 1
        %s2506 = scalar_select %p2505, %s24, 1
        %s2507 = smul.addr %s2506, 4
        %s2508 = scalar_lea.vmem %s10, %s2507
        %p2509 = scmp.lt.s32.totalorder %s24, 1
        %s2510 = scalar_select %p2509, %s24, 1
        %s2511 = smul.addr %s2510, 8
        %s2512 = scalar_lea.vmem %s11, %s2511
        // Predicated region
        $region61: #{_lambda_.2} parent=55 // pred_check
          %p2513 = pneg %p246
        $region62: #{_lambda_.2} parent=55 // pred_check_branch
          %2515 = sbr.rel (%p2513) target = $region64
        $region63: #{_lambda_.2} parent=55 // pred_region
          _
        $region64: #{_lambda_.2} parent=55 // pred_fallthru
          _
        // Predicated region
        $region65: #{_lambda_.2} parent=55 // pred_check
          %p2516 = pneg %p272
        $region66: #{_lambda_.2} parent=55 // pred_check_branch
          %2518 = sbr.rel (%p2516) target = $region68
        $region67: #{_lambda_.2} parent=55 // pred_region
          _
        $region68: #{_lambda_.2} parent=55 // pred_fallthru
          _
        // Predicated region
        $region69: #{_lambda_.2} parent=55 // pred_check
          %p2519 = pneg %p298
        $region70: #{_lambda_.2} parent=55 // pred_check_branch
          %2521 = sbr.rel (%p2519) target = $region72
        $region71: #{_lambda_.2} parent=55 // pred_region
          _
        $region72: #{_lambda_.2} parent=55 // pred_fallthru
          _
      $region56: #{_lambda_.2} parent=5 // pred_fallthru
        _
      %p2522 = scmp.le.s32.totalorder 2, %s19
      // Predicated region
      $region73: #{_lambda_.2} parent=5 // pred_check
        %p2523 = pneg %p2522
      $region74: #{_lambda_.2} parent=5 // pred_check_branch
        %2525 = sbr.rel (%p2523) target = $region76
      $region75: #{_lambda_.2} parent=5 // pred_region
        %s2526 = ssub.s32 %s19, 2
        // Predicated region
        $region77: #{_lambda_.2} parent=75 // pred_check
          %p2527 = pneg %p252
        $region78: #{_lambda_.2} parent=75 // pred_check_branch
          %2529 = sbr.rel (%p2527) target = $region80
        $region79: #{_lambda_.2} parent=75 // pred_region
          %p2530 = scmp.lt.s32.totalorder %s25, 1
          %s2531 = scalar_select %p2530, %s25, 1
          %s2532 = smul.addr %s2531, 2
          %s2533 = smul.addr %s2532, 8
          %s2534 = scalar_lea.vmem %s9, %s2533
        $region80: #{_lambda_.2} parent=75 // pred_fallthru
          _
        // Predicated region
        $region81: #{_lambda_.2} parent=75 // pred_check
          %p2535 = pneg %p278
        $region82: #{_lambda_.2} parent=75 // pred_check_branch
          %2537 = sbr.rel (%p2535) target = $region84
        $region83: #{_lambda_.2} parent=75 // pred_region
          %p2538 = scmp.lt.s32.totalorder %s25, 1
          %s2539 = scalar_select %p2538, %s25, 1
          %s2540 = smul.addr %s2539, 4
          %s2541 = scalar_lea.vmem %s10, %s2540
        $region84: #{_lambda_.2} parent=75 // pred_fallthru
          _
        // Predicated region
        $region85: #{_lambda_.2} parent=75 // pred_check
          %p2542 = pneg %p304
        $region86: #{_lambda_.2} parent=75 // pred_check_branch
          %2544 = sbr.rel (%p2542) target = $region88
        $region87: #{_lambda_.2} parent=75 // pred_region
          %p2545 = scmp.lt.s32.totalorder %s25, 1
          %s2546 = scalar_select %p2545, %s25, 1
          %s2547 = smul.addr %s2546, 8
          %s2548 = scalar_lea.vmem %s11, %s2547
        $region88: #{_lambda_.2} parent=75 // pred_fallthru
          _
      $region76: #{_lambda_.2} parent=5 // pred_fallthru
        _
    $region6: #{_lambda_.2} parent=1 // loop_footer
      %s23 = sadd.s32 1, %s19
    $region7: #{_lambda_.2} parent=1 // loop_footer_branch
      %18 = sbr.rel target = $region3
    $region8: #{_lambda_.2} parent=1 // loop_exit
      _
    %2549 = vsyncpa [#allocation3], 1
    %s2550 = scalar_lea.sflag [#allocation3], 1
    %2551 = vsyncpa %s2550, 1

</llo_original>
